<compile_context>
chip_gen: v7x
topology: tpu7x:2x2x1
jax: 0.10.0
libtpu: 0.0.40
codegen_flags: <defaults>
</compile_context>

<pallas_src>
import functools

import jax
import jax.numpy as jnp
from jax.experimental import pallas as pl
from jax.experimental.pallas import tpu as pltpu


# ----------------------------------------------------------------------------
# Fused Pallas kernel: whole DiffusionModel forward for one batch group.
# ----------------------------------------------------------------------------
def _fused_diffusion_kernel(x_ref, gsb_ref, w_ref, b_ref, mask_ref,
                            out_ref, orig_ref, *, H, W, T, CP, GB):
    """Layout: channels on sublanes (padded to CP, multiple of 8); the GB batch
    elements x flattened spatial (GB*H*W) on the lane axis (lane-dense).

    x_ref    : (1, CP, GHW)     VMEM  input activations
    gsb_ref  : (T+1,)           SMEM  [graph_schedule (T), seg-bias-sum (1)]
    w_ref    : (4T, CP, 9*CP)   VMEM  stacked-tap conv weights (one slab/conv)
    b_ref    : (4T+1, CP, 1)    VMEM  conv biases; slot 4T = folded seg weight
    mask_ref : (9*CP, GHW)      VMEM  stacked 3x3 halo border masks
    out_ref  : (1, 1, GHW)      VMEM  seg output
    orig_ref : (T, CP, GHW)     VMEM  scratch: per-step origins
    """
    HW = H * W
    GHW = GB * HW
    taps = [(kh - 1, kw - 1) for kh in range(3) for kw in range(3)]

    def conv3x3(a, layer, relu):
        # Stack the 9 shifted taps along sublanes -> (9*CP, GHW), zero the
        # out-of-image halo with the precomputed mask, then ONE MXU dot with
        # K = 9*CP (instead of 9 K=CP matmuls).
        slabs = []
        for dh, dw in taps:
            if (dh, dw) == (0, 0):
                slabs.append(a)
            else:
                # shifted[n] = a[n + dh*W + dw]; stays inside the same batch
                # element whenever the target pixel is inside the image, and
                # the mask zeroes everything else.
                shift = (-(dh * W + dw)) % GHW
                slabs.append(pltpu.roll(a, shift, 1))
        stacked = jnp.concatenate(slabs, axis=0) * mask_ref[...]
        acc = jnp.dot(w_ref[layer], stacked,
                      preferred_element_type=jnp.float32) + b_ref[layer]
        if relu:
            acc = jnp.maximum(acc, 0.0)
        return acc

    cur = x_ref[0]                                        # (CP, GHW) f32

    # Forward diffusion chain (CANDY blocks); origins go to VMEM scratch so
    # vreg pressure stays bounded for any T.
    for t in range(T):
        orig_ref[t] = cur
        h1 = conv3x3(cur, 2 * t, relu=True)
        cur = conv3x3(h1, 2 * t + 1, relu=False)

    # Reverse chain (UNet blocks) with graph_schedule mixing.
    for t in reversed(range(T)):
        g = gsb_ref[t]
        xm = (1.0 - g) * cur + g * orig_ref[t]
        h1 = conv3x3(xm, 2 * T + 2 * t, relu=True)
        cur = conv3x3(h1, 2 * T + 2 * t + 1, relu=False)

    # Folded seg head: sum over classes of (1x1 conv + bias)
    #   == sublane-reduce(cur * W.sum(classes)) + b.sum(classes)
    seg = jnp.sum(cur * b_ref[4 * T], axis=0, keepdims=True) + gsb_ref[T]
    out_ref[0] = seg.astype(out_ref.dtype)


# ----------------------------------------------------------------------------
# One-time host-side packing (hoisted OUT of the jitted forward).
# ----------------------------------------------------------------------------
def _round_up(n, m):
    return m * ((n + m - 1) // m)


def pack_operands(params, H, W, GB, graph_schedule=None):
    T = len(params["candies"])
    chans = set()
    for p in params["candies"] + params["unets"]:
        chans.add(p["w1"].shape[2]); chans.add(p["w1"].shape[3])
        chans.add(p["w2"].shape[3])
    CP = _round_up(max(chans), 8)
    HW = H * W
    GHW = GB * HW

    def prep_w(w):                      # (3,3,Cin,Cout) -> (CP, 9*CP)
        cin, cout = w.shape[2], w.shape[3]
        w9 = jnp.transpose(w, (0, 1, 3, 2)).reshape(9, cout, cin)     # (9,Cout,Cin)
        w9 = jnp.pad(w9, ((0, 0), (0, CP - cout), (0, CP - cin)))     # (9,CP,CP)
        return jnp.transpose(w9, (1, 0, 2)).reshape(CP, 9 * CP)       # (CP,9*CP)

    def prep_b(b):                      # (1, Cout) -> (CP, 1)
        return jnp.pad(b.reshape(-1, 1), ((0, CP - b.shape[1]), (0, 0)))

    w_list, b_list = [], []
    for p in params["candies"] + params["unets"]:
        w_list += [prep_w(p["w1"]), prep_w(p["w2"])]
        b_list += [prep_b(p["b1"]), prep_b(p["b2"])]
    w_packed = jnp.stack(w_list, axis=0).astype(jnp.float32)          # (4T,CP,9CP)

    # Folded seg head (exact): W.sum(classes) rides in the last bias slot.
    w_seg = jnp.sum(params["seg_head"]["w"], axis=1)                  # (Cout,)
    w_seg = jnp.pad(w_seg, (0, CP - w_seg.shape[0])).reshape(CP, 1)
    b_list.append(w_seg)
    b_packed = jnp.stack(b_list, axis=0).astype(jnp.float32)          # (4T+1,CP,1)

    if graph_schedule is None:
        graph_schedule = jnp.linspace(0.7, 0.2, T, dtype=jnp.float32)
    gs = jnp.asarray(graph_schedule, jnp.float32).reshape(T)
    b_seg = jnp.sum(params["seg_head"]["b"]).reshape(1).astype(jnp.float32)
    gsb = jnp.concatenate([gs, b_seg])                                 # (T+1,)

    # Stacked 3x3 halo masks (tap t = kh*3+kw occupies rows [t*CP,(t+1)*CP));
    # centre tap rows are all ones, so one multiply masks the whole stack.
    n = jnp.arange(GHW)
    pos = n % HW
    hh, ww = pos // W, pos % W
    rows = []
    for kh in range(3):
        for kw in range(3):
            dh, dw = kh - 1, kw - 1
            m = ((hh + dh >= 0) & (hh + dh < H) &
                 (ww + dw >= 0) & (ww + dw < W)).astype(jnp.float32)
            rows.append(jnp.broadcast_to(m[None, :], (CP, GHW)))
    mask = jnp.concatenate(rows, axis=0)                               # (9CP,GHW)

    arrays = {"w": w_packed, "b": b_packed, "gsb": gsb, "mask": mask}
    meta = {"CP": CP, "T": T}
    return arrays, meta


# ----------------------------------------------------------------------------
# Jittable forward: activation packing + single pallas_call.
# ----------------------------------------------------------------------------
def diffusion_forward_packed(packed, x_nchw, *, H, W, T, CP, n_groups):
    B, C = x_nchw.shape[0], x_nchw.shape[1]
    assert B % n_groups == 0
    GB = B // n_groups
    HW = H * W
    GHW = GB * HW

    # Activation layout: (groups, CP, GB*HW) — channels on sublanes (padded
    # channels are exact zeros through the whole chain), batch x spatial on
    # the lane axis (lane-dense, unmasked stores).
    x = x_nchw.astype(jnp.float32).reshape(n_groups, GB, C, HW)
    x = jnp.pad(x, ((0, 0), (0, 0), (0, CP - C), (0, 0)))
    x = jnp.transpose(x, (0, 2, 1, 3)).reshape(n_groups, CP, GHW)

    def const_spec(a):
        nd = a.ndim
        return pl.BlockSpec(a.shape, lambda g, _n=nd: (0,) * _n)

    kernel = functools.partial(_fused_diffusion_kernel,
                               H=H, W=W, T=T, CP=CP, GB=GB)
    out = pl.pallas_call(
        kernel,
        grid=(n_groups,),
        in_specs=[
            pl.BlockSpec((1, CP, GHW), lambda g: (g, 0, 0)),
            pl.BlockSpec((T + 1,), lambda g: (0,),
                         memory_space=pltpu.MemorySpace.SMEM),
            const_spec(packed["w"]),
            const_spec(packed["b"]),
            const_spec(packed["mask"]),
        ],
        out_specs=pl.BlockSpec((1, 1, GHW), lambda g: (g, 0, 0)),
        out_shape=jax.ShapeDtypeStruct((n_groups, 1, GHW), jnp.float32),
        scratch_shapes=[pltpu.VMEM((T, CP, GHW), jnp.float32)],
        compiler_params=pltpu.CompilerParams(
            dimension_semantics=("parallel",)),
    )(x, packed["gsb"], packed["w"], packed["b"], packed["mask"])

    return out.reshape(B, 1, H, W)


def _default_batch_groups(batch_size):
    """2 lane-merged batch groups on dual-TensorCore chips (v7x) so both cores
    get work; a single grid step (whole batch on lanes) on single-TC v5e/v6e."""
    try:
        kind = jax.devices()[0].device_kind.lower()
    except Exception:
        kind = ""
    n_cores = 2 if "v7" in kind else 1
    g = max(1, min(batch_size, n_cores))
    while batch_size % g:
        g -= 1
    return g


def diffusion_forward(params, x_nchw, graph_schedule=None, n_groups=None):
    """Convenience wrapper (packing NOT hoisted — prefer pack_operands + the
    jitted diffusion_forward_packed for repeated calls)."""
    B, _, H, W = x_nchw.shape
    if n_groups is None:
        n_groups = _default_batch_groups(B)
    packed, meta = pack_operands(params, H, W, B // n_groups, graph_schedule)
    return diffusion_forward_packed(packed, x_nchw, H=H, W=W, T=meta["T"],
                                    CP=meta["CP"], n_groups=n_groups)


# ----------------------------------------------------------------------------
# Pure-JAX reference (same math; used for a numerical self-check).
# ----------------------------------------------------------------------------
def _conv3x3_ref(x, w, b):
    y = jax.lax.conv_general_dilated(
        x, w, window_strides=(1, 1), padding=((1, 1), (1, 1)),
        dimension_numbers=("NCHW", "HWIO", "NCHW"),
        precision=jax.lax.Precision.HIGHEST)
    return y + b.reshape(1, -1, 1, 1)


def diffusion_forward_ref(params, x, graph_schedule=None):
    T = len(params["candies"])
    if graph_schedule is None:
        graph_schedule = jnp.linspace(0.7, 0.2, T, dtype=jnp.float32)
    cur = x
    origins = []
    for t in range(T):
        p = params["candies"][t]
        origins.append(cur)
        h = jnp.maximum(_conv3x3_ref(cur, p["w1"], p["b1"]), 0.0)
        cur = _conv3x3_ref(h, p["w2"], p["b2"])
    for t in reversed(range(T)):
        p = params["unets"][t]
        g = graph_schedule[t]
        xm = (1.0 - g) * cur + g * origins[t]
        h = jnp.maximum(_conv3x3_ref(xm, p["w1"], p["b1"]), 0.0)
        cur = _conv3x3_ref(h, p["w2"], p["b2"])
    w = params["seg_head"]["w"]                                  # (Cout, classes)
    b = params["seg_head"]["b"]                                  # (1, classes)
    seg = jnp.einsum("bchw,ck->bkhw", cur, w,
                     precision=jax.lax.Precision.HIGHEST) + b.reshape(1, -1, 1, 1)
    return jnp.sum(seg, axis=1, keepdims=True)


# ----------------------------------------------------------------------------
# Deterministic parameter init (synthetic CANDY / UNet weights)
# ----------------------------------------------------------------------------
def _init_conv(key, cin, cout):
    k1, k2 = jax.random.split(key)
    fan_in = 3 * 3 * cin
    w = jax.random.normal(k1, (3, 3, cin, cout), jnp.float32) / jnp.sqrt(fan_in)
    b = 0.01 * jax.random.normal(k2, (1, cout), jnp.float32)
    return w, b


def init_params(key, in_channel, hidden_channel, out_channel, T, num_classes):
    params = {"candies": [], "unets": []}
    for _ in range(T):
        key, k1, k2 = jax.random.split(key, 3)
        w1, b1 = _init_conv(k1, in_channel, hidden_channel)
        w2, b2 = _init_conv(k2, hidden_channel, in_channel)
        params["candies"].append({"w1": w1, "b1": b1, "w2": w2, "b2": b2})
    for _ in range(T):
        key, k1, k2 = jax.random.split(key, 3)
        w1, b1 = _init_conv(k1, in_channel, out_channel)
        w2, b2 = _init_conv(k2, out_channel, out_channel)
        params["unets"].append({"w1": w1, "b1": b1, "w2": w2, "b2": b2})
    key, k1, k2 = jax.random.split(key, 3)
    params["seg_head"] = {
        "w": jax.random.normal(k1, (out_channel, num_classes), jnp.float32)
             / jnp.sqrt(out_channel),
        "b": 0.01 * jax.random.normal(k2, (1, num_classes), jnp.float32),
    }
    return params


# ----------------------------------------------------------------------------
if __name__ == "__main__":
    # Small, consistent shapes (in_channel == out_channel so the UNet chain
    # composes, as the reference forward requires).
    batch_size = 2
    in_channel = 4
    hidden_channel = 8
    out_channel = 4
    input_size = 16      # W
    hidden_size = 16     # H
    T = 3
    num_classes = 5

    key = jax.random.PRNGKey(0)
    key, pkey, xkey = jax.random.split(key, 3)
    params = init_params(pkey, in_channel, hidden_channel, out_channel, T, num_classes)
    x = jax.random.normal(
        xkey, (batch_size, in_channel, hidden_size, input_size), jnp.float32)

    # One-time host-side packing (kept out of the jitted forward).
    n_groups = _default_batch_groups(batch_size)
    packed, meta = pack_operands(params, hidden_size, input_size,
                                 batch_size // n_groups)

    fwd = jax.jit(functools.partial(
        diffusion_forward_packed, H=hidden_size, W=input_size,
        T=meta["T"], CP=meta["CP"], n_groups=n_groups))
    out = jax.block_until_ready(fwd(packed, x))

    assert out.shape == (batch_size, 1, hidden_size, input_size), out.shape
    assert bool(jnp.all(jnp.isfinite(out)))

    # Numerical self-check against the pure-JAX reference implementation.
    ref = jax.block_until_ready(
        jax.jit(lambda p, xx: diffusion_forward_ref(p, xx))(params, x))
    err = float(jnp.max(jnp.abs(out - ref)))
    assert err < 1e-2, f"Pallas kernel mismatch vs JAX reference: max abs err = {err}"

    print("KERNEL_OK")
</pallas_src>

<mosaic_0001>
module attributes {stable_mosaic.version = 11 : i64} {
  func.func @_fused_diffusion_kernel(%arg0: i32, %arg1: memref<1x8x512xf32, #tpu.memory_space<vmem>>, %arg2: memref<4xf32, #tpu.memory_space<smem>>, %arg3: memref<12x8x72xf32, #tpu.memory_space<vmem>>, %arg4: memref<13x8x1xf32, #tpu.memory_space<vmem>>, %arg5: memref<72x512xf32, #tpu.memory_space<vmem>>, %arg6: memref<1x1x512xf32, #tpu.memory_space<vmem>>, %arg7: memref<3x8x512xf32, #tpu.memory_space<vmem>>) attributes {dimension_semantics = [#tpu.dimension_semantics<parallel>], iteration_bounds = array<i64: 1>, scalar_prefetch = 0 : i64, scratch_operands = 1 : i64, tpu.core_type = #tpu.core_type<tc>, window_params = [{transform_indices = @transform_0, window_bounds = array<i64: 1, 8, 512>}, {transform_indices = @transform_1, window_bounds = array<i64: 4>}, {pipeline_mode = #tpu.pipeline_mode<synchronous>, transform_indices = @transform_2, window_bounds = array<i64: 12, 8, 72>}, {pipeline_mode = #tpu.pipeline_mode<synchronous>, transform_indices = @transform_3, window_bounds = array<i64: 13, 8, 1>}, {pipeline_mode = #tpu.pipeline_mode<synchronous>, transform_indices = @transform_4, window_bounds = array<i64: 72, 512>}, {transform_indices = @transform_5, window_bounds = array<i64: 1, 1, 512>}]} {
    %c0 = arith.constant 0 : index
    %c0_0 = arith.constant 0 : index
    %c0_1 = arith.constant 0 : index
    %0 = vector.load %arg1[%c0, %c0_0, %c0_1] : memref<1x8x512xf32, #tpu.memory_space<vmem>>, vector<1x8x512xf32>
    %1 = vector.shape_cast %0 : vector<1x8x512xf32> to vector<8x512xf32>
    %c0_2 = arith.constant 0 : index
    %c0_3 = arith.constant 0 : index
    %c0_4 = arith.constant 0 : index
    %2 = vector.load %arg7[%c0_2, %c0_3, %c0_4] : memref<3x8x512xf32, #tpu.memory_space<vmem>>, vector<1x8x512xf32>
    %3 = vector.shape_cast %2 : vector<1x8x512xf32> to vector<8x512xf32>
    %4 = vector.shape_cast %1 : vector<8x512xf32> to vector<1x8x512xf32>
    tpu.vector_store %arg7[%c0_2, %c0_3, %c0_4], %4 {strides = array<i32>} : memref<3x8x512xf32, #tpu.memory_space<vmem>>, vector<1x8x512xf32>,
    %c17_i32 = arith.constant 17 : i32
    %5 = tpu.dynamic_rotate %1 by %c17_i32 dim 1 : vector<8x512xf32>, i32 -> vector<8x512xf32>
    %c16_i32 = arith.constant 16 : i32
    %6 = tpu.dynamic_rotate %1 by %c16_i32 dim 1 : vector<8x512xf32>, i32 -> vector<8x512xf32>
    %c15_i32 = arith.constant 15 : i32
    %7 = tpu.dynamic_rotate %1 by %c15_i32 dim 1 : vector<8x512xf32>, i32 -> vector<8x512xf32>
    %c1_i32 = arith.constant 1 : i32
    %8 = tpu.dynamic_rotate %1 by %c1_i32 dim 1 : vector<8x512xf32>, i32 -> vector<8x512xf32>
    %c511_i32 = arith.constant 511 : i32
    %9 = tpu.dynamic_rotate %1 by %c511_i32 dim 1 : vector<8x512xf32>, i32 -> vector<8x512xf32>
    %c497_i32 = arith.constant 497 : i32
    %10 = tpu.dynamic_rotate %1 by %c497_i32 dim 1 : vector<8x512xf32>, i32 -> vector<8x512xf32>
    %c496_i32 = arith.constant 496 : i32
    %11 = tpu.dynamic_rotate %1 by %c496_i32 dim 1 : vector<8x512xf32>, i32 -> vector<8x512xf32>
    %c495_i32 = arith.constant 495 : i32
    %12 = tpu.dynamic_rotate %1 by %c495_i32 dim 1 : vector<8x512xf32>, i32 -> vector<8x512xf32>
    %13 = tpu.concatenate %5, %6, %7, %8, %1, %9, %10, %11, %12 in 0 : vector<8x512xf32>, vector<8x512xf32>, vector<8x512xf32>, vector<8x512xf32>, vector<8x512xf32>, vector<8x512xf32>, vector<8x512xf32>, vector<8x512xf32>, vector<8x512xf32> -> vector<72x512xf32>
    %c0_5 = arith.constant 0 : index
    %c0_6 = arith.constant 0 : index
    %14 = vector.load %arg5[%c0_5, %c0_6] : memref<72x512xf32, #tpu.memory_space<vmem>>, vector<72x512xf32>
    %15 = arith.mulf %13, %14 : vector<72x512xf32>
    %c0_7 = arith.constant 0 : index
    %c0_8 = arith.constant 0 : index
    %c0_9 = arith.constant 0 : index
    %16 = vector.load %arg3[%c0_7, %c0_8, %c0_9] : memref<12x8x72xf32, #tpu.memory_space<vmem>>, vector<1x8x72xf32>
    %17 = vector.shape_cast %16 : vector<1x8x72xf32> to vector<8x72xf32>
    %cst = arith.constant dense<0.000000e+00> : vector<8x512xf32>
    %18 = tpu.matmul %17, %15, %cst {dimension_numbers = #tpu.dot_dimension_numbers<[1], [0], [0], [1], [0, 0, 1, 1], [], []>} : vector<8x72xf32>, vector<72x512xf32>, vector<8x512xf32> -> vector<8x512xf32>
    %c0_10 = arith.constant 0 : index
    %c0_11 = arith.constant 0 : index
    %c0_12 = arith.constant 0 : index
    %19 = vector.load %arg4[%c0_10, %c0_11, %c0_12] : memref<13x8x1xf32, #tpu.memory_space<vmem>>, vector<1x8x1xf32>
    %20 = vector.shape_cast %19 : vector<1x8x1xf32> to vector<8x1xf32>
    %21 = vector.broadcast %20 : vector<8x1xf32> to vector<8x512xf32>
    %22 = arith.addf %18, %21 : vector<8x512xf32>
    %cst_13 = arith.constant 0.000000e+00 : f32
    %23 = vector.broadcast %cst_13 : f32 to vector<8x512xf32>
    %24 = arith.maximumf %22, %23 : vector<8x512xf32>
    %c17_i32_14 = arith.constant 17 : i32
    %25 = tpu.dynamic_rotate %24 by %c17_i32_14 dim 1 : vector<8x512xf32>, i32 -> vector<8x512xf32>
    %c16_i32_15 = arith.constant 16 : i32
    %26 = tpu.dynamic_rotate %24 by %c16_i32_15 dim 1 : vector<8x512xf32>, i32 -> vector<8x512xf32>
    %c15_i32_16 = arith.constant 15 : i32
    %27 = tpu.dynamic_rotate %24 by %c15_i32_16 dim 1 : vector<8x512xf32>, i32 -> vector<8x512xf32>
    %c1_i32_17 = arith.constant 1 : i32
    %28 = tpu.dynamic_rotate %24 by %c1_i32_17 dim 1 : vector<8x512xf32>, i32 -> vector<8x512xf32>
    %c511_i32_18 = arith.constant 511 : i32
    %29 = tpu.dynamic_rotate %24 by %c511_i32_18 dim 1 : vector<8x512xf32>, i32 -> vector<8x512xf32>
    %c497_i32_19 = arith.constant 497 : i32
    %30 = tpu.dynamic_rotate %24 by %c497_i32_19 dim 1 : vector<8x512xf32>, i32 -> vector<8x512xf32>
    %c496_i32_20 = arith.constant 496 : i32
    %31 = tpu.dynamic_rotate %24 by %c496_i32_20 dim 1 : vector<8x512xf32>, i32 -> vector<8x512xf32>
    %c495_i32_21 = arith.constant 495 : i32
    %32 = tpu.dynamic_rotate %24 by %c495_i32_21 dim 1 : vector<8x512xf32>, i32 -> vector<8x512xf32>
    %33 = tpu.concatenate %25, %26, %27, %28, %24, %29, %30, %31, %32 in 0 : vector<8x512xf32>, vector<8x512xf32>, vector<8x512xf32>, vector<8x512xf32>, vector<8x512xf32>, vector<8x512xf32>, vector<8x512xf32>, vector<8x512xf32>, vector<8x512xf32> -> vector<72x512xf32>
    %c0_22 = arith.constant 0 : index
    %c0_23 = arith.constant 0 : index
    %34 = vector.load %arg5[%c0_22, %c0_23] : memref<72x512xf32, #tpu.memory_space<vmem>>, vector<72x512xf32>
    %35 = arith.mulf %33, %34 : vector<72x512xf32>
    %c1 = arith.constant 1 : index
    %c0_24 = arith.constant 0 : index
    %c0_25 = arith.constant 0 : index
    %36 = vector.load %arg3[%c1, %c0_24, %c0_25] : memref<12x8x72xf32, #tpu.memory_space<vmem>>, vector<1x8x72xf32>
    %37 = vector.shape_cast %36 : vector<1x8x72xf32> to vector<8x72xf32>
    %cst_26 = arith.constant dense<0.000000e+00> : vector<8x512xf32>
    %38 = tpu.matmul %37, %35, %cst_26 {dimension_numbers = #tpu.dot_dimension_numbers<[1], [0], [0], [1], [0, 0, 1, 1], [], []>} : vector<8x72xf32>, vector<72x512xf32>, vector<8x512xf32> -> vector<8x512xf32>
    %c1_27 = arith.constant 1 : index
    %c0_28 = arith.constant 0 : index
    %c0_29 = arith.constant 0 : index
    %39 = vector.load %arg4[%c1_27, %c0_28, %c0_29] : memref<13x8x1xf32, #tpu.memory_space<vmem>>, vector<1x8x1xf32>
    %40 = vector.shape_cast %39 : vector<1x8x1xf32> to vector<8x1xf32>
    %41 = vector.broadcast %40 : vector<8x1xf32> to vector<8x512xf32>
    %42 = arith.addf %38, %41 : vector<8x512xf32>
    %c1_30 = arith.constant 1 : index
    %c0_31 = arith.constant 0 : index
    %c0_32 = arith.constant 0 : index
    %43 = vector.load %arg7[%c1_30, %c0_31, %c0_32] : memref<3x8x512xf32, #tpu.memory_space<vmem>>, vector<1x8x512xf32>
    %44 = vector.shape_cast %43 : vector<1x8x512xf32> to vector<8x512xf32>
    %45 = vector.shape_cast %42 : vector<8x512xf32> to vector<1x8x512xf32>
    tpu.vector_store %arg7[%c1_30, %c0_31, %c0_32], %45 {strides = array<i32>} : memref<3x8x512xf32, #tpu.memory_space<vmem>>, vector<1x8x512xf32>,
    %c17_i32_33 = arith.constant 17 : i32
    %46 = tpu.dynamic_rotate %42 by %c17_i32_33 dim 1 : vector<8x512xf32>, i32 -> vector<8x512xf32>
    %c16_i32_34 = arith.constant 16 : i32
    %47 = tpu.dynamic_rotate %42 by %c16_i32_34 dim 1 : vector<8x512xf32>, i32 -> vector<8x512xf32>
    %c15_i32_35 = arith.constant 15 : i32
    %48 = tpu.dynamic_rotate %42 by %c15_i32_35 dim 1 : vector<8x512xf32>, i32 -> vector<8x512xf32>
    %c1_i32_36 = arith.constant 1 : i32
    %49 = tpu.dynamic_rotate %42 by %c1_i32_36 dim 1 : vector<8x512xf32>, i32 -> vector<8x512xf32>
    %c511_i32_37 = arith.constant 511 : i32
    %50 = tpu.dynamic_rotate %42 by %c511_i32_37 dim 1 : vector<8x512xf32>, i32 -> vector<8x512xf32>
    %c497_i32_38 = arith.constant 497 : i32
    %51 = tpu.dynamic_rotate %42 by %c497_i32_38 dim 1 : vector<8x512xf32>, i32 -> vector<8x512xf32>
    %c496_i32_39 = arith.constant 496 : i32
    %52 = tpu.dynamic_rotate %42 by %c496_i32_39 dim 1 : vector<8x512xf32>, i32 -> vector<8x512xf32>
    %c495_i32_40 = arith.constant 495 : i32
    %53 = tpu.dynamic_rotate %42 by %c495_i32_40 dim 1 : vector<8x512xf32>, i32 -> vector<8x512xf32>
    %54 = tpu.concatenate %46, %47, %48, %49, %42, %50, %51, %52, %53 in 0 : vector<8x512xf32>, vector<8x512xf32>, vector<8x512xf32>, vector<8x512xf32>, vector<8x512xf32>, vector<8x512xf32>, vector<8x512xf32>, vector<8x512xf32>, vector<8x512xf32> -> vector<72x512xf32>
    %c0_41 = arith.constant 0 : index
    %c0_42 = arith.constant 0 : index
    %55 = vector.load %arg5[%c0_41, %c0_42] : memref<72x512xf32, #tpu.memory_space<vmem>>, vector<72x512xf32>
    %56 = arith.mulf %54, %55 : vector<72x512xf32>
    %c2 = arith.constant 2 : index
    %c0_43 = arith.constant 0 : index
    %c0_44 = arith.constant 0 : index
    %57 = vector.load %arg3[%c2, %c0_43, %c0_44] : memref<12x8x72xf32, #tpu.memory_space<vmem>>, vector<1x8x72xf32>
    %58 = vector.shape_cast %57 : vector<1x8x72xf32> to vector<8x72xf32>
    %cst_45 = arith.constant dense<0.000000e+00> : vector<8x512xf32>
    %59 = tpu.matmul %58, %56, %cst_45 {dimension_numbers = #tpu.dot_dimension_numbers<[1], [0], [0], [1], [0, 0, 1, 1], [], []>} : vector<8x72xf32>, vector<72x512xf32>, vector<8x512xf32> -> vector<8x512xf32>
    %c2_46 = arith.constant 2 : index
    %c0_47 = arith.constant 0 : index
    %c0_48 = arith.constant 0 : index
    %60 = vector.load %arg4[%c2_46, %c0_47, %c0_48] : memref<13x8x1xf32, #tpu.memory_space<vmem>>, vector<1x8x1xf32>
    %61 = vector.shape_cast %60 : vector<1x8x1xf32> to vector<8x1xf32>
    %62 = vector.broadcast %61 : vector<8x1xf32> to vector<8x512xf32>
    %63 = arith.addf %59, %62 : vector<8x512xf32>
    %cst_49 = arith.constant 0.000000e+00 : f32
    %64 = vector.broadcast %cst_49 : f32 to vector<8x512xf32>
    %65 = arith.maximumf %63, %64 : vector<8x512xf32>
    %c17_i32_50 = arith.constant 17 : i32
    %66 = tpu.dynamic_rotate %65 by %c17_i32_50 dim 1 : vector<8x512xf32>, i32 -> vector<8x512xf32>
    %c16_i32_51 = arith.constant 16 : i32
    %67 = tpu.dynamic_rotate %65 by %c16_i32_51 dim 1 : vector<8x512xf32>, i32 -> vector<8x512xf32>
    %c15_i32_52 = arith.constant 15 : i32
    %68 = tpu.dynamic_rotate %65 by %c15_i32_52 dim 1 : vector<8x512xf32>, i32 -> vector<8x512xf32>
    %c1_i32_53 = arith.constant 1 : i32
    %69 = tpu.dynamic_rotate %65 by %c1_i32_53 dim 1 : vector<8x512xf32>, i32 -> vector<8x512xf32>
    %c511_i32_54 = arith.constant 511 : i32
    %70 = tpu.dynamic_rotate %65 by %c511_i32_54 dim 1 : vector<8x512xf32>, i32 -> vector<8x512xf32>
    %c497_i32_55 = arith.constant 497 : i32
    %71 = tpu.dynamic_rotate %65 by %c497_i32_55 dim 1 : vector<8x512xf32>, i32 -> vector<8x512xf32>
    %c496_i32_56 = arith.constant 496 : i32
    %72 = tpu.dynamic_rotate %65 by %c496_i32_56 dim 1 : vector<8x512xf32>, i32 -> vector<8x512xf32>
    %c495_i32_57 = arith.constant 495 : i32
    %73 = tpu.dynamic_rotate %65 by %c495_i32_57 dim 1 : vector<8x512xf32>, i32 -> vector<8x512xf32>
    %74 = tpu.concatenate %66, %67, %68, %69, %65, %70, %71, %72, %73 in 0 : vector<8x512xf32>, vector<8x512xf32>, vector<8x512xf32>, vector<8x512xf32>, vector<8x512xf32>, vector<8x512xf32>, vector<8x512xf32>, vector<8x512xf32>, vector<8x512xf32> -> vector<72x512xf32>
    %c0_58 = arith.constant 0 : index
    %c0_59 = arith.constant 0 : index
    %75 = vector.load %arg5[%c0_58, %c0_59] : memref<72x512xf32, #tpu.memory_space<vmem>>, vector<72x512xf32>
    %76 = arith.mulf %74, %75 : vector<72x512xf32>
    %c3 = arith.constant 3 : index
    %c0_60 = arith.constant 0 : index
    %c0_61 = arith.constant 0 : index
    %77 = vector.load %arg3[%c3, %c0_60, %c0_61] : memref<12x8x72xf32, #tpu.memory_space<vmem>>, vector<1x8x72xf32>
    %78 = vector.shape_cast %77 : vector<1x8x72xf32> to vector<8x72xf32>
    %cst_62 = arith.constant dense<0.000000e+00> : vector<8x512xf32>
    %79 = tpu.matmul %78, %76, %cst_62 {dimension_numbers = #tpu.dot_dimension_numbers<[1], [0], [0], [1], [0, 0, 1, 1], [], []>} : vector<8x72xf32>, vector<72x512xf32>, vector<8x512xf32> -> vector<8x512xf32>
    %c3_63 = arith.constant 3 : index
    %c0_64 = arith.constant 0 : index
    %c0_65 = arith.constant 0 : index
    %80 = vector.load %arg4[%c3_63, %c0_64, %c0_65] : memref<13x8x1xf32, #tpu.memory_space<vmem>>, vector<1x8x1xf32>
    %81 = vector.shape_cast %80 : vector<1x8x1xf32> to vector<8x1xf32>
    %82 = vector.broadcast %81 : vector<8x1xf32> to vector<8x512xf32>
    %83 = arith.addf %79, %82 : vector<8x512xf32>
    %c2_66 = arith.constant 2 : index
    %c0_67 = arith.constant 0 : index
    %c0_68 = arith.constant 0 : index
    %84 = vector.load %arg7[%c2_66, %c0_67, %c0_68] : memref<3x8x512xf32, #tpu.memory_space<vmem>>, vector<1x8x512xf32>
    %85 = vector.shape_cast %84 : vector<1x8x512xf32> to vector<8x512xf32>
    %86 = vector.shape_cast %83 : vector<8x512xf32> to vector<1x8x512xf32>
    tpu.vector_store %arg7[%c2_66, %c0_67, %c0_68], %86 {strides = array<i32>} : memref<3x8x512xf32, #tpu.memory_space<vmem>>, vector<1x8x512xf32>,
    %c17_i32_69 = arith.constant 17 : i32
    %87 = tpu.dynamic_rotate %83 by %c17_i32_69 dim 1 : vector<8x512xf32>, i32 -> vector<8x512xf32>
    %c16_i32_70 = arith.constant 16 : i32
    %88 = tpu.dynamic_rotate %83 by %c16_i32_70 dim 1 : vector<8x512xf32>, i32 -> vector<8x512xf32>
    %c15_i32_71 = arith.constant 15 : i32
    %89 = tpu.dynamic_rotate %83 by %c15_i32_71 dim 1 : vector<8x512xf32>, i32 -> vector<8x512xf32>
    %c1_i32_72 = arith.constant 1 : i32
    %90 = tpu.dynamic_rotate %83 by %c1_i32_72 dim 1 : vector<8x512xf32>, i32 -> vector<8x512xf32>
    %c511_i32_73 = arith.constant 511 : i32
    %91 = tpu.dynamic_rotate %83 by %c511_i32_73 dim 1 : vector<8x512xf32>, i32 -> vector<8x512xf32>
    %c497_i32_74 = arith.constant 497 : i32
    %92 = tpu.dynamic_rotate %83 by %c497_i32_74 dim 1 : vector<8x512xf32>, i32 -> vector<8x512xf32>
    %c496_i32_75 = arith.constant 496 : i32
    %93 = tpu.dynamic_rotate %83 by %c496_i32_75 dim 1 : vector<8x512xf32>, i32 -> vector<8x512xf32>
    %c495_i32_76 = arith.constant 495 : i32
    %94 = tpu.dynamic_rotate %83 by %c495_i32_76 dim 1 : vector<8x512xf32>, i32 -> vector<8x512xf32>
    %95 = tpu.concatenate %87, %88, %89, %90, %83, %91, %92, %93, %94 in 0 : vector<8x512xf32>, vector<8x512xf32>, vector<8x512xf32>, vector<8x512xf32>, vector<8x512xf32>, vector<8x512xf32>, vector<8x512xf32>, vector<8x512xf32>, vector<8x512xf32> -> vector<72x512xf32>
    %c0_77 = arith.constant 0 : index
    %c0_78 = arith.constant 0 : index
    %96 = vector.load %arg5[%c0_77, %c0_78] : memref<72x512xf32, #tpu.memory_space<vmem>>, vector<72x512xf32>
    %97 = arith.mulf %95, %96 : vector<72x512xf32>
    %c4 = arith.constant 4 : index
    %c0_79 = arith.constant 0 : index
    %c0_80 = arith.constant 0 : index
    %98 = vector.load %arg3[%c4, %c0_79, %c0_80] : memref<12x8x72xf32, #tpu.memory_space<vmem>>, vector<1x8x72xf32>
    %99 = vector.shape_cast %98 : vector<1x8x72xf32> to vector<8x72xf32>
    %cst_81 = arith.constant dense<0.000000e+00> : vector<8x512xf32>
    %100 = tpu.matmul %99, %97, %cst_81 {dimension_numbers = #tpu.dot_dimension_numbers<[1], [0], [0], [1], [0, 0, 1, 1], [], []>} : vector<8x72xf32>, vector<72x512xf32>, vector<8x512xf32> -> vector<8x512xf32>
    %c4_82 = arith.constant 4 : index
    %c0_83 = arith.constant 0 : index
    %c0_84 = arith.constant 0 : index
    %101 = vector.load %arg4[%c4_82, %c0_83, %c0_84] : memref<13x8x1xf32, #tpu.memory_space<vmem>>, vector<1x8x1xf32>
    %102 = vector.shape_cast %101 : vector<1x8x1xf32> to vector<8x1xf32>
    %103 = vector.broadcast %102 : vector<8x1xf32> to vector<8x512xf32>
    %104 = arith.addf %100, %103 : vector<8x512xf32>
    %cst_85 = arith.constant 0.000000e+00 : f32
    %105 = vector.broadcast %cst_85 : f32 to vector<8x512xf32>
    %106 = arith.maximumf %104, %105 : vector<8x512xf32>
    %c17_i32_86 = arith.constant 17 : i32
    %107 = tpu.dynamic_rotate %106 by %c17_i32_86 dim 1 : vector<8x512xf32>, i32 -> vector<8x512xf32>
    %c16_i32_87 = arith.constant 16 : i32
    %108 = tpu.dynamic_rotate %106 by %c16_i32_87 dim 1 : vector<8x512xf32>, i32 -> vector<8x512xf32>
    %c15_i32_88 = arith.constant 15 : i32
    %109 = tpu.dynamic_rotate %106 by %c15_i32_88 dim 1 : vector<8x512xf32>, i32 -> vector<8x512xf32>
    %c1_i32_89 = arith.constant 1 : i32
    %110 = tpu.dynamic_rotate %106 by %c1_i32_89 dim 1 : vector<8x512xf32>, i32 -> vector<8x512xf32>
    %c511_i32_90 = arith.constant 511 : i32
    %111 = tpu.dynamic_rotate %106 by %c511_i32_90 dim 1 : vector<8x512xf32>, i32 -> vector<8x512xf32>
    %c497_i32_91 = arith.constant 497 : i32
    %112 = tpu.dynamic_rotate %106 by %c497_i32_91 dim 1 : vector<8x512xf32>, i32 -> vector<8x512xf32>
    %c496_i32_92 = arith.constant 496 : i32
    %113 = tpu.dynamic_rotate %106 by %c496_i32_92 dim 1 : vector<8x512xf32>, i32 -> vector<8x512xf32>
    %c495_i32_93 = arith.constant 495 : i32
    %114 = tpu.dynamic_rotate %106 by %c495_i32_93 dim 1 : vector<8x512xf32>, i32 -> vector<8x512xf32>
    %115 = tpu.concatenate %107, %108, %109, %110, %106, %111, %112, %113, %114 in 0 : vector<8x512xf32>, vector<8x512xf32>, vector<8x512xf32>, vector<8x512xf32>, vector<8x512xf32>, vector<8x512xf32>, vector<8x512xf32>, vector<8x512xf32>, vector<8x512xf32> -> vector<72x512xf32>
    %c0_94 = arith.constant 0 : index
    %c0_95 = arith.constant 0 : index
    %116 = vector.load %arg5[%c0_94, %c0_95] : memref<72x512xf32, #tpu.memory_space<vmem>>, vector<72x512xf32>
    %117 = arith.mulf %115, %116 : vector<72x512xf32>
    %c5 = arith.constant 5 : index
    %c0_96 = arith.constant 0 : index
    %c0_97 = arith.constant 0 : index
    %118 = vector.load %arg3[%c5, %c0_96, %c0_97] : memref<12x8x72xf32, #tpu.memory_space<vmem>>, vector<1x8x72xf32>
    %119 = vector.shape_cast %118 : vector<1x8x72xf32> to vector<8x72xf32>
    %cst_98 = arith.constant dense<0.000000e+00> : vector<8x512xf32>
    %120 = tpu.matmul %119, %117, %cst_98 {dimension_numbers = #tpu.dot_dimension_numbers<[1], [0], [0], [1], [0, 0, 1, 1], [], []>} : vector<8x72xf32>, vector<72x512xf32>, vector<8x512xf32> -> vector<8x512xf32>
    %c5_99 = arith.constant 5 : index
    %c0_100 = arith.constant 0 : index
    %c0_101 = arith.constant 0 : index
    %121 = vector.load %arg4[%c5_99, %c0_100, %c0_101] : memref<13x8x1xf32, #tpu.memory_space<vmem>>, vector<1x8x1xf32>
    %122 = vector.shape_cast %121 : vector<1x8x1xf32> to vector<8x1xf32>
    %123 = vector.broadcast %122 : vector<8x1xf32> to vector<8x512xf32>
    %124 = arith.addf %120, %123 : vector<8x512xf32>
    %c2_102 = arith.constant 2 : index
    %125 = memref.load %arg2[%c2_102] : memref<4xf32, #tpu.memory_space<smem>>
    %cst_103 = arith.constant 1.000000e+00 : f32
    %126 = arith.subf %cst_103, %125 : f32
    %127 = vector.broadcast %126 : f32 to vector<8x512xf32>
    %128 = arith.mulf %127, %124 : vector<8x512xf32>
    %c2_104 = arith.constant 2 : index
    %c0_105 = arith.constant 0 : index
    %c0_106 = arith.constant 0 : index
    %129 = vector.load %arg7[%c2_104, %c0_105, %c0_106] : memref<3x8x512xf32, #tpu.memory_space<vmem>>, vector<1x8x512xf32>
    %130 = vector.shape_cast %129 : vector<1x8x512xf32> to vector<8x512xf32>
    %131 = vector.broadcast %125 : f32 to vector<8x512xf32>
    %132 = arith.mulf %131, %130 : vector<8x512xf32>
    %133 = arith.addf %128, %132 : vector<8x512xf32>
    %c17_i32_107 = arith.constant 17 : i32
    %134 = tpu.dynamic_rotate %133 by %c17_i32_107 dim 1 : vector<8x512xf32>, i32 -> vector<8x512xf32>
    %c16_i32_108 = arith.constant 16 : i32
    %135 = tpu.dynamic_rotate %133 by %c16_i32_108 dim 1 : vector<8x512xf32>, i32 -> vector<8x512xf32>
    %c15_i32_109 = arith.constant 15 : i32
    %136 = tpu.dynamic_rotate %133 by %c15_i32_109 dim 1 : vector<8x512xf32>, i32 -> vector<8x512xf32>
    %c1_i32_110 = arith.constant 1 : i32
    %137 = tpu.dynamic_rotate %133 by %c1_i32_110 dim 1 : vector<8x512xf32>, i32 -> vector<8x512xf32>
    %c511_i32_111 = arith.constant 511 : i32
    %138 = tpu.dynamic_rotate %133 by %c511_i32_111 dim 1 : vector<8x512xf32>, i32 -> vector<8x512xf32>
    %c497_i32_112 = arith.constant 497 : i32
    %139 = tpu.dynamic_rotate %133 by %c497_i32_112 dim 1 : vector<8x512xf32>, i32 -> vector<8x512xf32>
    %c496_i32_113 = arith.constant 496 : i32
    %140 = tpu.dynamic_rotate %133 by %c496_i32_113 dim 1 : vector<8x512xf32>, i32 -> vector<8x512xf32>
    %c495_i32_114 = arith.constant 495 : i32
    %141 = tpu.dynamic_rotate %133 by %c495_i32_114 dim 1 : vector<8x512xf32>, i32 -> vector<8x512xf32>
    %142 = tpu.concatenate %134, %135, %136, %137, %133, %138, %139, %140, %141 in 0 : vector<8x512xf32>, vector<8x512xf32>, vector<8x512xf32>, vector<8x512xf32>, vector<8x512xf32>, vector<8x512xf32>, vector<8x512xf32>, vector<8x512xf32>, vector<8x512xf32> -> vector<72x512xf32>
    %c0_115 = arith.constant 0 : index
    %c0_116 = arith.constant 0 : index
    %143 = vector.load %arg5[%c0_115, %c0_116] : memref<72x512xf32, #tpu.memory_space<vmem>>, vector<72x512xf32>
    %144 = arith.mulf %142, %143 : vector<72x512xf32>
    %c10 = arith.constant 10 : index
    %c0_117 = arith.constant 0 : index
    %c0_118 = arith.constant 0 : index
    %145 = vector.load %arg3[%c10, %c0_117, %c0_118] : memref<12x8x72xf32, #tpu.memory_space<vmem>>, vector<1x8x72xf32>
    %146 = vector.shape_cast %145 : vector<1x8x72xf32> to vector<8x72xf32>
    %cst_119 = arith.constant dense<0.000000e+00> : vector<8x512xf32>
    %147 = tpu.matmul %146, %144, %cst_119 {dimension_numbers = #tpu.dot_dimension_numbers<[1], [0], [0], [1], [0, 0, 1, 1], [], []>} : vector<8x72xf32>, vector<72x512xf32>, vector<8x512xf32> -> vector<8x512xf32>
    %c10_120 = arith.constant 10 : index
    %c0_121 = arith.constant 0 : index
    %c0_122 = arith.constant 0 : index
    %148 = vector.load %arg4[%c10_120, %c0_121, %c0_122] : memref<13x8x1xf32, #tpu.memory_space<vmem>>, vector<1x8x1xf32>
    %149 = vector.shape_cast %148 : vector<1x8x1xf32> to vector<8x1xf32>
    %150 = vector.broadcast %149 : vector<8x1xf32> to vector<8x512xf32>
    %151 = arith.addf %147, %150 : vector<8x512xf32>
    %cst_123 = arith.constant 0.000000e+00 : f32
    %152 = vector.broadcast %cst_123 : f32 to vector<8x512xf32>
    %153 = arith.maximumf %151, %152 : vector<8x512xf32>
    %c17_i32_124 = arith.constant 17 : i32
    %154 = tpu.dynamic_rotate %153 by %c17_i32_124 dim 1 : vector<8x512xf32>, i32 -> vector<8x512xf32>
    %c16_i32_125 = arith.constant 16 : i32
    %155 = tpu.dynamic_rotate %153 by %c16_i32_125 dim 1 : vector<8x512xf32>, i32 -> vector<8x512xf32>
    %c15_i32_126 = arith.constant 15 : i32
    %156 = tpu.dynamic_rotate %153 by %c15_i32_126 dim 1 : vector<8x512xf32>, i32 -> vector<8x512xf32>
    %c1_i32_127 = arith.constant 1 : i32
    %157 = tpu.dynamic_rotate %153 by %c1_i32_127 dim 1 : vector<8x512xf32>, i32 -> vector<8x512xf32>
    %c511_i32_128 = arith.constant 511 : i32
    %158 = tpu.dynamic_rotate %153 by %c511_i32_128 dim 1 : vector<8x512xf32>, i32 -> vector<8x512xf32>
    %c497_i32_129 = arith.constant 497 : i32
    %159 = tpu.dynamic_rotate %153 by %c497_i32_129 dim 1 : vector<8x512xf32>, i32 -> vector<8x512xf32>
    %c496_i32_130 = arith.constant 496 : i32
    %160 = tpu.dynamic_rotate %153 by %c496_i32_130 dim 1 : vector<8x512xf32>, i32 -> vector<8x512xf32>
    %c495_i32_131 = arith.constant 495 : i32
    %161 = tpu.dynamic_rotate %153 by %c495_i32_131 dim 1 : vector<8x512xf32>, i32 -> vector<8x512xf32>
    %162 = tpu.concatenate %154, %155, %156, %157, %153, %158, %159, %160, %161 in 0 : vector<8x512xf32>, vector<8x512xf32>, vector<8x512xf32>, vector<8x512xf32>, vector<8x512xf32>, vector<8x512xf32>, vector<8x512xf32>, vector<8x512xf32>, vector<8x512xf32> -> vector<72x512xf32>
    %c0_132 = arith.constant 0 : index
    %c0_133 = arith.constant 0 : index
    %163 = vector.load %arg5[%c0_132, %c0_133] : memref<72x512xf32, #tpu.memory_space<vmem>>, vector<72x512xf32>
    %164 = arith.mulf %162, %163 : vector<72x512xf32>
    %c11 = arith.constant 11 : index
    %c0_134 = arith.constant 0 : index
    %c0_135 = arith.constant 0 : index
    %165 = vector.load %arg3[%c11, %c0_134, %c0_135] : memref<12x8x72xf32, #tpu.memory_space<vmem>>, vector<1x8x72xf32>
    %166 = vector.shape_cast %165 : vector<1x8x72xf32> to vector<8x72xf32>
    %cst_136 = arith.constant dense<0.000000e+00> : vector<8x512xf32>
    %167 = tpu.matmul %166, %164, %cst_136 {dimension_numbers = #tpu.dot_dimension_numbers<[1], [0], [0], [1], [0, 0, 1, 1], [], []>} : vector<8x72xf32>, vector<72x512xf32>, vector<8x512xf32> -> vector<8x512xf32>
    %c11_137 = arith.constant 11 : index
    %c0_138 = arith.constant 0 : index
    %c0_139 = arith.constant 0 : index
    %168 = vector.load %arg4[%c11_137, %c0_138, %c0_139] : memref<13x8x1xf32, #tpu.memory_space<vmem>>, vector<1x8x1xf32>
    %169 = vector.shape_cast %168 : vector<1x8x1xf32> to vector<8x1xf32>
    %170 = vector.broadcast %169 : vector<8x1xf32> to vector<8x512xf32>
    %171 = arith.addf %167, %170 : vector<8x512xf32>
    %c1_140 = arith.constant 1 : index
    %172 = memref.load %arg2[%c1_140] : memref<4xf32, #tpu.memory_space<smem>>
    %cst_141 = arith.constant 1.000000e+00 : f32
    %173 = arith.subf %cst_141, %172 : f32
    %174 = vector.broadcast %173 : f32 to vector<8x512xf32>
    %175 = arith.mulf %174, %171 : vector<8x512xf32>
    %c1_142 = arith.constant 1 : index
    %c0_143 = arith.constant 0 : index
    %c0_144 = arith.constant 0 : index
    %176 = vector.load %arg7[%c1_142, %c0_143, %c0_144] : memref<3x8x512xf32, #tpu.memory_space<vmem>>, vector<1x8x512xf32>
    %177 = vector.shape_cast %176 : vector<1x8x512xf32> to vector<8x512xf32>
    %178 = vector.broadcast %172 : f32 to vector<8x512xf32>
    %179 = arith.mulf %178, %177 : vector<8x512xf32>
    %180 = arith.addf %175, %179 : vector<8x512xf32>
    %c17_i32_145 = arith.constant 17 : i32
    %181 = tpu.dynamic_rotate %180 by %c17_i32_145 dim 1 : vector<8x512xf32>, i32 -> vector<8x512xf32>
    %c16_i32_146 = arith.constant 16 : i32
    %182 = tpu.dynamic_rotate %180 by %c16_i32_146 dim 1 : vector<8x512xf32>, i32 -> vector<8x512xf32>
    %c15_i32_147 = arith.constant 15 : i32
    %183 = tpu.dynamic_rotate %180 by %c15_i32_147 dim 1 : vector<8x512xf32>, i32 -> vector<8x512xf32>
    %c1_i32_148 = arith.constant 1 : i32
    %184 = tpu.dynamic_rotate %180 by %c1_i32_148 dim 1 : vector<8x512xf32>, i32 -> vector<8x512xf32>
    %c511_i32_149 = arith.constant 511 : i32
    %185 = tpu.dynamic_rotate %180 by %c511_i32_149 dim 1 : vector<8x512xf32>, i32 -> vector<8x512xf32>
    %c497_i32_150 = arith.constant 497 : i32
    %186 = tpu.dynamic_rotate %180 by %c497_i32_150 dim 1 : vector<8x512xf32>, i32 -> vector<8x512xf32>
    %c496_i32_151 = arith.constant 496 : i32
    %187 = tpu.dynamic_rotate %180 by %c496_i32_151 dim 1 : vector<8x512xf32>, i32 -> vector<8x512xf32>
    %c495_i32_152 = arith.constant 495 : i32
    %188 = tpu.dynamic_rotate %180 by %c495_i32_152 dim 1 : vector<8x512xf32>, i32 -> vector<8x512xf32>
    %189 = tpu.concatenate %181, %182, %183, %184, %180, %185, %186, %187, %188 in 0 : vector<8x512xf32>, vector<8x512xf32>, vector<8x512xf32>, vector<8x512xf32>, vector<8x512xf32>, vector<8x512xf32>, vector<8x512xf32>, vector<8x512xf32>, vector<8x512xf32> -> vector<72x512xf32>
    %c0_153 = arith.constant 0 : index
    %c0_154 = arith.constant 0 : index
    %190 = vector.load %arg5[%c0_153, %c0_154] : memref<72x512xf32, #tpu.memory_space<vmem>>, vector<72x512xf32>
    %191 = arith.mulf %189, %190 : vector<72x512xf32>
    %c8 = arith.constant 8 : index
    %c0_155 = arith.constant 0 : index
    %c0_156 = arith.constant 0 : index
    %192 = vector.load %arg3[%c8, %c0_155, %c0_156] : memref<12x8x72xf32, #tpu.memory_space<vmem>>, vector<1x8x72xf32>
    %193 = vector.shape_cast %192 : vector<1x8x72xf32> to vector<8x72xf32>
    %cst_157 = arith.constant dense<0.000000e+00> : vector<8x512xf32>
    %194 = tpu.matmul %193, %191, %cst_157 {dimension_numbers = #tpu.dot_dimension_numbers<[1], [0], [0], [1], [0, 0, 1, 1], [], []>} : vector<8x72xf32>, vector<72x512xf32>, vector<8x512xf32> -> vector<8x512xf32>
    %c8_158 = arith.constant 8 : index
    %c0_159 = arith.constant 0 : index
    %c0_160 = arith.constant 0 : index
    %195 = vector.load %arg4[%c8_158, %c0_159, %c0_160] : memref<13x8x1xf32, #tpu.memory_space<vmem>>, vector<1x8x1xf32>
    %196 = vector.shape_cast %195 : vector<1x8x1xf32> to vector<8x1xf32>
    %197 = vector.broadcast %196 : vector<8x1xf32> to vector<8x512xf32>
    %198 = arith.addf %194, %197 : vector<8x512xf32>
    %cst_161 = arith.constant 0.000000e+00 : f32
    %199 = vector.broadcast %cst_161 : f32 to vector<8x512xf32>
    %200 = arith.maximumf %198, %199 : vector<8x512xf32>
    %c17_i32_162 = arith.constant 17 : i32
    %201 = tpu.dynamic_rotate %200 by %c17_i32_162 dim 1 : vector<8x512xf32>, i32 -> vector<8x512xf32>
    %c16_i32_163 = arith.constant 16 : i32
    %202 = tpu.dynamic_rotate %200 by %c16_i32_163 dim 1 : vector<8x512xf32>, i32 -> vector<8x512xf32>
    %c15_i32_164 = arith.constant 15 : i32
    %203 = tpu.dynamic_rotate %200 by %c15_i32_164 dim 1 : vector<8x512xf32>, i32 -> vector<8x512xf32>
    %c1_i32_165 = arith.constant 1 : i32
    %204 = tpu.dynamic_rotate %200 by %c1_i32_165 dim 1 : vector<8x512xf32>, i32 -> vector<8x512xf32>
    %c511_i32_166 = arith.constant 511 : i32
    %205 = tpu.dynamic_rotate %200 by %c511_i32_166 dim 1 : vector<8x512xf32>, i32 -> vector<8x512xf32>
    %c497_i32_167 = arith.constant 497 : i32
    %206 = tpu.dynamic_rotate %200 by %c497_i32_167 dim 1 : vector<8x512xf32>, i32 -> vector<8x512xf32>
    %c496_i32_168 = arith.constant 496 : i32
    %207 = tpu.dynamic_rotate %200 by %c496_i32_168 dim 1 : vector<8x512xf32>, i32 -> vector<8x512xf32>
    %c495_i32_169 = arith.constant 495 : i32
    %208 = tpu.dynamic_rotate %200 by %c495_i32_169 dim 1 : vector<8x512xf32>, i32 -> vector<8x512xf32>
    %209 = tpu.concatenate %201, %202, %203, %204, %200, %205, %206, %207, %208 in 0 : vector<8x512xf32>, vector<8x512xf32>, vector<8x512xf32>, vector<8x512xf32>, vector<8x512xf32>, vector<8x512xf32>, vector<8x512xf32>, vector<8x512xf32>, vector<8x512xf32> -> vector<72x512xf32>
    %c0_170 = arith.constant 0 : index
    %c0_171 = arith.constant 0 : index
    %210 = vector.load %arg5[%c0_170, %c0_171] : memref<72x512xf32, #tpu.memory_space<vmem>>, vector<72x512xf32>
    %211 = arith.mulf %209, %210 : vector<72x512xf32>
    %c9 = arith.constant 9 : index
    %c0_172 = arith.constant 0 : index
    %c0_173 = arith.constant 0 : index
    %212 = vector.load %arg3[%c9, %c0_172, %c0_173] : memref<12x8x72xf32, #tpu.memory_space<vmem>>, vector<1x8x72xf32>
    %213 = vector.shape_cast %212 : vector<1x8x72xf32> to vector<8x72xf32>
    %cst_174 = arith.constant dense<0.000000e+00> : vector<8x512xf32>
    %214 = tpu.matmul %213, %211, %cst_174 {dimension_numbers = #tpu.dot_dimension_numbers<[1], [0], [0], [1], [0, 0, 1, 1], [], []>} : vector<8x72xf32>, vector<72x512xf32>, vector<8x512xf32> -> vector<8x512xf32>
    %c9_175 = arith.constant 9 : index
    %c0_176 = arith.constant 0 : index
    %c0_177 = arith.constant 0 : index
    %215 = vector.load %arg4[%c9_175, %c0_176, %c0_177] : memref<13x8x1xf32, #tpu.memory_space<vmem>>, vector<1x8x1xf32>
    %216 = vector.shape_cast %215 : vector<1x8x1xf32> to vector<8x1xf32>
    %217 = vector.broadcast %216 : vector<8x1xf32> to vector<8x512xf32>
    %218 = arith.addf %214, %217 : vector<8x512xf32>
    %c0_178 = arith.constant 0 : index
    %219 = memref.load %arg2[%c0_178] : memref<4xf32, #tpu.memory_space<smem>>
    %cst_179 = arith.constant 1.000000e+00 : f32
    %220 = arith.subf %cst_179, %219 : f32
    %221 = vector.broadcast %220 : f32 to vector<8x512xf32>
    %222 = arith.mulf %221, %218 : vector<8x512xf32>
    %c0_180 = arith.constant 0 : index
    %c0_181 = arith.constant 0 : index
    %c0_182 = arith.constant 0 : index
    %223 = vector.load %arg7[%c0_180, %c0_181, %c0_182] : memref<3x8x512xf32, #tpu.memory_space<vmem>>, vector<1x8x512xf32>
    %224 = vector.shape_cast %223 : vector<1x8x512xf32> to vector<8x512xf32>
    %225 = vector.broadcast %219 : f32 to vector<8x512xf32>
    %226 = arith.mulf %225, %224 : vector<8x512xf32>
    %227 = arith.addf %222, %226 : vector<8x512xf32>
    %c17_i32_183 = arith.constant 17 : i32
    %228 = tpu.dynamic_rotate %227 by %c17_i32_183 dim 1 : vector<8x512xf32>, i32 -> vector<8x512xf32>
    %c16_i32_184 = arith.constant 16 : i32
    %229 = tpu.dynamic_rotate %227 by %c16_i32_184 dim 1 : vector<8x512xf32>, i32 -> vector<8x512xf32>
    %c15_i32_185 = arith.constant 15 : i32
    %230 = tpu.dynamic_rotate %227 by %c15_i32_185 dim 1 : vector<8x512xf32>, i32 -> vector<8x512xf32>
    %c1_i32_186 = arith.constant 1 : i32
    %231 = tpu.dynamic_rotate %227 by %c1_i32_186 dim 1 : vector<8x512xf32>, i32 -> vector<8x512xf32>
    %c511_i32_187 = arith.constant 511 : i32
    %232 = tpu.dynamic_rotate %227 by %c511_i32_187 dim 1 : vector<8x512xf32>, i32 -> vector<8x512xf32>
    %c497_i32_188 = arith.constant 497 : i32
    %233 = tpu.dynamic_rotate %227 by %c497_i32_188 dim 1 : vector<8x512xf32>, i32 -> vector<8x512xf32>
    %c496_i32_189 = arith.constant 496 : i32
    %234 = tpu.dynamic_rotate %227 by %c496_i32_189 dim 1 : vector<8x512xf32>, i32 -> vector<8x512xf32>
    %c495_i32_190 = arith.constant 495 : i32
    %235 = tpu.dynamic_rotate %227 by %c495_i32_190 dim 1 : vector<8x512xf32>, i32 -> vector<8x512xf32>
    %236 = tpu.concatenate %228, %229, %230, %231, %227, %232, %233, %234, %235 in 0 : vector<8x512xf32>, vector<8x512xf32>, vector<8x512xf32>, vector<8x512xf32>, vector<8x512xf32>, vector<8x512xf32>, vector<8x512xf32>, vector<8x512xf32>, vector<8x512xf32> -> vector<72x512xf32>
    %c0_191 = arith.constant 0 : index
    %c0_192 = arith.constant 0 : index
    %237 = vector.load %arg5[%c0_191, %c0_192] : memref<72x512xf32, #tpu.memory_space<vmem>>, vector<72x512xf32>
    %238 = arith.mulf %236, %237 : vector<72x512xf32>
    %c6 = arith.constant 6 : index
    %c0_193 = arith.constant 0 : index
    %c0_194 = arith.constant 0 : index
    %239 = vector.load %arg3[%c6, %c0_193, %c0_194] : memref<12x8x72xf32, #tpu.memory_space<vmem>>, vector<1x8x72xf32>
    %240 = vector.shape_cast %239 : vector<1x8x72xf32> to vector<8x72xf32>
    %cst_195 = arith.constant dense<0.000000e+00> : vector<8x512xf32>
    %241 = tpu.matmul %240, %238, %cst_195 {dimension_numbers = #tpu.dot_dimension_numbers<[1], [0], [0], [1], [0, 0, 1, 1], [], []>} : vector<8x72xf32>, vector<72x512xf32>, vector<8x512xf32> -> vector<8x512xf32>
    %c6_196 = arith.constant 6 : index
    %c0_197 = arith.constant 0 : index
    %c0_198 = arith.constant 0 : index
    %242 = vector.load %arg4[%c6_196, %c0_197, %c0_198] : memref<13x8x1xf32, #tpu.memory_space<vmem>>, vector<1x8x1xf32>
    %243 = vector.shape_cast %242 : vector<1x8x1xf32> to vector<8x1xf32>
    %244 = vector.broadcast %243 : vector<8x1xf32> to vector<8x512xf32>
    %245 = arith.addf %241, %244 : vector<8x512xf32>
    %cst_199 = arith.constant 0.000000e+00 : f32
    %246 = vector.broadcast %cst_199 : f32 to vector<8x512xf32>
    %247 = arith.maximumf %245, %246 : vector<8x512xf32>
    %c17_i32_200 = arith.constant 17 : i32
    %248 = tpu.dynamic_rotate %247 by %c17_i32_200 dim 1 : vector<8x512xf32>, i32 -> vector<8x512xf32>
    %c16_i32_201 = arith.constant 16 : i32
    %249 = tpu.dynamic_rotate %247 by %c16_i32_201 dim 1 : vector<8x512xf32>, i32 -> vector<8x512xf32>
    %c15_i32_202 = arith.constant 15 : i32
    %250 = tpu.dynamic_rotate %247 by %c15_i32_202 dim 1 : vector<8x512xf32>, i32 -> vector<8x512xf32>
    %c1_i32_203 = arith.constant 1 : i32
    %251 = tpu.dynamic_rotate %247 by %c1_i32_203 dim 1 : vector<8x512xf32>, i32 -> vector<8x512xf32>
    %c511_i32_204 = arith.constant 511 : i32
    %252 = tpu.dynamic_rotate %247 by %c511_i32_204 dim 1 : vector<8x512xf32>, i32 -> vector<8x512xf32>
    %c497_i32_205 = arith.constant 497 : i32
    %253 = tpu.dynamic_rotate %247 by %c497_i32_205 dim 1 : vector<8x512xf32>, i32 -> vector<8x512xf32>
    %c496_i32_206 = arith.constant 496 : i32
    %254 = tpu.dynamic_rotate %247 by %c496_i32_206 dim 1 : vector<8x512xf32>, i32 -> vector<8x512xf32>
    %c495_i32_207 = arith.constant 495 : i32
    %255 = tpu.dynamic_rotate %247 by %c495_i32_207 dim 1 : vector<8x512xf32>, i32 -> vector<8x512xf32>
    %256 = tpu.concatenate %248, %249, %250, %251, %247, %252, %253, %254, %255 in 0 : vector<8x512xf32>, vector<8x512xf32>, vector<8x512xf32>, vector<8x512xf32>, vector<8x512xf32>, vector<8x512xf32>, vector<8x512xf32>, vector<8x512xf32>, vector<8x512xf32> -> vector<72x512xf32>
    %c0_208 = arith.constant 0 : index
    %c0_209 = arith.constant 0 : index
    %257 = vector.load %arg5[%c0_208, %c0_209] : memref<72x512xf32, #tpu.memory_space<vmem>>, vector<72x512xf32>
    %258 = arith.mulf %256, %257 : vector<72x512xf32>
    %c7 = arith.constant 7 : index
    %c0_210 = arith.constant 0 : index
    %c0_211 = arith.constant 0 : index
    %259 = vector.load %arg3[%c7, %c0_210, %c0_211] : memref<12x8x72xf32, #tpu.memory_space<vmem>>, vector<1x8x72xf32>
    %260 = vector.shape_cast %259 : vector<1x8x72xf32> to vector<8x72xf32>
    %cst_212 = arith.constant dense<0.000000e+00> : vector<8x512xf32>
    %261 = tpu.matmul %260, %258, %cst_212 {dimension_numbers = #tpu.dot_dimension_numbers<[1], [0], [0], [1], [0, 0, 1, 1], [], []>} : vector<8x72xf32>, vector<72x512xf32>, vector<8x512xf32> -> vector<8x512xf32>
    %c7_213 = arith.constant 7 : index
    %c0_214 = arith.constant 0 : index
    %c0_215 = arith.constant 0 : index
    %262 = vector.load %arg4[%c7_213, %c0_214, %c0_215] : memref<13x8x1xf32, #tpu.memory_space<vmem>>, vector<1x8x1xf32>
    %263 = vector.shape_cast %262 : vector<1x8x1xf32> to vector<8x1xf32>
    %264 = vector.broadcast %263 : vector<8x1xf32> to vector<8x512xf32>
    %265 = arith.addf %261, %264 : vector<8x512xf32>
    %c12 = arith.constant 12 : index
    %c0_216 = arith.constant 0 : index
    %c0_217 = arith.constant 0 : index
    %266 = vector.load %arg4[%c12, %c0_216, %c0_217] : memref<13x8x1xf32, #tpu.memory_space<vmem>>, vector<1x8x1xf32>
    %267 = vector.shape_cast %266 : vector<1x8x1xf32> to vector<8x1xf32>
    %268 = vector.broadcast %267 : vector<8x1xf32> to vector<8x512xf32>
    %269 = arith.mulf %265, %268 : vector<8x512xf32>
    %cst_218 = arith.constant dense<0.000000e+00> : vector<512xf32>
    %270 = vector.multi_reduction <add>, %269, %cst_218 [0] : vector<8x512xf32> to vector<512xf32>
    %271 = vector.shape_cast %270 : vector<512xf32> to vector<1x512xf32>
    %c3_219 = arith.constant 3 : index
    %272 = memref.load %arg2[%c3_219] : memref<4xf32, #tpu.memory_space<smem>>
    %273 = vector.broadcast %272 : f32 to vector<1x512xf32>
    %274 = arith.addf %271, %273 : vector<1x512xf32>
    %c0_220 = arith.constant 0 : index
    %c0_221 = arith.constant 0 : index
    %c0_222 = arith.constant 0 : index
    %275 = vector.load %arg6[%c0_220, %c0_221, %c0_222] : memref<1x1x512xf32, #tpu.memory_space<vmem>>, vector<1x1x512xf32>
    %276 = vector.shape_cast %275 : vector<1x1x512xf32> to vector<1x512xf32>
    %277 = vector.shape_cast %274 : vector<1x512xf32> to vector<1x1x512xf32>
    tpu.vector_store %arg6[%c0_220, %c0_221, %c0_222], %277 {strides = array<i32>} : memref<1x1x512xf32, #tpu.memory_space<vmem>>, vector<1x1x512xf32>,
    return
  }
  func.func @transform_0(%arg0: i32) -> (i32, i32, i32) {
    %c0_i32 = arith.constant 0 : i32
    %c0_i32_0 = arith.constant 0 : i32
    %c0_i32_1 = arith.constant 0 : i32
    return %arg0, %c0_i32, %c0_i32_0 : i32, i32, i32
  }
  func.func @transform_1(%arg0: i32) -> i32 {
    %c0_i32 = arith.constant 0 : i32
    %c0_i32_0 = arith.constant 0 : i32
    return %c0_i32 : i32
  }
  func.func @transform_2(%arg0: i32) -> (i32, i32, i32) {
    %c0_i32 = arith.constant 0 : i32
    %c0_i32_0 = arith.constant 0 : i32
    %c0_i32_1 = arith.constant 0 : i32
    %c0_i32_2 = arith.constant 0 : i32
    return %c0_i32, %c0_i32_0, %c0_i32_1 : i32, i32, i32
  }
  func.func @transform_3(%arg0: i32) -> (i32, i32, i32) {
    %c0_i32 = arith.constant 0 : i32
    %c0_i32_0 = arith.constant 0 : i32
    %c0_i32_1 = arith.constant 0 : i32
    %c0_i32_2 = arith.constant 0 : i32
    return %c0_i32, %c0_i32_0, %c0_i32_1 : i32, i32, i32
  }
  func.func @transform_4(%arg0: i32) -> (i32, i32) {
    %c0_i32 = arith.constant 0 : i32
    %c0_i32_0 = arith.constant 0 : i32
    %c0_i32_1 = arith.constant 0 : i32
    return %c0_i32, %c0_i32_0 : i32, i32
  }
  func.func @transform_5(%arg0: i32) -> (i32, i32, i32) {
    %c0_i32 = arith.constant 0 : i32
    %c0_i32_0 = arith.constant 0 : i32
    %c0_i32_1 = arith.constant 0 : i32
    return %arg0, %c0_i32, %c0_i32_0 : i32, i32, i32
  }
}

</mosaic_0001>

<llo_original>
// kernel: diffusion_forward_packed.1
$region0: #{diffusion_forward_packed.1}
  #allocation0 [shape = 'u32[]', space=smem, size = 0x4, offset = 0x4, fixed_abs, tag = 'smem constant byte address 0x4 - core index']
  #allocation1 [shape = 'u32[144,128]{1,0:T(1,128)}', space=vmem, size = 0x12000, scoped, tag = 'internal scratch']
  #allocation2 [shape = 'f32[3,8,512]{2,1,0:T(8,128)}', space=vmem, size = 0xc000, scoped, tag = 'scratch operand']
  %s0 = inlined_call_operand.vmem [shape: f32[1,8,512], index: 0, kind: input, shape index: {}]
  %s1 = inlined_call_operand.vmem [shape: f32[4], index: 1, kind: input, shape index: {}]
  %s2 = inlined_call_operand.hbm [shape: f32[12,8,72], index: 2, kind: input, shape index: {}]
  %s3 = inlined_call_operand.vmem [shape: f32[13,8,1], index: 3, kind: input, shape index: {}]
  %s4 = inlined_call_operand.vmem [shape: f32[72,512], index: 4, kind: input, shape index: {}]
  %s5 = inlined_call_operand.vmem [shape: f32[1,1,512], index: 5, kind: output, shape index: {}]
  %s6 = sld [smem:[#allocation0]]
  $region38: #{diffusion_forward_packed.1} parent=0
    _
  %s8 = ssub.s32 1, %s6
  %s9 = scalar_select 0, %s8, %s6
  $region1: #{diffusion_forward_packed.1} parent=0
    #allocation3 [shape = 'u8[512]{0}', space=smem, size = 0x200, scoped, tag = 'input window, operand 1, single buffered']
    #allocation4 [shape = 's32[1]{0}', space=sflag, size = 0x4, scoped, tag = 'scoped memory for diffusion_forward_packed.1']
    #allocation5 [shape = 's32[1]{0}', space=sflag, size = 0x4, scoped, tag = 'scoped memory for diffusion_forward_packed.1']
    #allocation6 [shape = 'u8[49152]{0}', space=vmem, size = 0xc000, scoped, tag = 'input window, operand 2, single buffered']
    %10 = vsyncpa [#allocation5], 0
    %11 = vsyncpa [#allocation4], 0
    // Predicated region
    $region2: #{diffusion_forward_packed.1} parent=1 // pred_check
      _
    $region3: #{diffusion_forward_packed.1} parent=1 // pred_check_branch
      %13 = sbr.rel (0) target = $region5
    $region4: #{diffusion_forward_packed.1} parent=1 // pred_region
      _
    $region5: #{diffusion_forward_packed.1} parent=1 // pred_fallthru
      _
    // Predicated region
    $region6: #{diffusion_forward_packed.1} parent=1 // pred_check
      _
    $region7: #{diffusion_forward_packed.1} parent=1 // pred_check_branch
      %15 = sbr.rel (0) target = $region9
    $region8: #{diffusion_forward_packed.1} parent=1 // pred_region
      %s17 = ssub.s32 16, 16
      %18 = vsyncadd [#allocation5], %s17
      %s20 = sshll.u32 %s1, 4
      %s21 = int_to_ptr.vmem [resolvable:$true] %s20
      %23 = dma.vmem_to_smem %s21, 16, [#allocation3], [#allocation5]
    $region9: #{diffusion_forward_packed.1} parent=1 // pred_fallthru
      _
    // Predicated region
    $region10: #{diffusion_forward_packed.1} parent=1 // pred_check
      _
    $region11: #{diffusion_forward_packed.1} parent=1 // pred_check_branch
      %25 = sbr.rel (0) target = $region13
    $region12: #{diffusion_forward_packed.1} parent=1 // pred_region
      %s27 = ssub.s32 1536, 1536
      %28 = vsyncadd [#allocation4], %s27
      %s29 = sshll.u32 [#allocation6], 4
      %s30 = int_to_ptr.vmem [resolvable:$true] %s29
      %35 = dma.hbm_to_vmem [thread:$0]  %s2, 1536, %s30, [#allocation4], 128, 128, 8
    $region13: #{diffusion_forward_packed.1} parent=1 // pred_fallthru
      _
    // Predicated region
    $region14: #{diffusion_forward_packed.1} parent=1 // pred_check
      _
    $region15: #{diffusion_forward_packed.1} parent=1 // pred_check_branch
      %37 = sbr.rel (0) target = $region17
    $region16: #{diffusion_forward_packed.1} parent=1 // pred_region
      _
    $region17: #{diffusion_forward_packed.1} parent=1 // pred_fallthru
      _
    // Predicated region
    $region18: #{diffusion_forward_packed.1} parent=1 // pred_check
      _
    $region19: #{diffusion_forward_packed.1} parent=1 // pred_check_branch
      %39 = sbr.rel (0) target = $region21
    $region20: #{diffusion_forward_packed.1} parent=1 // pred_region
      _
    $region21: #{diffusion_forward_packed.1} parent=1 // pred_fallthru
      _
    // Predicated region
    $region22: #{diffusion_forward_packed.1} parent=1 // pred_check
      _
    $region23: #{diffusion_forward_packed.1} parent=1 // pred_check_branch
      %41 = sbr.rel (0) target = $region25
    $region24: #{diffusion_forward_packed.1} parent=1 // pred_region
      %42 = dma.done [#allocation5], 16
    $region25: #{diffusion_forward_packed.1} parent=1 // pred_fallthru
      _
    // Predicated region
    $region26: #{diffusion_forward_packed.1} parent=1 // pred_check
      _
    $region27: #{diffusion_forward_packed.1} parent=1 // pred_check_branch
      %44 = sbr.rel (0) target = $region29
    $region28: #{diffusion_forward_packed.1} parent=1 // pred_region
      %45 = dma.done [#allocation4], 1536
    $region29: #{diffusion_forward_packed.1} parent=1 // pred_fallthru
      _
    %46 = sfence
    %v47 = vld [vmem:[%s0] sm:$0xff]
    %v48 = vld [vmem:[%s0 + $0x8] sm:$0xff]
    %v49 = vld [vmem:[%s0 + $0x10] sm:$0xff]
    %v50 = vld [vmem:[%s0 + $0x18] sm:$0xff]
    %51 = vst [vmem:[#allocation2] sm:$0xff] %v47
    %52 = vst [vmem:[#allocation2 + $0x8] sm:$0xff] %v48
    %53 = vst [vmem:[#allocation2 + $0x10] sm:$0xff] %v49
    %54 = vst [vmem:[#allocation2 + $0x18] sm:$0xff] %v50
    %55 = vrot.lane.b32.xlu0 %v47, 17
    %v56 = vpop.permute.xlu0 %55
    %57 = vrot.lane.b32.xlu0 %v48, 17
    %v58 = vpop.permute.xlu0 %57
    %59 = vrot.lane.b32.xlu0 %v49, 17
    %v60 = vpop.permute.xlu0 %59
    %61 = vrot.lane.b32.xlu0 %v50, 17
    %v62 = vpop.permute.xlu0 %61
    %v63 = vlaneseq
    %v64 = vand.u32 %v63, 127
    %vm65 = vcmp.lt.s32.totalorder %v64, 17
    %v66 = vsel %vm65, %v60, %v62
    %v67 = vsel %vm65, %v58, %v60
    %v68 = vsel %vm65, %v56, %v58
    %v69 = vsel %vm65, %v62, %v56
    %70 = vrot.lane.b32.xlu0 %v47, 16
    %v71 = vpop.permute.xlu0 %70
    %72 = vrot.lane.b32.xlu0 %v48, 16
    %v73 = vpop.permute.xlu0 %72
    %74 = vrot.lane.b32.xlu0 %v49, 16
    %v75 = vpop.permute.xlu0 %74
    %76 = vrot.lane.b32.xlu0 %v50, 16
    %v77 = vpop.permute.xlu0 %76
    %vm78 = vcmp.lt.s32.totalorder %v64, 16
    %v79 = vsel %vm78, %v75, %v77
    %v80 = vsel %vm78, %v73, %v75
    %v81 = vsel %vm78, %v71, %v73
    %v82 = vsel %vm78, %v77, %v71
    %83 = vrot.lane.b32.xlu0 %v47, 15
    %v84 = vpop.permute.xlu0 %83
    %85 = vrot.lane.b32.xlu0 %v48, 15
    %v86 = vpop.permute.xlu0 %85
    %87 = vrot.lane.b32.xlu0 %v49, 15
    %v88 = vpop.permute.xlu0 %87
    %89 = vrot.lane.b32.xlu0 %v50, 15
    %v90 = vpop.permute.xlu0 %89
    %vm91 = vcmp.lt.s32.totalorder %v64, 15
    %v92 = vsel %vm91, %v88, %v90
    %v93 = vsel %vm91, %v86, %v88
    %v94 = vsel %vm91, %v84, %v86
    %v95 = vsel %vm91, %v90, %v84
    %96 = vrot.lane.b32.xlu0 %v47, 1
    %v97 = vpop.permute.xlu0 %96
    %98 = vrot.lane.b32.xlu0 %v48, 1
    %v99 = vpop.permute.xlu0 %98
    %100 = vrot.lane.b32.xlu0 %v49, 1
    %v101 = vpop.permute.xlu0 %100
    %102 = vrot.lane.b32.xlu0 %v50, 1
    %v103 = vpop.permute.xlu0 %102
    %vm104 = vcmp.lt.s32.totalorder %v64, 1
    %v105 = vsel %vm104, %v101, %v103
    %v106 = vsel %vm104, %v99, %v101
    %v107 = vsel %vm104, %v97, %v99
    %v108 = vsel %vm104, %v103, %v97
    %109 = vrot.lane.b32.xlu0 %v47, 127
    %v110 = vpop.permute.xlu0 %109
    %111 = vrot.lane.b32.xlu0 %v48, 127
    %v112 = vpop.permute.xlu0 %111
    %113 = vrot.lane.b32.xlu0 %v49, 127
    %v114 = vpop.permute.xlu0 %113
    %115 = vrot.lane.b32.xlu0 %v50, 127
    %v116 = vpop.permute.xlu0 %115
    %vm117 = vcmp.lt.s32.totalorder %v64, 127
    %v118 = vsel %vm117, %v114, %v116
    %v119 = vsel %vm117, %v112, %v114
    %v120 = vsel %vm117, %v110, %v112
    %v121 = vsel %vm117, %v116, %v110
    %122 = vrot.lane.b32.xlu0 %v47, 113
    %v123 = vpop.permute.xlu0 %122
    %124 = vrot.lane.b32.xlu0 %v48, 113
    %v125 = vpop.permute.xlu0 %124
    %126 = vrot.lane.b32.xlu0 %v49, 113
    %v127 = vpop.permute.xlu0 %126
    %128 = vrot.lane.b32.xlu0 %v50, 113
    %v129 = vpop.permute.xlu0 %128
    %vm130 = vcmp.lt.s32.totalorder %v64, 113
    %v131 = vsel %vm130, %v127, %v129
    %v132 = vsel %vm130, %v125, %v127
    %v133 = vsel %vm130, %v123, %v125
    %v134 = vsel %vm130, %v129, %v123
    %135 = vrot.lane.b32.xlu0 %v47, 112
    %v136 = vpop.permute.xlu0 %135
    %137 = vrot.lane.b32.xlu0 %v48, 112
    %v138 = vpop.permute.xlu0 %137
    %139 = vrot.lane.b32.xlu0 %v49, 112
    %v140 = vpop.permute.xlu0 %139
    %141 = vrot.lane.b32.xlu0 %v50, 112
    %v142 = vpop.permute.xlu0 %141
    %vm143 = vcmp.lt.s32.totalorder %v64, 112
    %v144 = vsel %vm143, %v140, %v142
    %v145 = vsel %vm143, %v138, %v140
    %v146 = vsel %vm143, %v136, %v138
    %v147 = vsel %vm143, %v142, %v136
    %148 = vrot.lane.b32.xlu0 %v47, 111
    %v149 = vpop.permute.xlu0 %148
    %150 = vrot.lane.b32.xlu0 %v48, 111
    %v151 = vpop.permute.xlu0 %150
    %152 = vrot.lane.b32.xlu0 %v49, 111
    %v153 = vpop.permute.xlu0 %152
    %154 = vrot.lane.b32.xlu0 %v50, 111
    %v155 = vpop.permute.xlu0 %154
    %vm156 = vcmp.lt.s32.totalorder %v64, 111
    %v157 = vsel %vm156, %v153, %v155
    %v158 = vsel %vm156, %v151, %v153
    %v159 = vsel %vm156, %v149, %v151
    %v160 = vsel %vm156, %v155, %v149
    %v161 = vld [vmem:[%s4] sm:$0xff]
    %v162 = vld [vmem:[%s4 + $0x8] sm:$0xff]
    %v163 = vld [vmem:[%s4 + $0x10] sm:$0xff]
    %v164 = vld [vmem:[%s4 + $0x18] sm:$0xff]
    %v165 = vld [vmem:[%s4 + $0x20] sm:$0xff]
    %v166 = vld [vmem:[%s4 + $0x28] sm:$0xff]
    %v167 = vld [vmem:[%s4 + $0x30] sm:$0xff]
    %v168 = vld [vmem:[%s4 + $0x38] sm:$0xff]
    %v169 = vld [vmem:[%s4 + $0x40] sm:$0xff]
    %v170 = vld [vmem:[%s4 + $0x48] sm:$0xff]
    %v171 = vld [vmem:[%s4 + $0x50] sm:$0xff]
    %v172 = vld [vmem:[%s4 + $0x58] sm:$0xff]
    %v173 = vld [vmem:[%s4 + $0x60] sm:$0xff]
    %v174 = vld [vmem:[%s4 + $0x68] sm:$0xff]
    %v175 = vld [vmem:[%s4 + $0x70] sm:$0xff]
    %v176 = vld [vmem:[%s4 + $0x78] sm:$0xff]
    %v177 = vld [vmem:[%s4 + $0x80] sm:$0xff]
    %v178 = vld [vmem:[%s4 + $0x88] sm:$0xff]
    %v179 = vld [vmem:[%s4 + $0x90] sm:$0xff]
    %v180 = vld [vmem:[%s4 + $0x98] sm:$0xff]
    %v181 = vld [vmem:[%s4 + $0xa0] sm:$0xff]
    %v182 = vld [vmem:[%s4 + $0xa8] sm:$0xff]
    %v183 = vld [vmem:[%s4 + $0xb0] sm:$0xff]
    %v184 = vld [vmem:[%s4 + $0xb8] sm:$0xff]
    %v185 = vld [vmem:[%s4 + $0xc0] sm:$0xff]
    %v186 = vld [vmem:[%s4 + $0xc8] sm:$0xff]
    %v187 = vld [vmem:[%s4 + $0xd0] sm:$0xff]
    %v188 = vld [vmem:[%s4 + $0xd8] sm:$0xff]
    %v189 = vld [vmem:[%s4 + $0xe0] sm:$0xff]
    %v190 = vld [vmem:[%s4 + $0xe8] sm:$0xff]
    %v191 = vld [vmem:[%s4 + $0xf0] sm:$0xff]
    %v192 = vld [vmem:[%s4 + $0xf8] sm:$0xff]
    %v193 = vld [vmem:[%s4 + $0x100] sm:$0xff]
    %v194 = vld [vmem:[%s4 + $0x108] sm:$0xff]
    %v195 = vld [vmem:[%s4 + $0x110] sm:$0xff]
    %v196 = vld [vmem:[%s4 + $0x118] sm:$0xff]
    %v197 = vmul.f32 %v69, %v161
    %v198 = vmul.f32 %v68, %v162
    %v199 = vmul.f32 %v67, %v163
    %v200 = vmul.f32 %v66, %v164
    %v201 = vmul.f32 %v82, %v165
    %v202 = vmul.f32 %v81, %v166
    %v203 = vmul.f32 %v80, %v167
    %v204 = vmul.f32 %v79, %v168
    %v205 = vmul.f32 %v95, %v169
    %v206 = vmul.f32 %v94, %v170
    %v207 = vmul.f32 %v93, %v171
    %v208 = vmul.f32 %v92, %v172
    %v209 = vmul.f32 %v108, %v173
    %v210 = vmul.f32 %v107, %v174
    %v211 = vmul.f32 %v106, %v175
    %v212 = vmul.f32 %v105, %v176
    %v213 = vmul.f32 %v47, %v177
    %v214 = vmul.f32 %v48, %v178
    %v215 = vmul.f32 %v49, %v179
    %v216 = vmul.f32 %v50, %v180
    %v217 = vmul.f32 %v120, %v181
    %v218 = vmul.f32 %v119, %v182
    %v219 = vmul.f32 %v118, %v183
    %v220 = vmul.f32 %v121, %v184
    %v221 = vmul.f32 %v133, %v185
    %v222 = vmul.f32 %v132, %v186
    %v223 = vmul.f32 %v131, %v187
    %v224 = vmul.f32 %v134, %v188
    %v225 = vmul.f32 %v146, %v189
    %v226 = vmul.f32 %v145, %v190
    %v227 = vmul.f32 %v144, %v191
    %v228 = vmul.f32 %v147, %v192
    %v229 = vmul.f32 %v159, %v193
    %v230 = vmul.f32 %v158, %v194
    %v231 = vmul.f32 %v157, %v195
    %v232 = vmul.f32 %v160, %v196
    %v233 = vld [vmem:[#allocation6] sm:$0xff]
    %v234 = vld [vmem:[%s3] sm:$0xff]
    %236 = vset.pattern.permute.xlu0 0
    %237 = vperm.xlu0 %236, %v234
    %v238 = vpop.permute.xlu0 %237
    %vm240 = vcmask 588800
    %v242 = vsel %vm240, %v233, 0
    %244 = vmatprep.subr.mxu0 %v198
    %245 = vmatpush1.msra.mxu0 %v197
    %246 = vmatprep.subr.mxu0 %v202
    %247 = vmatpush1.msra.mxu0 %v201
    %248 = vmatprep.subr.mxu0 %v206
    %249 = vmatpush1.msra.mxu0 %v205
    %250 = vmatprep.subr.mxu0 %v210
    %251 = vmatpush1.msra.mxu0 %v209
    %252 = vmatprep.subr.mxu0 %v214
    %253 = vmatpush1.msra.mxu0 %v213
    %254 = vmatprep.subr.mxu0 %v218
    %255 = vmatpush1.msra.mxu0 %v217
    %256 = vmatprep.subr.mxu0 %v222
    %257 = vmatpush1.msra.mxu0 %v221
    %258 = vmatprep.subr.mxu0 %v226
    %259 = vmatpush1.msra.mxu0 %v225
    %260 = vmatprep.subr.mxu0 %v230
    %261 = vmatpush1.msra.mxu0 %v229
    %262 = vmatprep.subr.mxu0 0.0
    %263 = vmatpush1.msra.mxu0 0.0
    %264 = vmatprep.subr.mxu0 0.0
    %265 = vmatpush1.msra.mxu0 0.0
    %266 = vmatprep.subr.mxu0 0.0
    %267 = vmatpush1.msra.mxu0 0.0
    %268 = vmatprep.subr.mxu0 0.0
    %269 = vmatpush1.msra.mxu0 0.0
    %270 = vmatprep.subr.mxu0 0.0
    %271 = vmatpush1.msra.mxu0 0.0
    %272 = vmatprep.subr.mxu0 0.0
    %273 = vmatpush1.msra.mxu0 0.0
    %274 = vmatprep.subr.mxu0 0.0
    %275 = vmatpush1.msra.mxu0 0.0
    %276 = vmatprep.subr.mxu0 0.0
    %277 = vmatpush1.msra.mxu0 0.0
    %278 = vmatprep.subr.mxu0 0.0
    %279 = vmatpush1.msra.mxu0 0.0
    %280 = vmatprep.subr.mxu0 0.0
    %281 = vmatpush1.msra.mxu0 0.0
    %282 = vmatprep.subr.mxu0 0.0
    %283 = vmatpush1.msra.mxu0 0.0
    %284 = vmatprep.subr.mxu0 0.0
    %285 = vmatpush1.msra.mxu0 0.0
    %286 = vmatprep.subr.mxu0 0.0
    %287 = vmatpush1.msra.mxu0 0.0
    %288 = vmatprep.subr.mxu0 0.0
    %289 = vmatpush1.msra.mxu0 0.0
    %290 = vmatprep.subr.mxu0 0.0
    %291 = vmatpush1.msra.mxu0 0.0
    %292 = vmatprep.subr.mxu0 0.0
    %293 = vmatpush1.msra.mxu0 0.0
    %294 = vmatprep.subr.mxu0 0.0
    %295 = vmatpush1.msra.mxu0 0.0
    %296 = vmatprep.subr.mxu0 0.0
    %297 = vmatpush1.msra.mxu0 0.0
    %298 = vmatprep.subr.mxu0 0.0
    %299 = vmatpush1.msra.mxu0 0.0
    %300 = vmatprep.subr.mxu0 0.0
    %301 = vmatpush1.msra.mxu0 0.0
    %302 = vmatprep.subr.mxu0 0.0
    %303 = vmatpush1.msra.mxu0 0.0
    %304 = vmatprep.subr.mxu0 0.0
    %305 = vmatpush1.msra.mxu0 0.0
    %306 = vmatprep.subr.mxu0 0.0
    %307 = vmatpush1.msra.mxu0 0.0
    %308 = vmatprep.mubr.f32.mxu0 0.0
    %309 = vmatmul.mubr.f32.gmra.mrb[0].mxu0 %v242
    %v310 = vpop.f32.mrb[0].mxu0
    %v311 = vadd.f32 %v238, %v310
    %v312 = vpop.f32.mrb[0].mxu0
    %v313 = vadd.f32 %v238, %v312
    %314 = vdwg.mxu0
    %315 = vmatprep.subr.mxu0 %v200
    %316 = vmatpush1.msra.mxu0 %v199
    %317 = vmatprep.subr.mxu0 %v204
    %318 = vmatpush1.msra.mxu0 %v203
    %319 = vmatprep.subr.mxu0 %v208
    %320 = vmatpush1.msra.mxu0 %v207
    %321 = vmatprep.subr.mxu0 %v212
    %322 = vmatpush1.msra.mxu0 %v211
    %323 = vmatprep.subr.mxu0 %v216
    %324 = vmatpush1.msra.mxu0 %v215
    %325 = vmatprep.subr.mxu0 %v220
    %326 = vmatpush1.msra.mxu0 %v219
    %327 = vmatprep.subr.mxu0 %v224
    %328 = vmatpush1.msra.mxu0 %v223
    %329 = vmatprep.subr.mxu0 %v228
    %330 = vmatpush1.msra.mxu0 %v227
    %331 = vmatprep.subr.mxu0 %v232
    %332 = vmatpush1.msra.mxu0 %v231
    %333 = vmatprep.subr.mxu0 0.0
    %334 = vmatpush1.msra.mxu0 0.0
    %335 = vmatprep.subr.mxu0 0.0
    %336 = vmatpush1.msra.mxu0 0.0
    %337 = vmatprep.subr.mxu0 0.0
    %338 = vmatpush1.msra.mxu0 0.0
    %339 = vmatprep.subr.mxu0 0.0
    %340 = vmatpush1.msra.mxu0 0.0
    %341 = vmatprep.subr.mxu0 0.0
    %342 = vmatpush1.msra.mxu0 0.0
    %343 = vmatprep.subr.mxu0 0.0
    %344 = vmatpush1.msra.mxu0 0.0
    %345 = vmatprep.subr.mxu0 0.0
    %346 = vmatpush1.msra.mxu0 0.0
    %347 = vmatprep.subr.mxu0 0.0
    %348 = vmatpush1.msra.mxu0 0.0
    %349 = vmatprep.subr.mxu0 0.0
    %350 = vmatpush1.msra.mxu0 0.0
    %351 = vmatprep.subr.mxu0 0.0
    %352 = vmatpush1.msra.mxu0 0.0
    %353 = vmatprep.subr.mxu0 0.0
    %354 = vmatpush1.msra.mxu0 0.0
    %355 = vmatprep.subr.mxu0 0.0
    %356 = vmatpush1.msra.mxu0 0.0
    %357 = vmatprep.subr.mxu0 0.0
    %358 = vmatpush1.msra.mxu0 0.0
    %359 = vmatprep.subr.mxu0 0.0
    %360 = vmatpush1.msra.mxu0 0.0
    %361 = vmatprep.subr.mxu0 0.0
    %362 = vmatpush1.msra.mxu0 0.0
    %363 = vmatprep.subr.mxu0 0.0
    %364 = vmatpush1.msra.mxu0 0.0
    %365 = vmatprep.subr.mxu0 0.0
    %366 = vmatpush1.msra.mxu0 0.0
    %367 = vmatprep.subr.mxu0 0.0
    %368 = vmatpush1.msra.mxu0 0.0
    %369 = vmatprep.subr.mxu0 0.0
    %370 = vmatpush1.msra.mxu0 0.0
    %371 = vmatprep.subr.mxu0 0.0
    %372 = vmatpush1.msra.mxu0 0.0
    %373 = vmatprep.subr.mxu0 0.0
    %374 = vmatpush1.msra.mxu0 0.0
    %375 = vmatprep.subr.mxu0 0.0
    %376 = vmatpush1.msra.mxu0 0.0
    %377 = vmatprep.subr.mxu0 0.0
    %378 = vmatpush1.msra.mxu0 0.0
    %379 = vmatprep.mubr.f32.mxu0 0.0
    %380 = vmatmul.mubr.f32.gmra.mrb[0].mxu0 %v242
    %v381 = vpop.f32.mrb[0].mxu0
    %v382 = vadd.f32 %v238, %v381
    %v383 = vpop.f32.mrb[0].mxu0
    %v384 = vadd.f32 %v238, %v383
    %385 = vdwg.mxu0
    %v386 = vmax.f32 %v311, 0.0
    %v387 = vmax.f32 %v313, 0.0
    %v388 = vmax.f32 %v382, 0.0
    %v389 = vmax.f32 %v384, 0.0
    %390 = vrot.lane.b32.xlu0 %v386, 17
    %v391 = vpop.permute.xlu0 %390
    %392 = vrot.lane.b32.xlu0 %v387, 17
    %v393 = vpop.permute.xlu0 %392
    %394 = vrot.lane.b32.xlu0 %v388, 17
    %v395 = vpop.permute.xlu0 %394
    %396 = vrot.lane.b32.xlu0 %v389, 17
    %v397 = vpop.permute.xlu0 %396
    %v398 = vsel %vm65, %v395, %v397
    %v399 = vsel %vm65, %v393, %v395
    %v400 = vsel %vm65, %v391, %v393
    %v401 = vsel %vm65, %v397, %v391
    %402 = vrot.lane.b32.xlu0 %v386, 16
    %v403 = vpop.permute.xlu0 %402
    %404 = vrot.lane.b32.xlu0 %v387, 16
    %v405 = vpop.permute.xlu0 %404
    %406 = vrot.lane.b32.xlu0 %v388, 16
    %v407 = vpop.permute.xlu0 %406
    %408 = vrot.lane.b32.xlu0 %v389, 16
    %v409 = vpop.permute.xlu0 %408
    %v410 = vsel %vm78, %v407, %v409
    %v411 = vsel %vm78, %v405, %v407
    %v412 = vsel %vm78, %v403, %v405
    %v413 = vsel %vm78, %v409, %v403
    %414 = vrot.lane.b32.xlu0 %v386, 15
    %v415 = vpop.permute.xlu0 %414
    %416 = vrot.lane.b32.xlu0 %v387, 15
    %v417 = vpop.permute.xlu0 %416
    %418 = vrot.lane.b32.xlu0 %v388, 15
    %v419 = vpop.permute.xlu0 %418
    %420 = vrot.lane.b32.xlu0 %v389, 15
    %v421 = vpop.permute.xlu0 %420
    %v422 = vsel %vm91, %v419, %v421
    %v423 = vsel %vm91, %v417, %v419
    %v424 = vsel %vm91, %v415, %v417
    %v425 = vsel %vm91, %v421, %v415
    %426 = vrot.lane.b32.xlu0 %v386, 1
    %v427 = vpop.permute.xlu0 %426
    %428 = vrot.lane.b32.xlu0 %v387, 1
    %v429 = vpop.permute.xlu0 %428
    %430 = vrot.lane.b32.xlu0 %v388, 1
    %v431 = vpop.permute.xlu0 %430
    %432 = vrot.lane.b32.xlu0 %v389, 1
    %v433 = vpop.permute.xlu0 %432
    %v434 = vsel %vm104, %v431, %v433
    %v435 = vsel %vm104, %v429, %v431
    %v436 = vsel %vm104, %v427, %v429
    %v437 = vsel %vm104, %v433, %v427
    %438 = vrot.lane.b32.xlu0 %v386, 127
    %v439 = vpop.permute.xlu0 %438
    %440 = vrot.lane.b32.xlu0 %v387, 127
    %v441 = vpop.permute.xlu0 %440
    %442 = vrot.lane.b32.xlu0 %v388, 127
    %v443 = vpop.permute.xlu0 %442
    %444 = vrot.lane.b32.xlu0 %v389, 127
    %v445 = vpop.permute.xlu0 %444
    %v446 = vsel %vm117, %v443, %v445
    %v447 = vsel %vm117, %v441, %v443
    %v448 = vsel %vm117, %v439, %v441
    %v449 = vsel %vm117, %v445, %v439
    %450 = vrot.lane.b32.xlu0 %v386, 113
    %v451 = vpop.permute.xlu0 %450
    %452 = vrot.lane.b32.xlu0 %v387, 113
    %v453 = vpop.permute.xlu0 %452
    %454 = vrot.lane.b32.xlu0 %v388, 113
    %v455 = vpop.permute.xlu0 %454
    %456 = vrot.lane.b32.xlu0 %v389, 113
    %v457 = vpop.permute.xlu0 %456
    %v458 = vsel %vm130, %v455, %v457
    %v459 = vsel %vm130, %v453, %v455
    %v460 = vsel %vm130, %v451, %v453
    %v461 = vsel %vm130, %v457, %v451
    %462 = vrot.lane.b32.xlu0 %v386, 112
    %v463 = vpop.permute.xlu0 %462
    %464 = vrot.lane.b32.xlu0 %v387, 112
    %v465 = vpop.permute.xlu0 %464
    %466 = vrot.lane.b32.xlu0 %v388, 112
    %v467 = vpop.permute.xlu0 %466
    %468 = vrot.lane.b32.xlu0 %v389, 112
    %v469 = vpop.permute.xlu0 %468
    %v470 = vsel %vm143, %v467, %v469
    %v471 = vsel %vm143, %v465, %v467
    %v472 = vsel %vm143, %v463, %v465
    %v473 = vsel %vm143, %v469, %v463
    %474 = vrot.lane.b32.xlu0 %v386, 111
    %v475 = vpop.permute.xlu0 %474
    %476 = vrot.lane.b32.xlu0 %v387, 111
    %v477 = vpop.permute.xlu0 %476
    %478 = vrot.lane.b32.xlu0 %v388, 111
    %v479 = vpop.permute.xlu0 %478
    %480 = vrot.lane.b32.xlu0 %v389, 111
    %v481 = vpop.permute.xlu0 %480
    %v482 = vsel %vm156, %v479, %v481
    %v483 = vsel %vm156, %v477, %v479
    %v484 = vsel %vm156, %v475, %v477
    %v485 = vsel %vm156, %v481, %v475
    %v486 = vmul.f32 %v401, %v161
    %v487 = vmul.f32 %v400, %v162
    %v488 = vmul.f32 %v399, %v163
    %v489 = vmul.f32 %v398, %v164
    %v490 = vmul.f32 %v413, %v165
    %v491 = vmul.f32 %v412, %v166
    %v492 = vmul.f32 %v411, %v167
    %v493 = vmul.f32 %v410, %v168
    %v494 = vmul.f32 %v425, %v169
    %v495 = vmul.f32 %v424, %v170
    %v496 = vmul.f32 %v423, %v171
    %v497 = vmul.f32 %v422, %v172
    %v498 = vmul.f32 %v437, %v173
    %v499 = vmul.f32 %v436, %v174
    %v500 = vmul.f32 %v435, %v175
    %v501 = vmul.f32 %v434, %v176
    %v502 = vmul.f32 %v386, %v177
    %v503 = vmul.f32 %v387, %v178
    %v504 = vmul.f32 %v388, %v179
    %v505 = vmul.f32 %v389, %v180
    %v506 = vmul.f32 %v448, %v181
    %v507 = vmul.f32 %v447, %v182
    %v508 = vmul.f32 %v446, %v183
    %v509 = vmul.f32 %v449, %v184
    %v510 = vmul.f32 %v460, %v185
    %v511 = vmul.f32 %v459, %v186
    %v512 = vmul.f32 %v458, %v187
    %v513 = vmul.f32 %v461, %v188
    %v514 = vmul.f32 %v472, %v189
    %v515 = vmul.f32 %v471, %v190
    %v516 = vmul.f32 %v470, %v191
    %v517 = vmul.f32 %v473, %v192
    %v518 = vmul.f32 %v484, %v193
    %v519 = vmul.f32 %v483, %v194
    %v520 = vmul.f32 %v482, %v195
    %v521 = vmul.f32 %v485, %v196
    %s522 = scalar_lea.vmem [#allocation6], 8
    %v523 = vld [vmem:[%s522] sm:$0xff]
    %s524 = scalar_lea.vmem %s3, 8
    %v525 = vld [vmem:[%s524] sm:$0xff]
    %527 = vset.pattern.permute.xlu0 0
    %528 = vperm.xlu0 %527, %v525
    %v529 = vpop.permute.xlu0 %528
    %v532 = vsel %vm240, %v523, 0
    %534 = vmatprep.subr.mxu0 %v487
    %535 = vmatpush1.msra.mxu0 %v486
    %536 = vmatprep.subr.mxu0 %v491
    %537 = vmatpush1.msra.mxu0 %v490
    %538 = vmatprep.subr.mxu0 %v495
    %539 = vmatpush1.msra.mxu0 %v494
    %540 = vmatprep.subr.mxu0 %v499
    %541 = vmatpush1.msra.mxu0 %v498
    %542 = vmatprep.subr.mxu0 %v503
    %543 = vmatpush1.msra.mxu0 %v502
    %544 = vmatprep.subr.mxu0 %v507
    %545 = vmatpush1.msra.mxu0 %v506
    %546 = vmatprep.subr.mxu0 %v511
    %547 = vmatpush1.msra.mxu0 %v510
    %548 = vmatprep.subr.mxu0 %v515
    %549 = vmatpush1.msra.mxu0 %v514
    %550 = vmatprep.subr.mxu0 %v519
    %551 = vmatpush1.msra.mxu0 %v518
    %552 = vmatprep.subr.mxu0 0.0
    %553 = vmatpush1.msra.mxu0 0.0
    %554 = vmatprep.subr.mxu0 0.0
    %555 = vmatpush1.msra.mxu0 0.0
    %556 = vmatprep.subr.mxu0 0.0
    %557 = vmatpush1.msra.mxu0 0.0
    %558 = vmatprep.subr.mxu0 0.0
    %559 = vmatpush1.msra.mxu0 0.0
    %560 = vmatprep.subr.mxu0 0.0
    %561 = vmatpush1.msra.mxu0 0.0
    %562 = vmatprep.subr.mxu0 0.0
    %563 = vmatpush1.msra.mxu0 0.0
    %564 = vmatprep.subr.mxu0 0.0
    %565 = vmatpush1.msra.mxu0 0.0
    %566 = vmatprep.subr.mxu0 0.0
    %567 = vmatpush1.msra.mxu0 0.0
    %568 = vmatprep.subr.mxu0 0.0
    %569 = vmatpush1.msra.mxu0 0.0
    %570 = vmatprep.subr.mxu0 0.0
    %571 = vmatpush1.msra.mxu0 0.0
    %572 = vmatprep.subr.mxu0 0.0
    %573 = vmatpush1.msra.mxu0 0.0
    %574 = vmatprep.subr.mxu0 0.0
    %575 = vmatpush1.msra.mxu0 0.0
    %576 = vmatprep.subr.mxu0 0.0
    %577 = vmatpush1.msra.mxu0 0.0
    %578 = vmatprep.subr.mxu0 0.0
    %579 = vmatpush1.msra.mxu0 0.0
    %580 = vmatprep.subr.mxu0 0.0
    %581 = vmatpush1.msra.mxu0 0.0
    %582 = vmatprep.subr.mxu0 0.0
    %583 = vmatpush1.msra.mxu0 0.0
    %584 = vmatprep.subr.mxu0 0.0
    %585 = vmatpush1.msra.mxu0 0.0
    %586 = vmatprep.subr.mxu0 0.0
    %587 = vmatpush1.msra.mxu0 0.0
    %588 = vmatprep.subr.mxu0 0.0
    %589 = vmatpush1.msra.mxu0 0.0
    %590 = vmatprep.subr.mxu0 0.0
    %591 = vmatpush1.msra.mxu0 0.0
    %592 = vmatprep.subr.mxu0 0.0
    %593 = vmatpush1.msra.mxu0 0.0
    %594 = vmatprep.subr.mxu0 0.0
    %595 = vmatpush1.msra.mxu0 0.0
    %596 = vmatprep.subr.mxu0 0.0
    %597 = vmatpush1.msra.mxu0 0.0
    %598 = vmatprep.mubr.f32.mxu0 0.0
    %599 = vmatmul.mubr.f32.gmra.mrb[0].mxu0 %v532
    %v600 = vpop.f32.mrb[0].mxu0
    %v601 = vadd.f32 %v529, %v600
    %v602 = vpop.f32.mrb[0].mxu0
    %v603 = vadd.f32 %v529, %v602
    %604 = vdwg.mxu0
    %605 = vmatprep.subr.mxu0 %v489
    %606 = vmatpush1.msra.mxu0 %v488
    %607 = vmatprep.subr.mxu0 %v493
    %608 = vmatpush1.msra.mxu0 %v492
    %609 = vmatprep.subr.mxu0 %v497
    %610 = vmatpush1.msra.mxu0 %v496
    %611 = vmatprep.subr.mxu0 %v501
    %612 = vmatpush1.msra.mxu0 %v500
    %613 = vmatprep.subr.mxu0 %v505
    %614 = vmatpush1.msra.mxu0 %v504
    %615 = vmatprep.subr.mxu0 %v509
    %616 = vmatpush1.msra.mxu0 %v508
    %617 = vmatprep.subr.mxu0 %v513
    %618 = vmatpush1.msra.mxu0 %v512
    %619 = vmatprep.subr.mxu0 %v517
    %620 = vmatpush1.msra.mxu0 %v516
    %621 = vmatprep.subr.mxu0 %v521
    %622 = vmatpush1.msra.mxu0 %v520
    %623 = vmatprep.subr.mxu0 0.0
    %624 = vmatpush1.msra.mxu0 0.0
    %625 = vmatprep.subr.mxu0 0.0
    %626 = vmatpush1.msra.mxu0 0.0
    %627 = vmatprep.subr.mxu0 0.0
    %628 = vmatpush1.msra.mxu0 0.0
    %629 = vmatprep.subr.mxu0 0.0
    %630 = vmatpush1.msra.mxu0 0.0
    %631 = vmatprep.subr.mxu0 0.0
    %632 = vmatpush1.msra.mxu0 0.0
    %633 = vmatprep.subr.mxu0 0.0
    %634 = vmatpush1.msra.mxu0 0.0
    %635 = vmatprep.subr.mxu0 0.0
    %636 = vmatpush1.msra.mxu0 0.0
    %637 = vmatprep.subr.mxu0 0.0
    %638 = vmatpush1.msra.mxu0 0.0
    %639 = vmatprep.subr.mxu0 0.0
    %640 = vmatpush1.msra.mxu0 0.0
    %641 = vmatprep.subr.mxu0 0.0
    %642 = vmatpush1.msra.mxu0 0.0
    %643 = vmatprep.subr.mxu0 0.0
    %644 = vmatpush1.msra.mxu0 0.0
    %645 = vmatprep.subr.mxu0 0.0
    %646 = vmatpush1.msra.mxu0 0.0
    %647 = vmatprep.subr.mxu0 0.0
    %648 = vmatpush1.msra.mxu0 0.0
    %649 = vmatprep.subr.mxu0 0.0
    %650 = vmatpush1.msra.mxu0 0.0
    %651 = vmatprep.subr.mxu0 0.0
    %652 = vmatpush1.msra.mxu0 0.0
    %653 = vmatprep.subr.mxu0 0.0
    %654 = vmatpush1.msra.mxu0 0.0
    %655 = vmatprep.subr.mxu0 0.0
    %656 = vmatpush1.msra.mxu0 0.0
    %657 = vmatprep.subr.mxu0 0.0
    %658 = vmatpush1.msra.mxu0 0.0
    %659 = vmatprep.subr.mxu0 0.0
    %660 = vmatpush1.msra.mxu0 0.0
    %661 = vmatprep.subr.mxu0 0.0
    %662 = vmatpush1.msra.mxu0 0.0
    %663 = vmatprep.subr.mxu0 0.0
    %664 = vmatpush1.msra.mxu0 0.0
    %665 = vmatprep.subr.mxu0 0.0
    %666 = vmatpush1.msra.mxu0 0.0
    %667 = vmatprep.subr.mxu0 0.0
    %668 = vmatpush1.msra.mxu0 0.0
    %669 = vmatprep.mubr.f32.mxu0 0.0
    %670 = vmatmul.mubr.f32.gmra.mrb[0].mxu0 %v532
    %v671 = vpop.f32.mrb[0].mxu0
    %v672 = vadd.f32 %v529, %v671
    %v673 = vpop.f32.mrb[0].mxu0
    %v674 = vadd.f32 %v529, %v673
    %675 = vdwg.mxu0
    %s676 = scalar_lea.vmem [#allocation2], 32
    %677 = vst [vmem:[%s676] sm:$0xff] %v601
    %678 = vst [vmem:[%s676 + $0x8] sm:$0xff] %v603
    %679 = vst [vmem:[%s676 + $0x10] sm:$0xff] %v672
    %680 = vst [vmem:[%s676 + $0x18] sm:$0xff] %v674
    %681 = vrot.lane.b32.xlu0 %v601, 17
    %v682 = vpop.permute.xlu0 %681
    %683 = vrot.lane.b32.xlu0 %v603, 17
    %v684 = vpop.permute.xlu0 %683
    %685 = vrot.lane.b32.xlu0 %v672, 17
    %v686 = vpop.permute.xlu0 %685
    %687 = vrot.lane.b32.xlu0 %v674, 17
    %v688 = vpop.permute.xlu0 %687
    %v689 = vsel %vm65, %v686, %v688
    %v690 = vsel %vm65, %v684, %v686
    %v691 = vsel %vm65, %v682, %v684
    %v692 = vsel %vm65, %v688, %v682
    %693 = vrot.lane.b32.xlu0 %v601, 16
    %v694 = vpop.permute.xlu0 %693
    %695 = vrot.lane.b32.xlu0 %v603, 16
    %v696 = vpop.permute.xlu0 %695
    %697 = vrot.lane.b32.xlu0 %v672, 16
    %v698 = vpop.permute.xlu0 %697
    %699 = vrot.lane.b32.xlu0 %v674, 16
    %v700 = vpop.permute.xlu0 %699
    %v701 = vsel %vm78, %v698, %v700
    %v702 = vsel %vm78, %v696, %v698
    %v703 = vsel %vm78, %v694, %v696
    %v704 = vsel %vm78, %v700, %v694
    %705 = vrot.lane.b32.xlu0 %v601, 15
    %v706 = vpop.permute.xlu0 %705
    %707 = vrot.lane.b32.xlu0 %v603, 15
    %v708 = vpop.permute.xlu0 %707
    %709 = vrot.lane.b32.xlu0 %v672, 15
    %v710 = vpop.permute.xlu0 %709
    %711 = vrot.lane.b32.xlu0 %v674, 15
    %v712 = vpop.permute.xlu0 %711
    %v713 = vsel %vm91, %v710, %v712
    %v714 = vsel %vm91, %v708, %v710
    %v715 = vsel %vm91, %v706, %v708
    %v716 = vsel %vm91, %v712, %v706
    %717 = vrot.lane.b32.xlu0 %v601, 1
    %v718 = vpop.permute.xlu0 %717
    %719 = vrot.lane.b32.xlu0 %v603, 1
    %v720 = vpop.permute.xlu0 %719
    %721 = vrot.lane.b32.xlu0 %v672, 1
    %v722 = vpop.permute.xlu0 %721
    %723 = vrot.lane.b32.xlu0 %v674, 1
    %v724 = vpop.permute.xlu0 %723
    %v725 = vsel %vm104, %v722, %v724
    %v726 = vsel %vm104, %v720, %v722
    %v727 = vsel %vm104, %v718, %v720
    %v728 = vsel %vm104, %v724, %v718
    %729 = vrot.lane.b32.xlu0 %v601, 127
    %v730 = vpop.permute.xlu0 %729
    %731 = vrot.lane.b32.xlu0 %v603, 127
    %v732 = vpop.permute.xlu0 %731
    %733 = vrot.lane.b32.xlu0 %v672, 127
    %v734 = vpop.permute.xlu0 %733
    %735 = vrot.lane.b32.xlu0 %v674, 127
    %v736 = vpop.permute.xlu0 %735
    %v737 = vsel %vm117, %v734, %v736
    %v738 = vsel %vm117, %v732, %v734
    %v739 = vsel %vm117, %v730, %v732
    %v740 = vsel %vm117, %v736, %v730
    %741 = vrot.lane.b32.xlu0 %v601, 113
    %v742 = vpop.permute.xlu0 %741
    %743 = vrot.lane.b32.xlu0 %v603, 113
    %v744 = vpop.permute.xlu0 %743
    %745 = vrot.lane.b32.xlu0 %v672, 113
    %v746 = vpop.permute.xlu0 %745
    %747 = vrot.lane.b32.xlu0 %v674, 113
    %v748 = vpop.permute.xlu0 %747
    %v749 = vsel %vm130, %v746, %v748
    %v750 = vsel %vm130, %v744, %v746
    %v751 = vsel %vm130, %v742, %v744
    %v752 = vsel %vm130, %v748, %v742
    %753 = vrot.lane.b32.xlu0 %v601, 112
    %v754 = vpop.permute.xlu0 %753
    %755 = vrot.lane.b32.xlu0 %v603, 112
    %v756 = vpop.permute.xlu0 %755
    %757 = vrot.lane.b32.xlu0 %v672, 112
    %v758 = vpop.permute.xlu0 %757
    %759 = vrot.lane.b32.xlu0 %v674, 112
    %v760 = vpop.permute.xlu0 %759
    %v761 = vsel %vm143, %v758, %v760
    %v762 = vsel %vm143, %v756, %v758
    %v763 = vsel %vm143, %v754, %v756
    %v764 = vsel %vm143, %v760, %v754
    %765 = vrot.lane.b32.xlu0 %v601, 111
    %v766 = vpop.permute.xlu0 %765
    %767 = vrot.lane.b32.xlu0 %v603, 111
    %v768 = vpop.permute.xlu0 %767
    %769 = vrot.lane.b32.xlu0 %v672, 111
    %v770 = vpop.permute.xlu0 %769
    %771 = vrot.lane.b32.xlu0 %v674, 111
    %v772 = vpop.permute.xlu0 %771
    %v773 = vsel %vm156, %v770, %v772
    %v774 = vsel %vm156, %v768, %v770
    %v775 = vsel %vm156, %v766, %v768
    %v776 = vsel %vm156, %v772, %v766
    %v777 = vld [vmem:[%s4] sm:$0xff]
    %v778 = vld [vmem:[%s4 + $0x8] sm:$0xff]
    %v779 = vld [vmem:[%s4 + $0x10] sm:$0xff]
    %v780 = vld [vmem:[%s4 + $0x18] sm:$0xff]
    %v781 = vld [vmem:[%s4 + $0x20] sm:$0xff]
    %v782 = vld [vmem:[%s4 + $0x28] sm:$0xff]
    %v783 = vld [vmem:[%s4 + $0x30] sm:$0xff]
    %v784 = vld [vmem:[%s4 + $0x38] sm:$0xff]
    %v785 = vld [vmem:[%s4 + $0x40] sm:$0xff]
    %v786 = vld [vmem:[%s4 + $0x48] sm:$0xff]
    %v787 = vld [vmem:[%s4 + $0x50] sm:$0xff]
    %v788 = vld [vmem:[%s4 + $0x58] sm:$0xff]
    %v789 = vld [vmem:[%s4 + $0x60] sm:$0xff]
    %v790 = vld [vmem:[%s4 + $0x68] sm:$0xff]
    %v791 = vld [vmem:[%s4 + $0x70] sm:$0xff]
    %v792 = vld [vmem:[%s4 + $0x78] sm:$0xff]
    %v793 = vld [vmem:[%s4 + $0x80] sm:$0xff]
    %v794 = vld [vmem:[%s4 + $0x88] sm:$0xff]
    %v795 = vld [vmem:[%s4 + $0x90] sm:$0xff]
    %v796 = vld [vmem:[%s4 + $0x98] sm:$0xff]
    %v797 = vld [vmem:[%s4 + $0xa0] sm:$0xff]
    %v798 = vld [vmem:[%s4 + $0xa8] sm:$0xff]
    %v799 = vld [vmem:[%s4 + $0xb0] sm:$0xff]
    %v800 = vld [vmem:[%s4 + $0xb8] sm:$0xff]
    %v801 = vld [vmem:[%s4 + $0xc0] sm:$0xff]
    %v802 = vld [vmem:[%s4 + $0xc8] sm:$0xff]
    %v803 = vld [vmem:[%s4 + $0xd0] sm:$0xff]
    %v804 = vld [vmem:[%s4 + $0xd8] sm:$0xff]
    %v805 = vld [vmem:[%s4 + $0xe0] sm:$0xff]
    %v806 = vld [vmem:[%s4 + $0xe8] sm:$0xff]
    %v807 = vld [vmem:[%s4 + $0xf0] sm:$0xff]
    %v808 = vld [vmem:[%s4 + $0xf8] sm:$0xff]
    %v809 = vld [vmem:[%s4 + $0x100] sm:$0xff]
    %v810 = vld [vmem:[%s4 + $0x108] sm:$0xff]
    %v811 = vld [vmem:[%s4 + $0x110] sm:$0xff]
    %v812 = vld [vmem:[%s4 + $0x118] sm:$0xff]
    %v813 = vmul.f32 %v692, %v777
    %v814 = vmul.f32 %v691, %v778
    %v815 = vmul.f32 %v690, %v779
    %v816 = vmul.f32 %v689, %v780
    %v817 = vmul.f32 %v704, %v781
    %v818 = vmul.f32 %v703, %v782
    %v819 = vmul.f32 %v702, %v783
    %v820 = vmul.f32 %v701, %v784
    %v821 = vmul.f32 %v716, %v785
    %v822 = vmul.f32 %v715, %v786
    %v823 = vmul.f32 %v714, %v787
    %v824 = vmul.f32 %v713, %v788
    %v825 = vmul.f32 %v728, %v789
    %v826 = vmul.f32 %v727, %v790
    %v827 = vmul.f32 %v726, %v791
    %v828 = vmul.f32 %v725, %v792
    %v829 = vmul.f32 %v601, %v793
    %v830 = vmul.f32 %v603, %v794
    %v831 = vmul.f32 %v672, %v795
    %v832 = vmul.f32 %v674, %v796
    %v833 = vmul.f32 %v739, %v797
    %v834 = vmul.f32 %v738, %v798
    %v835 = vmul.f32 %v737, %v799
    %v836 = vmul.f32 %v740, %v800
    %v837 = vmul.f32 %v751, %v801
    %v838 = vmul.f32 %v750, %v802
    %v839 = vmul.f32 %v749, %v803
    %v840 = vmul.f32 %v752, %v804
    %v841 = vmul.f32 %v763, %v805
    %v842 = vmul.f32 %v762, %v806
    %v843 = vmul.f32 %v761, %v807
    %v844 = vmul.f32 %v764, %v808
    %v845 = vmul.f32 %v775, %v809
    %v846 = vmul.f32 %v774, %v810
    %v847 = vmul.f32 %v773, %v811
    %v848 = vmul.f32 %v776, %v812
    %s849 = scalar_lea.vmem [#allocation6], 16
    %v850 = vld [vmem:[%s849] sm:$0xff]
    %s851 = scalar_lea.vmem %s3, 16
    %v852 = vld [vmem:[%s851] sm:$0xff]
    %854 = vset.pattern.permute.xlu0 0
    %855 = vperm.xlu0 %854, %v852
    %v856 = vpop.permute.xlu0 %855
    %v859 = vsel %vm240, %v850, 0
    %861 = vmatprep.subr.mxu0 %v814
    %862 = vmatpush1.msra.mxu0 %v813
    %863 = vmatprep.subr.mxu0 %v818
    %864 = vmatpush1.msra.mxu0 %v817
    %865 = vmatprep.subr.mxu0 %v822
    %866 = vmatpush1.msra.mxu0 %v821
    %867 = vmatprep.subr.mxu0 %v826
    %868 = vmatpush1.msra.mxu0 %v825
    %869 = vmatprep.subr.mxu0 %v830
    %870 = vmatpush1.msra.mxu0 %v829
    %871 = vmatprep.subr.mxu0 %v834
    %872 = vmatpush1.msra.mxu0 %v833
    %873 = vmatprep.subr.mxu0 %v838
    %874 = vmatpush1.msra.mxu0 %v837
    %875 = vmatprep.subr.mxu0 %v842
    %876 = vmatpush1.msra.mxu0 %v841
    %877 = vmatprep.subr.mxu0 %v846
    %878 = vmatpush1.msra.mxu0 %v845
    %879 = vmatprep.subr.mxu0 0.0
    %880 = vmatpush1.msra.mxu0 0.0
    %881 = vmatprep.subr.mxu0 0.0
    %882 = vmatpush1.msra.mxu0 0.0
    %883 = vmatprep.subr.mxu0 0.0
    %884 = vmatpush1.msra.mxu0 0.0
    %885 = vmatprep.subr.mxu0 0.0
    %886 = vmatpush1.msra.mxu0 0.0
    %887 = vmatprep.subr.mxu0 0.0
    %888 = vmatpush1.msra.mxu0 0.0
    %889 = vmatprep.subr.mxu0 0.0
    %890 = vmatpush1.msra.mxu0 0.0
    %891 = vmatprep.subr.mxu0 0.0
    %892 = vmatpush1.msra.mxu0 0.0
    %893 = vmatprep.subr.mxu0 0.0
    %894 = vmatpush1.msra.mxu0 0.0
    %895 = vmatprep.subr.mxu0 0.0
    %896 = vmatpush1.msra.mxu0 0.0
    %897 = vmatprep.subr.mxu0 0.0
    %898 = vmatpush1.msra.mxu0 0.0
    %899 = vmatprep.subr.mxu0 0.0
    %900 = vmatpush1.msra.mxu0 0.0
    %901 = vmatprep.subr.mxu0 0.0
    %902 = vmatpush1.msra.mxu0 0.0
    %903 = vmatprep.subr.mxu0 0.0
    %904 = vmatpush1.msra.mxu0 0.0
    %905 = vmatprep.subr.mxu0 0.0
    %906 = vmatpush1.msra.mxu0 0.0
    %907 = vmatprep.subr.mxu0 0.0
    %908 = vmatpush1.msra.mxu0 0.0
    %909 = vmatprep.subr.mxu0 0.0
    %910 = vmatpush1.msra.mxu0 0.0
    %911 = vmatprep.subr.mxu0 0.0
    %912 = vmatpush1.msra.mxu0 0.0
    %913 = vmatprep.subr.mxu0 0.0
    %914 = vmatpush1.msra.mxu0 0.0
    %915 = vmatprep.subr.mxu0 0.0
    %916 = vmatpush1.msra.mxu0 0.0
    %917 = vmatprep.subr.mxu0 0.0
    %918 = vmatpush1.msra.mxu0 0.0
    %919 = vmatprep.subr.mxu0 0.0
    %920 = vmatpush1.msra.mxu0 0.0
    %921 = vmatprep.subr.mxu0 0.0
    %922 = vmatpush1.msra.mxu0 0.0
    %923 = vmatprep.subr.mxu0 0.0
    %924 = vmatpush1.msra.mxu0 0.0
    %925 = vmatprep.mubr.f32.mxu0 0.0
    %926 = vmatmul.mubr.f32.gmra.mrb[0].mxu0 %v859
    %v927 = vpop.f32.mrb[0].mxu0
    %v928 = vadd.f32 %v856, %v927
    %v929 = vpop.f32.mrb[0].mxu0
    %v930 = vadd.f32 %v856, %v929
    %931 = vdwg.mxu0
    %932 = vmatprep.subr.mxu0 %v816
    %933 = vmatpush1.msra.mxu0 %v815
    %934 = vmatprep.subr.mxu0 %v820
    %935 = vmatpush1.msra.mxu0 %v819
    %936 = vmatprep.subr.mxu0 %v824
    %937 = vmatpush1.msra.mxu0 %v823
    %938 = vmatprep.subr.mxu0 %v828
    %939 = vmatpush1.msra.mxu0 %v827
    %940 = vmatprep.subr.mxu0 %v832
    %941 = vmatpush1.msra.mxu0 %v831
    %942 = vmatprep.subr.mxu0 %v836
    %943 = vmatpush1.msra.mxu0 %v835
    %944 = vmatprep.subr.mxu0 %v840
    %945 = vmatpush1.msra.mxu0 %v839
    %946 = vmatprep.subr.mxu0 %v844
    %947 = vmatpush1.msra.mxu0 %v843
    %948 = vmatprep.subr.mxu0 %v848
    %949 = vmatpush1.msra.mxu0 %v847
    %950 = vmatprep.subr.mxu0 0.0
    %951 = vmatpush1.msra.mxu0 0.0
    %952 = vmatprep.subr.mxu0 0.0
    %953 = vmatpush1.msra.mxu0 0.0
    %954 = vmatprep.subr.mxu0 0.0
    %955 = vmatpush1.msra.mxu0 0.0
    %956 = vmatprep.subr.mxu0 0.0
    %957 = vmatpush1.msra.mxu0 0.0
    %958 = vmatprep.subr.mxu0 0.0
    %959 = vmatpush1.msra.mxu0 0.0
    %960 = vmatprep.subr.mxu0 0.0
    %961 = vmatpush1.msra.mxu0 0.0
    %962 = vmatprep.subr.mxu0 0.0
    %963 = vmatpush1.msra.mxu0 0.0
    %964 = vmatprep.subr.mxu0 0.0
    %965 = vmatpush1.msra.mxu0 0.0
    %966 = vmatprep.subr.mxu0 0.0
    %967 = vmatpush1.msra.mxu0 0.0
    %968 = vmatprep.subr.mxu0 0.0
    %969 = vmatpush1.msra.mxu0 0.0
    %970 = vmatprep.subr.mxu0 0.0
    %971 = vmatpush1.msra.mxu0 0.0
    %972 = vmatprep.subr.mxu0 0.0
    %973 = vmatpush1.msra.mxu0 0.0
    %974 = vmatprep.subr.mxu0 0.0
    %975 = vmatpush1.msra.mxu0 0.0
    %976 = vmatprep.subr.mxu0 0.0
    %977 = vmatpush1.msra.mxu0 0.0
    %978 = vmatprep.subr.mxu0 0.0
    %979 = vmatpush1.msra.mxu0 0.0
    %980 = vmatprep.subr.mxu0 0.0
    %981 = vmatpush1.msra.mxu0 0.0
    %982 = vmatprep.subr.mxu0 0.0
    %983 = vmatpush1.msra.mxu0 0.0
    %984 = vmatprep.subr.mxu0 0.0
    %985 = vmatpush1.msra.mxu0 0.0
    %986 = vmatprep.subr.mxu0 0.0
    %987 = vmatpush1.msra.mxu0 0.0
    %988 = vmatprep.subr.mxu0 0.0
    %989 = vmatpush1.msra.mxu0 0.0
    %990 = vmatprep.subr.mxu0 0.0
    %991 = vmatpush1.msra.mxu0 0.0
    %992 = vmatprep.subr.mxu0 0.0
    %993 = vmatpush1.msra.mxu0 0.0
    %994 = vmatprep.subr.mxu0 0.0
    %995 = vmatpush1.msra.mxu0 0.0
    %996 = vmatprep.mubr.f32.mxu0 0.0
    %997 = vmatmul.mubr.f32.gmra.mrb[0].mxu0 %v859
    %v998 = vpop.f32.mrb[0].mxu0
    %v999 = vadd.f32 %v856, %v998
    %v1000 = vpop.f32.mrb[0].mxu0
    %v1001 = vadd.f32 %v856, %v1000
    %1002 = vdwg.mxu0
    %v1003 = vmax.f32 %v928, 0.0
    %v1004 = vmax.f32 %v930, 0.0
    %v1005 = vmax.f32 %v999, 0.0
    %v1006 = vmax.f32 %v1001, 0.0
    %1007 = vrot.lane.b32.xlu0 %v1003, 17
    %v1008 = vpop.permute.xlu0 %1007
    %1009 = vrot.lane.b32.xlu0 %v1004, 17
    %v1010 = vpop.permute.xlu0 %1009
    %1011 = vrot.lane.b32.xlu0 %v1005, 17
    %v1012 = vpop.permute.xlu0 %1011
    %1013 = vrot.lane.b32.xlu0 %v1006, 17
    %v1014 = vpop.permute.xlu0 %1013
    %v1015 = vsel %vm65, %v1012, %v1014
    %v1016 = vsel %vm65, %v1010, %v1012
    %v1017 = vsel %vm65, %v1008, %v1010
    %v1018 = vsel %vm65, %v1014, %v1008
    %1019 = vrot.lane.b32.xlu0 %v1003, 16
    %v1020 = vpop.permute.xlu0 %1019
    %1021 = vrot.lane.b32.xlu0 %v1004, 16
    %v1022 = vpop.permute.xlu0 %1021
    %1023 = vrot.lane.b32.xlu0 %v1005, 16
    %v1024 = vpop.permute.xlu0 %1023
    %1025 = vrot.lane.b32.xlu0 %v1006, 16
    %v1026 = vpop.permute.xlu0 %1025
    %v1027 = vsel %vm78, %v1024, %v1026
    %v1028 = vsel %vm78, %v1022, %v1024
    %v1029 = vsel %vm78, %v1020, %v1022
    %v1030 = vsel %vm78, %v1026, %v1020
    %1031 = vrot.lane.b32.xlu0 %v1003, 15
    %v1032 = vpop.permute.xlu0 %1031
    %1033 = vrot.lane.b32.xlu0 %v1004, 15
    %v1034 = vpop.permute.xlu0 %1033
    %1035 = vrot.lane.b32.xlu0 %v1005, 15
    %v1036 = vpop.permute.xlu0 %1035
    %1037 = vrot.lane.b32.xlu0 %v1006, 15
    %v1038 = vpop.permute.xlu0 %1037
    %v1039 = vsel %vm91, %v1036, %v1038
    %v1040 = vsel %vm91, %v1034, %v1036
    %v1041 = vsel %vm91, %v1032, %v1034
    %v1042 = vsel %vm91, %v1038, %v1032
    %1043 = vrot.lane.b32.xlu0 %v1003, 1
    %v1044 = vpop.permute.xlu0 %1043
    %1045 = vrot.lane.b32.xlu0 %v1004, 1
    %v1046 = vpop.permute.xlu0 %1045
    %1047 = vrot.lane.b32.xlu0 %v1005, 1
    %v1048 = vpop.permute.xlu0 %1047
    %1049 = vrot.lane.b32.xlu0 %v1006, 1
    %v1050 = vpop.permute.xlu0 %1049
    %v1051 = vsel %vm104, %v1048, %v1050
    %v1052 = vsel %vm104, %v1046, %v1048
    %v1053 = vsel %vm104, %v1044, %v1046
    %v1054 = vsel %vm104, %v1050, %v1044
    %1055 = vrot.lane.b32.xlu0 %v1003, 127
    %v1056 = vpop.permute.xlu0 %1055
    %1057 = vrot.lane.b32.xlu0 %v1004, 127
    %v1058 = vpop.permute.xlu0 %1057
    %1059 = vrot.lane.b32.xlu0 %v1005, 127
    %v1060 = vpop.permute.xlu0 %1059
    %1061 = vrot.lane.b32.xlu0 %v1006, 127
    %v1062 = vpop.permute.xlu0 %1061
    %v1063 = vsel %vm117, %v1060, %v1062
    %v1064 = vsel %vm117, %v1058, %v1060
    %v1065 = vsel %vm117, %v1056, %v1058
    %v1066 = vsel %vm117, %v1062, %v1056
    %1067 = vrot.lane.b32.xlu0 %v1003, 113
    %v1068 = vpop.permute.xlu0 %1067
    %1069 = vrot.lane.b32.xlu0 %v1004, 113
    %v1070 = vpop.permute.xlu0 %1069
    %1071 = vrot.lane.b32.xlu0 %v1005, 113
    %v1072 = vpop.permute.xlu0 %1071
    %1073 = vrot.lane.b32.xlu0 %v1006, 113
    %v1074 = vpop.permute.xlu0 %1073
    %v1075 = vsel %vm130, %v1072, %v1074
    %v1076 = vsel %vm130, %v1070, %v1072
    %v1077 = vsel %vm130, %v1068, %v1070
    %v1078 = vsel %vm130, %v1074, %v1068
    %1079 = vrot.lane.b32.xlu0 %v1003, 112
    %v1080 = vpop.permute.xlu0 %1079
    %1081 = vrot.lane.b32.xlu0 %v1004, 112
    %v1082 = vpop.permute.xlu0 %1081
    %1083 = vrot.lane.b32.xlu0 %v1005, 112
    %v1084 = vpop.permute.xlu0 %1083
    %1085 = vrot.lane.b32.xlu0 %v1006, 112
    %v1086 = vpop.permute.xlu0 %1085
    %v1087 = vsel %vm143, %v1084, %v1086
    %v1088 = vsel %vm143, %v1082, %v1084
    %v1089 = vsel %vm143, %v1080, %v1082
    %v1090 = vsel %vm143, %v1086, %v1080
    %1091 = vrot.lane.b32.xlu0 %v1003, 111
    %v1092 = vpop.permute.xlu0 %1091
    %1093 = vrot.lane.b32.xlu0 %v1004, 111
    %v1094 = vpop.permute.xlu0 %1093
    %1095 = vrot.lane.b32.xlu0 %v1005, 111
    %v1096 = vpop.permute.xlu0 %1095
    %1097 = vrot.lane.b32.xlu0 %v1006, 111
    %v1098 = vpop.permute.xlu0 %1097
    %v1099 = vsel %vm156, %v1096, %v1098
    %v1100 = vsel %vm156, %v1094, %v1096
    %v1101 = vsel %vm156, %v1092, %v1094
    %v1102 = vsel %vm156, %v1098, %v1092
    %v1103 = vmul.f32 %v1018, %v777
    %v1104 = vmul.f32 %v1017, %v778
    %v1105 = vmul.f32 %v1016, %v779
    %v1106 = vmul.f32 %v1015, %v780
    %v1107 = vmul.f32 %v1030, %v781
    %v1108 = vmul.f32 %v1029, %v782
    %v1109 = vmul.f32 %v1028, %v783
    %v1110 = vmul.f32 %v1027, %v784
    %v1111 = vmul.f32 %v1042, %v785
    %v1112 = vmul.f32 %v1041, %v786
    %v1113 = vmul.f32 %v1040, %v787
    %v1114 = vmul.f32 %v1039, %v788
    %v1115 = vmul.f32 %v1054, %v789
    %v1116 = vmul.f32 %v1053, %v790
    %v1117 = vmul.f32 %v1052, %v791
    %v1118 = vmul.f32 %v1051, %v792
    %v1119 = vmul.f32 %v1003, %v793
    %v1120 = vmul.f32 %v1004, %v794
    %v1121 = vmul.f32 %v1005, %v795
    %v1122 = vmul.f32 %v1006, %v796
    %v1123 = vmul.f32 %v1065, %v797
    %v1124 = vmul.f32 %v1064, %v798
    %v1125 = vmul.f32 %v1063, %v799
    %v1126 = vmul.f32 %v1066, %v800
    %v1127 = vmul.f32 %v1077, %v801
    %v1128 = vmul.f32 %v1076, %v802
    %v1129 = vmul.f32 %v1075, %v803
    %v1130 = vmul.f32 %v1078, %v804
    %v1131 = vmul.f32 %v1089, %v805
    %v1132 = vmul.f32 %v1088, %v806
    %v1133 = vmul.f32 %v1087, %v807
    %v1134 = vmul.f32 %v1090, %v808
    %v1135 = vmul.f32 %v1101, %v809
    %v1136 = vmul.f32 %v1100, %v810
    %v1137 = vmul.f32 %v1099, %v811
    %v1138 = vmul.f32 %v1102, %v812
    %s1139 = scalar_lea.vmem [#allocation6], 24
    %v1140 = vld [vmem:[%s1139] sm:$0xff]
    %s1141 = scalar_lea.vmem %s3, 24
    %v1142 = vld [vmem:[%s1141] sm:$0xff]
    %1144 = vset.pattern.permute.xlu0 0
    %1145 = vperm.xlu0 %1144, %v1142
    %v1146 = vpop.permute.xlu0 %1145
    %v1149 = vsel %vm240, %v1140, 0
    %1151 = vmatprep.subr.mxu0 %v1104
    %1152 = vmatpush1.msra.mxu0 %v1103
    %1153 = vmatprep.subr.mxu0 %v1108
    %1154 = vmatpush1.msra.mxu0 %v1107
    %1155 = vmatprep.subr.mxu0 %v1112
    %1156 = vmatpush1.msra.mxu0 %v1111
    %1157 = vmatprep.subr.mxu0 %v1116
    %1158 = vmatpush1.msra.mxu0 %v1115
    %1159 = vmatprep.subr.mxu0 %v1120
    %1160 = vmatpush1.msra.mxu0 %v1119
    %1161 = vmatprep.subr.mxu0 %v1124
    %1162 = vmatpush1.msra.mxu0 %v1123
    %1163 = vmatprep.subr.mxu0 %v1128
    %1164 = vmatpush1.msra.mxu0 %v1127
    %1165 = vmatprep.subr.mxu0 %v1132
    %1166 = vmatpush1.msra.mxu0 %v1131
    %1167 = vmatprep.subr.mxu0 %v1136
    %1168 = vmatpush1.msra.mxu0 %v1135
    %1169 = vmatprep.subr.mxu0 0.0
    %1170 = vmatpush1.msra.mxu0 0.0
    %1171 = vmatprep.subr.mxu0 0.0
    %1172 = vmatpush1.msra.mxu0 0.0
    %1173 = vmatprep.subr.mxu0 0.0
    %1174 = vmatpush1.msra.mxu0 0.0
    %1175 = vmatprep.subr.mxu0 0.0
    %1176 = vmatpush1.msra.mxu0 0.0
    %1177 = vmatprep.subr.mxu0 0.0
    %1178 = vmatpush1.msra.mxu0 0.0
    %1179 = vmatprep.subr.mxu0 0.0
    %1180 = vmatpush1.msra.mxu0 0.0
    %1181 = vmatprep.subr.mxu0 0.0
    %1182 = vmatpush1.msra.mxu0 0.0
    %1183 = vmatprep.subr.mxu0 0.0
    %1184 = vmatpush1.msra.mxu0 0.0
    %1185 = vmatprep.subr.mxu0 0.0
    %1186 = vmatpush1.msra.mxu0 0.0
    %1187 = vmatprep.subr.mxu0 0.0
    %1188 = vmatpush1.msra.mxu0 0.0
    %1189 = vmatprep.subr.mxu0 0.0
    %1190 = vmatpush1.msra.mxu0 0.0
    %1191 = vmatprep.subr.mxu0 0.0
    %1192 = vmatpush1.msra.mxu0 0.0
    %1193 = vmatprep.subr.mxu0 0.0
    %1194 = vmatpush1.msra.mxu0 0.0
    %1195 = vmatprep.subr.mxu0 0.0
    %1196 = vmatpush1.msra.mxu0 0.0
    %1197 = vmatprep.subr.mxu0 0.0
    %1198 = vmatpush1.msra.mxu0 0.0
    %1199 = vmatprep.subr.mxu0 0.0
    %1200 = vmatpush1.msra.mxu0 0.0
    %1201 = vmatprep.subr.mxu0 0.0
    %1202 = vmatpush1.msra.mxu0 0.0
    %1203 = vmatprep.subr.mxu0 0.0
    %1204 = vmatpush1.msra.mxu0 0.0
    %1205 = vmatprep.subr.mxu0 0.0
    %1206 = vmatpush1.msra.mxu0 0.0
    %1207 = vmatprep.subr.mxu0 0.0
    %1208 = vmatpush1.msra.mxu0 0.0
    %1209 = vmatprep.subr.mxu0 0.0
    %1210 = vmatpush1.msra.mxu0 0.0
    %1211 = vmatprep.subr.mxu0 0.0
    %1212 = vmatpush1.msra.mxu0 0.0
    %1213 = vmatprep.subr.mxu0 0.0
    %1214 = vmatpush1.msra.mxu0 0.0
    %1215 = vmatprep.mubr.f32.mxu0 0.0
    %1216 = vmatmul.mubr.f32.gmra.mrb[0].mxu0 %v1149
    %v1217 = vpop.f32.mrb[0].mxu0
    %v1218 = vadd.f32 %v1146, %v1217
    %v1219 = vpop.f32.mrb[0].mxu0
    %v1220 = vadd.f32 %v1146, %v1219
    %1221 = vdwg.mxu0
    %1222 = vmatprep.subr.mxu0 %v1106
    %1223 = vmatpush1.msra.mxu0 %v1105
    %1224 = vmatprep.subr.mxu0 %v1110
    %1225 = vmatpush1.msra.mxu0 %v1109
    %1226 = vmatprep.subr.mxu0 %v1114
    %1227 = vmatpush1.msra.mxu0 %v1113
    %1228 = vmatprep.subr.mxu0 %v1118
    %1229 = vmatpush1.msra.mxu0 %v1117
    %1230 = vmatprep.subr.mxu0 %v1122
    %1231 = vmatpush1.msra.mxu0 %v1121
    %1232 = vmatprep.subr.mxu0 %v1126
    %1233 = vmatpush1.msra.mxu0 %v1125
    %1234 = vmatprep.subr.mxu0 %v1130
    %1235 = vmatpush1.msra.mxu0 %v1129
    %1236 = vmatprep.subr.mxu0 %v1134
    %1237 = vmatpush1.msra.mxu0 %v1133
    %1238 = vmatprep.subr.mxu0 %v1138
    %1239 = vmatpush1.msra.mxu0 %v1137
    %1240 = vmatprep.subr.mxu0 0.0
    %1241 = vmatpush1.msra.mxu0 0.0
    %1242 = vmatprep.subr.mxu0 0.0
    %1243 = vmatpush1.msra.mxu0 0.0
    %1244 = vmatprep.subr.mxu0 0.0
    %1245 = vmatpush1.msra.mxu0 0.0
    %1246 = vmatprep.subr.mxu0 0.0
    %1247 = vmatpush1.msra.mxu0 0.0
    %1248 = vmatprep.subr.mxu0 0.0
    %1249 = vmatpush1.msra.mxu0 0.0
    %1250 = vmatprep.subr.mxu0 0.0
    %1251 = vmatpush1.msra.mxu0 0.0
    %1252 = vmatprep.subr.mxu0 0.0
    %1253 = vmatpush1.msra.mxu0 0.0
    %1254 = vmatprep.subr.mxu0 0.0
    %1255 = vmatpush1.msra.mxu0 0.0
    %1256 = vmatprep.subr.mxu0 0.0
    %1257 = vmatpush1.msra.mxu0 0.0
    %1258 = vmatprep.subr.mxu0 0.0
    %1259 = vmatpush1.msra.mxu0 0.0
    %1260 = vmatprep.subr.mxu0 0.0
    %1261 = vmatpush1.msra.mxu0 0.0
    %1262 = vmatprep.subr.mxu0 0.0
    %1263 = vmatpush1.msra.mxu0 0.0
    %1264 = vmatprep.subr.mxu0 0.0
    %1265 = vmatpush1.msra.mxu0 0.0
    %1266 = vmatprep.subr.mxu0 0.0
    %1267 = vmatpush1.msra.mxu0 0.0
    %1268 = vmatprep.subr.mxu0 0.0
    %1269 = vmatpush1.msra.mxu0 0.0
    %1270 = vmatprep.subr.mxu0 0.0
    %1271 = vmatpush1.msra.mxu0 0.0
    %1272 = vmatprep.subr.mxu0 0.0
    %1273 = vmatpush1.msra.mxu0 0.0
    %1274 = vmatprep.subr.mxu0 0.0
    %1275 = vmatpush1.msra.mxu0 0.0
    %1276 = vmatprep.subr.mxu0 0.0
    %1277 = vmatpush1.msra.mxu0 0.0
    %1278 = vmatprep.subr.mxu0 0.0
    %1279 = vmatpush1.msra.mxu0 0.0
    %1280 = vmatprep.subr.mxu0 0.0
    %1281 = vmatpush1.msra.mxu0 0.0
    %1282 = vmatprep.subr.mxu0 0.0
    %1283 = vmatpush1.msra.mxu0 0.0
    %1284 = vmatprep.subr.mxu0 0.0
    %1285 = vmatpush1.msra.mxu0 0.0
    %1286 = vmatprep.mubr.f32.mxu0 0.0
    %1287 = vmatmul.mubr.f32.gmra.mrb[0].mxu0 %v1149
    %v1288 = vpop.f32.mrb[0].mxu0
    %v1289 = vadd.f32 %v1146, %v1288
    %v1290 = vpop.f32.mrb[0].mxu0
    %v1291 = vadd.f32 %v1146, %v1290
    %1292 = vdwg.mxu0
    %s1293 = scalar_lea.vmem [#allocation2], 64
    %1294 = vst [vmem:[%s1293] sm:$0xff] %v1218
    %1295 = vst [vmem:[%s1293 + $0x8] sm:$0xff] %v1220
    %1296 = vst [vmem:[%s1293 + $0x10] sm:$0xff] %v1289
    %1297 = vst [vmem:[%s1293 + $0x18] sm:$0xff] %v1291
    %1298 = vrot.lane.b32.xlu0 %v1218, 17
    %v1299 = vpop.permute.xlu0 %1298
    %1300 = vrot.lane.b32.xlu0 %v1220, 17
    %v1301 = vpop.permute.xlu0 %1300
    %1302 = vrot.lane.b32.xlu0 %v1289, 17
    %v1303 = vpop.permute.xlu0 %1302
    %1304 = vrot.lane.b32.xlu0 %v1291, 17
    %v1305 = vpop.permute.xlu0 %1304
    %v1306 = vsel %vm65, %v1303, %v1305
    %v1307 = vsel %vm65, %v1301, %v1303
    %v1308 = vsel %vm65, %v1299, %v1301
    %v1309 = vsel %vm65, %v1305, %v1299
    %1310 = vrot.lane.b32.xlu0 %v1218, 16
    %v1311 = vpop.permute.xlu0 %1310
    %1312 = vrot.lane.b32.xlu0 %v1220, 16
    %v1313 = vpop.permute.xlu0 %1312
    %1314 = vrot.lane.b32.xlu0 %v1289, 16
    %v1315 = vpop.permute.xlu0 %1314
    %1316 = vrot.lane.b32.xlu0 %v1291, 16
    %v1317 = vpop.permute.xlu0 %1316
    %v1318 = vsel %vm78, %v1315, %v1317
    %v1319 = vsel %vm78, %v1313, %v1315
    %v1320 = vsel %vm78, %v1311, %v1313
    %v1321 = vsel %vm78, %v1317, %v1311
    %1322 = vrot.lane.b32.xlu0 %v1218, 15
    %v1323 = vpop.permute.xlu0 %1322
    %1324 = vrot.lane.b32.xlu0 %v1220, 15
    %v1325 = vpop.permute.xlu0 %1324
    %1326 = vrot.lane.b32.xlu0 %v1289, 15
    %v1327 = vpop.permute.xlu0 %1326
    %1328 = vrot.lane.b32.xlu0 %v1291, 15
    %v1329 = vpop.permute.xlu0 %1328
    %v1330 = vsel %vm91, %v1327, %v1329
    %v1331 = vsel %vm91, %v1325, %v1327
    %v1332 = vsel %vm91, %v1323, %v1325
    %v1333 = vsel %vm91, %v1329, %v1323
    %1334 = vrot.lane.b32.xlu0 %v1218, 1
    %v1335 = vpop.permute.xlu0 %1334
    %1336 = vrot.lane.b32.xlu0 %v1220, 1
    %v1337 = vpop.permute.xlu0 %1336
    %1338 = vrot.lane.b32.xlu0 %v1289, 1
    %v1339 = vpop.permute.xlu0 %1338
    %1340 = vrot.lane.b32.xlu0 %v1291, 1
    %v1341 = vpop.permute.xlu0 %1340
    %v1342 = vsel %vm104, %v1339, %v1341
    %v1343 = vsel %vm104, %v1337, %v1339
    %v1344 = vsel %vm104, %v1335, %v1337
    %v1345 = vsel %vm104, %v1341, %v1335
    %1346 = vrot.lane.b32.xlu0 %v1218, 127
    %v1347 = vpop.permute.xlu0 %1346
    %1348 = vrot.lane.b32.xlu0 %v1220, 127
    %v1349 = vpop.permute.xlu0 %1348
    %1350 = vrot.lane.b32.xlu0 %v1289, 127
    %v1351 = vpop.permute.xlu0 %1350
    %1352 = vrot.lane.b32.xlu0 %v1291, 127
    %v1353 = vpop.permute.xlu0 %1352
    %v1354 = vsel %vm117, %v1351, %v1353
    %v1355 = vsel %vm117, %v1349, %v1351
    %v1356 = vsel %vm117, %v1347, %v1349
    %v1357 = vsel %vm117, %v1353, %v1347
    %1358 = vrot.lane.b32.xlu0 %v1218, 113
    %v1359 = vpop.permute.xlu0 %1358
    %1360 = vrot.lane.b32.xlu0 %v1220, 113
    %v1361 = vpop.permute.xlu0 %1360
    %1362 = vrot.lane.b32.xlu0 %v1289, 113
    %v1363 = vpop.permute.xlu0 %1362
    %1364 = vrot.lane.b32.xlu0 %v1291, 113
    %v1365 = vpop.permute.xlu0 %1364
    %v1366 = vsel %vm130, %v1363, %v1365
    %v1367 = vsel %vm130, %v1361, %v1363
    %v1368 = vsel %vm130, %v1359, %v1361
    %v1369 = vsel %vm130, %v1365, %v1359
    %1370 = vrot.lane.b32.xlu0 %v1218, 112
    %v1371 = vpop.permute.xlu0 %1370
    %1372 = vrot.lane.b32.xlu0 %v1220, 112
    %v1373 = vpop.permute.xlu0 %1372
    %1374 = vrot.lane.b32.xlu0 %v1289, 112
    %v1375 = vpop.permute.xlu0 %1374
    %1376 = vrot.lane.b32.xlu0 %v1291, 112
    %v1377 = vpop.permute.xlu0 %1376
    %v1378 = vsel %vm143, %v1375, %v1377
    %v1379 = vsel %vm143, %v1373, %v1375
    %v1380 = vsel %vm143, %v1371, %v1373
    %v1381 = vsel %vm143, %v1377, %v1371
    %1382 = vrot.lane.b32.xlu0 %v1218, 111
    %v1383 = vpop.permute.xlu0 %1382
    %1384 = vrot.lane.b32.xlu0 %v1220, 111
    %v1385 = vpop.permute.xlu0 %1384
    %1386 = vrot.lane.b32.xlu0 %v1289, 111
    %v1387 = vpop.permute.xlu0 %1386
    %1388 = vrot.lane.b32.xlu0 %v1291, 111
    %v1389 = vpop.permute.xlu0 %1388
    %v1390 = vsel %vm156, %v1387, %v1389
    %v1391 = vsel %vm156, %v1385, %v1387
    %v1392 = vsel %vm156, %v1383, %v1385
    %v1393 = vsel %vm156, %v1389, %v1383
    %v1394 = vld [vmem:[%s4] sm:$0xff]
    %v1395 = vld [vmem:[%s4 + $0x8] sm:$0xff]
    %v1396 = vld [vmem:[%s4 + $0x10] sm:$0xff]
    %v1397 = vld [vmem:[%s4 + $0x18] sm:$0xff]
    %v1398 = vld [vmem:[%s4 + $0x20] sm:$0xff]
    %v1399 = vld [vmem:[%s4 + $0x28] sm:$0xff]
    %v1400 = vld [vmem:[%s4 + $0x30] sm:$0xff]
    %v1401 = vld [vmem:[%s4 + $0x38] sm:$0xff]
    %v1402 = vld [vmem:[%s4 + $0x40] sm:$0xff]
    %v1403 = vld [vmem:[%s4 + $0x48] sm:$0xff]
    %v1404 = vld [vmem:[%s4 + $0x50] sm:$0xff]
    %v1405 = vld [vmem:[%s4 + $0x58] sm:$0xff]
    %v1406 = vld [vmem:[%s4 + $0x60] sm:$0xff]
    %v1407 = vld [vmem:[%s4 + $0x68] sm:$0xff]
    %v1408 = vld [vmem:[%s4 + $0x70] sm:$0xff]
    %v1409 = vld [vmem:[%s4 + $0x78] sm:$0xff]
    %v1410 = vld [vmem:[%s4 + $0x80] sm:$0xff]
    %v1411 = vld [vmem:[%s4 + $0x88] sm:$0xff]
    %v1412 = vld [vmem:[%s4 + $0x90] sm:$0xff]
    %v1413 = vld [vmem:[%s4 + $0x98] sm:$0xff]
    %v1414 = vld [vmem:[%s4 + $0xa0] sm:$0xff]
    %v1415 = vld [vmem:[%s4 + $0xa8] sm:$0xff]
    %v1416 = vld [vmem:[%s4 + $0xb0] sm:$0xff]
    %v1417 = vld [vmem:[%s4 + $0xb8] sm:$0xff]
    %v1418 = vld [vmem:[%s4 + $0xc0] sm:$0xff]
    %v1419 = vld [vmem:[%s4 + $0xc8] sm:$0xff]
    %v1420 = vld [vmem:[%s4 + $0xd0] sm:$0xff]
    %v1421 = vld [vmem:[%s4 + $0xd8] sm:$0xff]
    %v1422 = vld [vmem:[%s4 + $0xe0] sm:$0xff]
    %v1423 = vld [vmem:[%s4 + $0xe8] sm:$0xff]
    %v1424 = vld [vmem:[%s4 + $0xf0] sm:$0xff]
    %v1425 = vld [vmem:[%s4 + $0xf8] sm:$0xff]
    %v1426 = vld [vmem:[%s4 + $0x100] sm:$0xff]
    %v1427 = vld [vmem:[%s4 + $0x108] sm:$0xff]
    %v1428 = vld [vmem:[%s4 + $0x110] sm:$0xff]
    %v1429 = vld [vmem:[%s4 + $0x118] sm:$0xff]
    %v1430 = vmul.f32 %v1309, %v1394
    %v1431 = vmul.f32 %v1308, %v1395
    %v1432 = vmul.f32 %v1307, %v1396
    %v1433 = vmul.f32 %v1306, %v1397
    %v1434 = vmul.f32 %v1321, %v1398
    %v1435 = vmul.f32 %v1320, %v1399
    %v1436 = vmul.f32 %v1319, %v1400
    %v1437 = vmul.f32 %v1318, %v1401
    %v1438 = vmul.f32 %v1333, %v1402
    %v1439 = vmul.f32 %v1332, %v1403
    %v1440 = vmul.f32 %v1331, %v1404
    %v1441 = vmul.f32 %v1330, %v1405
    %v1442 = vmul.f32 %v1345, %v1406
    %v1443 = vmul.f32 %v1344, %v1407
    %v1444 = vmul.f32 %v1343, %v1408
    %v1445 = vmul.f32 %v1342, %v1409
    %v1446 = vmul.f32 %v1218, %v1410
    %v1447 = vmul.f32 %v1220, %v1411
    %v1448 = vmul.f32 %v1289, %v1412
    %v1449 = vmul.f32 %v1291, %v1413
    %v1450 = vmul.f32 %v1356, %v1414
    %v1451 = vmul.f32 %v1355, %v1415
    %v1452 = vmul.f32 %v1354, %v1416
    %v1453 = vmul.f32 %v1357, %v1417
    %v1454 = vmul.f32 %v1368, %v1418
    %v1455 = vmul.f32 %v1367, %v1419
    %v1456 = vmul.f32 %v1366, %v1420
    %v1457 = vmul.f32 %v1369, %v1421
    %v1458 = vmul.f32 %v1380, %v1422
    %v1459 = vmul.f32 %v1379, %v1423
    %v1460 = vmul.f32 %v1378, %v1424
    %v1461 = vmul.f32 %v1381, %v1425
    %v1462 = vmul.f32 %v1392, %v1426
    %v1463 = vmul.f32 %v1391, %v1427
    %v1464 = vmul.f32 %v1390, %v1428
    %v1465 = vmul.f32 %v1393, %v1429
    %s1466 = scalar_lea.vmem [#allocation6], 32
    %v1467 = vld [vmem:[%s1466] sm:$0xff]
    %s1468 = scalar_lea.vmem %s3, 32
    %v1469 = vld [vmem:[%s1468] sm:$0xff]
    %1471 = vset.pattern.permute.xlu0 0
    %1472 = vperm.xlu0 %1471, %v1469
    %v1473 = vpop.permute.xlu0 %1472
    %v1476 = vsel %vm240, %v1467, 0
    %1478 = vmatprep.subr.mxu0 %v1431
    %1479 = vmatpush1.msra.mxu0 %v1430
    %1480 = vmatprep.subr.mxu0 %v1435
    %1481 = vmatpush1.msra.mxu0 %v1434
    %1482 = vmatprep.subr.mxu0 %v1439
    %1483 = vmatpush1.msra.mxu0 %v1438
    %1484 = vmatprep.subr.mxu0 %v1443
    %1485 = vmatpush1.msra.mxu0 %v1442
    %1486 = vmatprep.subr.mxu0 %v1447
    %1487 = vmatpush1.msra.mxu0 %v1446
    %1488 = vmatprep.subr.mxu0 %v1451
    %1489 = vmatpush1.msra.mxu0 %v1450
    %1490 = vmatprep.subr.mxu0 %v1455
    %1491 = vmatpush1.msra.mxu0 %v1454
    %1492 = vmatprep.subr.mxu0 %v1459
    %1493 = vmatpush1.msra.mxu0 %v1458
    %1494 = vmatprep.subr.mxu0 %v1463
    %1495 = vmatpush1.msra.mxu0 %v1462
    %1496 = vmatprep.subr.mxu0 0.0
    %1497 = vmatpush1.msra.mxu0 0.0
    %1498 = vmatprep.subr.mxu0 0.0
    %1499 = vmatpush1.msra.mxu0 0.0
    %1500 = vmatprep.subr.mxu0 0.0
    %1501 = vmatpush1.msra.mxu0 0.0
    %1502 = vmatprep.subr.mxu0 0.0
    %1503 = vmatpush1.msra.mxu0 0.0
    %1504 = vmatprep.subr.mxu0 0.0
    %1505 = vmatpush1.msra.mxu0 0.0
    %1506 = vmatprep.subr.mxu0 0.0
    %1507 = vmatpush1.msra.mxu0 0.0
    %1508 = vmatprep.subr.mxu0 0.0
    %1509 = vmatpush1.msra.mxu0 0.0
    %1510 = vmatprep.subr.mxu0 0.0
    %1511 = vmatpush1.msra.mxu0 0.0
    %1512 = vmatprep.subr.mxu0 0.0
    %1513 = vmatpush1.msra.mxu0 0.0
    %1514 = vmatprep.subr.mxu0 0.0
    %1515 = vmatpush1.msra.mxu0 0.0
    %1516 = vmatprep.subr.mxu0 0.0
    %1517 = vmatpush1.msra.mxu0 0.0
    %1518 = vmatprep.subr.mxu0 0.0
    %1519 = vmatpush1.msra.mxu0 0.0
    %1520 = vmatprep.subr.mxu0 0.0
    %1521 = vmatpush1.msra.mxu0 0.0
    %1522 = vmatprep.subr.mxu0 0.0
    %1523 = vmatpush1.msra.mxu0 0.0
    %1524 = vmatprep.subr.mxu0 0.0
    %1525 = vmatpush1.msra.mxu0 0.0
    %1526 = vmatprep.subr.mxu0 0.0
    %1527 = vmatpush1.msra.mxu0 0.0
    %1528 = vmatprep.subr.mxu0 0.0
    %1529 = vmatpush1.msra.mxu0 0.0
    %1530 = vmatprep.subr.mxu0 0.0
    %1531 = vmatpush1.msra.mxu0 0.0
    %1532 = vmatprep.subr.mxu0 0.0
    %1533 = vmatpush1.msra.mxu0 0.0
    %1534 = vmatprep.subr.mxu0 0.0
    %1535 = vmatpush1.msra.mxu0 0.0
    %1536 = vmatprep.subr.mxu0 0.0
    %1537 = vmatpush1.msra.mxu0 0.0
    %1538 = vmatprep.subr.mxu0 0.0
    %1539 = vmatpush1.msra.mxu0 0.0
    %1540 = vmatprep.subr.mxu0 0.0
    %1541 = vmatpush1.msra.mxu0 0.0
    %1542 = vmatprep.mubr.f32.mxu0 0.0
    %1543 = vmatmul.mubr.f32.gmra.mrb[0].mxu0 %v1476
    %v1544 = vpop.f32.mrb[0].mxu0
    %v1545 = vadd.f32 %v1473, %v1544
    %v1546 = vpop.f32.mrb[0].mxu0
    %v1547 = vadd.f32 %v1473, %v1546
    %1548 = vdwg.mxu0
    %1549 = vmatprep.subr.mxu0 %v1433
    %1550 = vmatpush1.msra.mxu0 %v1432
    %1551 = vmatprep.subr.mxu0 %v1437
    %1552 = vmatpush1.msra.mxu0 %v1436
    %1553 = vmatprep.subr.mxu0 %v1441
    %1554 = vmatpush1.msra.mxu0 %v1440
    %1555 = vmatprep.subr.mxu0 %v1445
    %1556 = vmatpush1.msra.mxu0 %v1444
    %1557 = vmatprep.subr.mxu0 %v1449
    %1558 = vmatpush1.msra.mxu0 %v1448
    %1559 = vmatprep.subr.mxu0 %v1453
    %1560 = vmatpush1.msra.mxu0 %v1452
    %1561 = vmatprep.subr.mxu0 %v1457
    %1562 = vmatpush1.msra.mxu0 %v1456
    %1563 = vmatprep.subr.mxu0 %v1461
    %1564 = vmatpush1.msra.mxu0 %v1460
    %1565 = vmatprep.subr.mxu0 %v1465
    %1566 = vmatpush1.msra.mxu0 %v1464
    %1567 = vmatprep.subr.mxu0 0.0
    %1568 = vmatpush1.msra.mxu0 0.0
    %1569 = vmatprep.subr.mxu0 0.0
    %1570 = vmatpush1.msra.mxu0 0.0
    %1571 = vmatprep.subr.mxu0 0.0
    %1572 = vmatpush1.msra.mxu0 0.0
    %1573 = vmatprep.subr.mxu0 0.0
    %1574 = vmatpush1.msra.mxu0 0.0
    %1575 = vmatprep.subr.mxu0 0.0
    %1576 = vmatpush1.msra.mxu0 0.0
    %1577 = vmatprep.subr.mxu0 0.0
    %1578 = vmatpush1.msra.mxu0 0.0
    %1579 = vmatprep.subr.mxu0 0.0
    %1580 = vmatpush1.msra.mxu0 0.0
    %1581 = vmatprep.subr.mxu0 0.0
    %1582 = vmatpush1.msra.mxu0 0.0
    %1583 = vmatprep.subr.mxu0 0.0
    %1584 = vmatpush1.msra.mxu0 0.0
    %1585 = vmatprep.subr.mxu0 0.0
    %1586 = vmatpush1.msra.mxu0 0.0
    %1587 = vmatprep.subr.mxu0 0.0
    %1588 = vmatpush1.msra.mxu0 0.0
    %1589 = vmatprep.subr.mxu0 0.0
    %1590 = vmatpush1.msra.mxu0 0.0
    %1591 = vmatprep.subr.mxu0 0.0
    %1592 = vmatpush1.msra.mxu0 0.0
    %1593 = vmatprep.subr.mxu0 0.0
    %1594 = vmatpush1.msra.mxu0 0.0
    %1595 = vmatprep.subr.mxu0 0.0
    %1596 = vmatpush1.msra.mxu0 0.0
    %1597 = vmatprep.subr.mxu0 0.0
    %1598 = vmatpush1.msra.mxu0 0.0
    %1599 = vmatprep.subr.mxu0 0.0
    %1600 = vmatpush1.msra.mxu0 0.0
    %1601 = vmatprep.subr.mxu0 0.0
    %1602 = vmatpush1.msra.mxu0 0.0
    %1603 = vmatprep.subr.mxu0 0.0
    %1604 = vmatpush1.msra.mxu0 0.0
    %1605 = vmatprep.subr.mxu0 0.0
    %1606 = vmatpush1.msra.mxu0 0.0
    %1607 = vmatprep.subr.mxu0 0.0
    %1608 = vmatpush1.msra.mxu0 0.0
    %1609 = vmatprep.subr.mxu0 0.0
    %1610 = vmatpush1.msra.mxu0 0.0
    %1611 = vmatprep.subr.mxu0 0.0
    %1612 = vmatpush1.msra.mxu0 0.0
    %1613 = vmatprep.mubr.f32.mxu0 0.0
    %1614 = vmatmul.mubr.f32.gmra.mrb[0].mxu0 %v1476
    %v1615 = vpop.f32.mrb[0].mxu0
    %v1616 = vadd.f32 %v1473, %v1615
    %v1617 = vpop.f32.mrb[0].mxu0
    %v1618 = vadd.f32 %v1473, %v1617
    %1619 = vdwg.mxu0
    %v1620 = vmax.f32 %v1545, 0.0
    %v1621 = vmax.f32 %v1547, 0.0
    %v1622 = vmax.f32 %v1616, 0.0
    %v1623 = vmax.f32 %v1618, 0.0
    %1624 = vrot.lane.b32.xlu0 %v1620, 17
    %v1625 = vpop.permute.xlu0 %1624
    %1626 = vrot.lane.b32.xlu0 %v1621, 17
    %v1627 = vpop.permute.xlu0 %1626
    %1628 = vrot.lane.b32.xlu0 %v1622, 17
    %v1629 = vpop.permute.xlu0 %1628
    %1630 = vrot.lane.b32.xlu0 %v1623, 17
    %v1631 = vpop.permute.xlu0 %1630
    %v1632 = vsel %vm65, %v1629, %v1631
    %v1633 = vsel %vm65, %v1627, %v1629
    %v1634 = vsel %vm65, %v1625, %v1627
    %v1635 = vsel %vm65, %v1631, %v1625
    %1636 = vrot.lane.b32.xlu0 %v1620, 16
    %v1637 = vpop.permute.xlu0 %1636
    %1638 = vrot.lane.b32.xlu0 %v1621, 16
    %v1639 = vpop.permute.xlu0 %1638
    %1640 = vrot.lane.b32.xlu0 %v1622, 16
    %v1641 = vpop.permute.xlu0 %1640
    %1642 = vrot.lane.b32.xlu0 %v1623, 16
    %v1643 = vpop.permute.xlu0 %1642
    %v1644 = vsel %vm78, %v1641, %v1643
    %v1645 = vsel %vm78, %v1639, %v1641
    %v1646 = vsel %vm78, %v1637, %v1639
    %v1647 = vsel %vm78, %v1643, %v1637
    %1648 = vrot.lane.b32.xlu0 %v1620, 15
    %v1649 = vpop.permute.xlu0 %1648
    %1650 = vrot.lane.b32.xlu0 %v1621, 15
    %v1651 = vpop.permute.xlu0 %1650
    %1652 = vrot.lane.b32.xlu0 %v1622, 15
    %v1653 = vpop.permute.xlu0 %1652
    %1654 = vrot.lane.b32.xlu0 %v1623, 15
    %v1655 = vpop.permute.xlu0 %1654
    %v1656 = vsel %vm91, %v1653, %v1655
    %v1657 = vsel %vm91, %v1651, %v1653
    %v1658 = vsel %vm91, %v1649, %v1651
    %v1659 = vsel %vm91, %v1655, %v1649
    %1660 = vrot.lane.b32.xlu0 %v1620, 1
    %v1661 = vpop.permute.xlu0 %1660
    %1662 = vrot.lane.b32.xlu0 %v1621, 1
    %v1663 = vpop.permute.xlu0 %1662
    %1664 = vrot.lane.b32.xlu0 %v1622, 1
    %v1665 = vpop.permute.xlu0 %1664
    %1666 = vrot.lane.b32.xlu0 %v1623, 1
    %v1667 = vpop.permute.xlu0 %1666
    %v1668 = vsel %vm104, %v1665, %v1667
    %v1669 = vsel %vm104, %v1663, %v1665
    %v1670 = vsel %vm104, %v1661, %v1663
    %v1671 = vsel %vm104, %v1667, %v1661
    %1672 = vrot.lane.b32.xlu0 %v1620, 127
    %v1673 = vpop.permute.xlu0 %1672
    %1674 = vrot.lane.b32.xlu0 %v1621, 127
    %v1675 = vpop.permute.xlu0 %1674
    %1676 = vrot.lane.b32.xlu0 %v1622, 127
    %v1677 = vpop.permute.xlu0 %1676
    %1678 = vrot.lane.b32.xlu0 %v1623, 127
    %v1679 = vpop.permute.xlu0 %1678
    %v1680 = vsel %vm117, %v1677, %v1679
    %v1681 = vsel %vm117, %v1675, %v1677
    %v1682 = vsel %vm117, %v1673, %v1675
    %v1683 = vsel %vm117, %v1679, %v1673
    %1684 = vrot.lane.b32.xlu0 %v1620, 113
    %v1685 = vpop.permute.xlu0 %1684
    %1686 = vrot.lane.b32.xlu0 %v1621, 113
    %v1687 = vpop.permute.xlu0 %1686
    %1688 = vrot.lane.b32.xlu0 %v1622, 113
    %v1689 = vpop.permute.xlu0 %1688
    %1690 = vrot.lane.b32.xlu0 %v1623, 113
    %v1691 = vpop.permute.xlu0 %1690
    %v1692 = vsel %vm130, %v1689, %v1691
    %v1693 = vsel %vm130, %v1687, %v1689
    %v1694 = vsel %vm130, %v1685, %v1687
    %v1695 = vsel %vm130, %v1691, %v1685
    %1696 = vrot.lane.b32.xlu0 %v1620, 112
    %v1697 = vpop.permute.xlu0 %1696
    %1698 = vrot.lane.b32.xlu0 %v1621, 112
    %v1699 = vpop.permute.xlu0 %1698
    %1700 = vrot.lane.b32.xlu0 %v1622, 112
    %v1701 = vpop.permute.xlu0 %1700
    %1702 = vrot.lane.b32.xlu0 %v1623, 112
    %v1703 = vpop.permute.xlu0 %1702
    %v1704 = vsel %vm143, %v1701, %v1703
    %v1705 = vsel %vm143, %v1699, %v1701
    %v1706 = vsel %vm143, %v1697, %v1699
    %v1707 = vsel %vm143, %v1703, %v1697
    %1708 = vrot.lane.b32.xlu0 %v1620, 111
    %v1709 = vpop.permute.xlu0 %1708
    %1710 = vrot.lane.b32.xlu0 %v1621, 111
    %v1711 = vpop.permute.xlu0 %1710
    %1712 = vrot.lane.b32.xlu0 %v1622, 111
    %v1713 = vpop.permute.xlu0 %1712
    %1714 = vrot.lane.b32.xlu0 %v1623, 111
    %v1715 = vpop.permute.xlu0 %1714
    %v1716 = vsel %vm156, %v1713, %v1715
    %v1717 = vsel %vm156, %v1711, %v1713
    %v1718 = vsel %vm156, %v1709, %v1711
    %v1719 = vsel %vm156, %v1715, %v1709
    %v1720 = vmul.f32 %v1635, %v1394
    %v1721 = vmul.f32 %v1634, %v1395
    %v1722 = vmul.f32 %v1633, %v1396
    %v1723 = vmul.f32 %v1632, %v1397
    %v1724 = vmul.f32 %v1647, %v1398
    %v1725 = vmul.f32 %v1646, %v1399
    %v1726 = vmul.f32 %v1645, %v1400
    %v1727 = vmul.f32 %v1644, %v1401
    %v1728 = vmul.f32 %v1659, %v1402
    %v1729 = vmul.f32 %v1658, %v1403
    %v1730 = vmul.f32 %v1657, %v1404
    %v1731 = vmul.f32 %v1656, %v1405
    %v1732 = vmul.f32 %v1671, %v1406
    %v1733 = vmul.f32 %v1670, %v1407
    %v1734 = vmul.f32 %v1669, %v1408
    %v1735 = vmul.f32 %v1668, %v1409
    %v1736 = vmul.f32 %v1620, %v1410
    %v1737 = vmul.f32 %v1621, %v1411
    %v1738 = vmul.f32 %v1622, %v1412
    %v1739 = vmul.f32 %v1623, %v1413
    %v1740 = vmul.f32 %v1682, %v1414
    %v1741 = vmul.f32 %v1681, %v1415
    %v1742 = vmul.f32 %v1680, %v1416
    %v1743 = vmul.f32 %v1683, %v1417
    %v1744 = vmul.f32 %v1694, %v1418
    %v1745 = vmul.f32 %v1693, %v1419
    %v1746 = vmul.f32 %v1692, %v1420
    %v1747 = vmul.f32 %v1695, %v1421
    %v1748 = vmul.f32 %v1706, %v1422
    %v1749 = vmul.f32 %v1705, %v1423
    %v1750 = vmul.f32 %v1704, %v1424
    %v1751 = vmul.f32 %v1707, %v1425
    %v1752 = vmul.f32 %v1718, %v1426
    %v1753 = vmul.f32 %v1717, %v1427
    %v1754 = vmul.f32 %v1716, %v1428
    %v1755 = vmul.f32 %v1719, %v1429
    %s1756 = scalar_lea.vmem [#allocation6], 40
    %v1757 = vld [vmem:[%s1756] sm:$0xff]
    %s1758 = scalar_lea.vmem %s3, 40
    %v1759 = vld [vmem:[%s1758] sm:$0xff]
    %1761 = vset.pattern.permute.xlu0 0
    %1762 = vperm.xlu0 %1761, %v1759
    %v1763 = vpop.permute.xlu0 %1762
    %v1766 = vsel %vm240, %v1757, 0
    %1768 = vmatprep.subr.mxu0 %v1721
    %1769 = vmatpush1.msra.mxu0 %v1720
    %1770 = vmatprep.subr.mxu0 %v1725
    %1771 = vmatpush1.msra.mxu0 %v1724
    %1772 = vmatprep.subr.mxu0 %v1729
    %1773 = vmatpush1.msra.mxu0 %v1728
    %1774 = vmatprep.subr.mxu0 %v1733
    %1775 = vmatpush1.msra.mxu0 %v1732
    %1776 = vmatprep.subr.mxu0 %v1737
    %1777 = vmatpush1.msra.mxu0 %v1736
    %1778 = vmatprep.subr.mxu0 %v1741
    %1779 = vmatpush1.msra.mxu0 %v1740
    %1780 = vmatprep.subr.mxu0 %v1745
    %1781 = vmatpush1.msra.mxu0 %v1744
    %1782 = vmatprep.subr.mxu0 %v1749
    %1783 = vmatpush1.msra.mxu0 %v1748
    %1784 = vmatprep.subr.mxu0 %v1753
    %1785 = vmatpush1.msra.mxu0 %v1752
    %1786 = vmatprep.subr.mxu0 0.0
    %1787 = vmatpush1.msra.mxu0 0.0
    %1788 = vmatprep.subr.mxu0 0.0
    %1789 = vmatpush1.msra.mxu0 0.0
    %1790 = vmatprep.subr.mxu0 0.0
    %1791 = vmatpush1.msra.mxu0 0.0
    %1792 = vmatprep.subr.mxu0 0.0
    %1793 = vmatpush1.msra.mxu0 0.0
    %1794 = vmatprep.subr.mxu0 0.0
    %1795 = vmatpush1.msra.mxu0 0.0
    %1796 = vmatprep.subr.mxu0 0.0
    %1797 = vmatpush1.msra.mxu0 0.0
    %1798 = vmatprep.subr.mxu0 0.0
    %1799 = vmatpush1.msra.mxu0 0.0
    %1800 = vmatprep.subr.mxu0 0.0
    %1801 = vmatpush1.msra.mxu0 0.0
    %1802 = vmatprep.subr.mxu0 0.0
    %1803 = vmatpush1.msra.mxu0 0.0
    %1804 = vmatprep.subr.mxu0 0.0
    %1805 = vmatpush1.msra.mxu0 0.0
    %1806 = vmatprep.subr.mxu0 0.0
    %1807 = vmatpush1.msra.mxu0 0.0
    %1808 = vmatprep.subr.mxu0 0.0
    %1809 = vmatpush1.msra.mxu0 0.0
    %1810 = vmatprep.subr.mxu0 0.0
    %1811 = vmatpush1.msra.mxu0 0.0
    %1812 = vmatprep.subr.mxu0 0.0
    %1813 = vmatpush1.msra.mxu0 0.0
    %1814 = vmatprep.subr.mxu0 0.0
    %1815 = vmatpush1.msra.mxu0 0.0
    %1816 = vmatprep.subr.mxu0 0.0
    %1817 = vmatpush1.msra.mxu0 0.0
    %1818 = vmatprep.subr.mxu0 0.0
    %1819 = vmatpush1.msra.mxu0 0.0
    %1820 = vmatprep.subr.mxu0 0.0
    %1821 = vmatpush1.msra.mxu0 0.0
    %1822 = vmatprep.subr.mxu0 0.0
    %1823 = vmatpush1.msra.mxu0 0.0
    %1824 = vmatprep.subr.mxu0 0.0
    %1825 = vmatpush1.msra.mxu0 0.0
    %1826 = vmatprep.subr.mxu0 0.0
    %1827 = vmatpush1.msra.mxu0 0.0
    %1828 = vmatprep.subr.mxu0 0.0
    %1829 = vmatpush1.msra.mxu0 0.0
    %1830 = vmatprep.subr.mxu0 0.0
    %1831 = vmatpush1.msra.mxu0 0.0
    %1832 = vmatprep.mubr.f32.mxu0 0.0
    %1833 = vmatmul.mubr.f32.gmra.mrb[0].mxu0 %v1766
    %v1834 = vpop.f32.mrb[0].mxu0
    %v1835 = vadd.f32 %v1763, %v1834
    %v1836 = vpop.f32.mrb[0].mxu0
    %v1837 = vadd.f32 %v1763, %v1836
    %1838 = vdwg.mxu0
    %1839 = vmatprep.subr.mxu0 %v1723
    %1840 = vmatpush1.msra.mxu0 %v1722
    %1841 = vmatprep.subr.mxu0 %v1727
    %1842 = vmatpush1.msra.mxu0 %v1726
    %1843 = vmatprep.subr.mxu0 %v1731
    %1844 = vmatpush1.msra.mxu0 %v1730
    %1845 = vmatprep.subr.mxu0 %v1735
    %1846 = vmatpush1.msra.mxu0 %v1734
    %1847 = vmatprep.subr.mxu0 %v1739
    %1848 = vmatpush1.msra.mxu0 %v1738
    %1849 = vmatprep.subr.mxu0 %v1743
    %1850 = vmatpush1.msra.mxu0 %v1742
    %1851 = vmatprep.subr.mxu0 %v1747
    %1852 = vmatpush1.msra.mxu0 %v1746
    %1853 = vmatprep.subr.mxu0 %v1751
    %1854 = vmatpush1.msra.mxu0 %v1750
    %1855 = vmatprep.subr.mxu0 %v1755
    %1856 = vmatpush1.msra.mxu0 %v1754
    %1857 = vmatprep.subr.mxu0 0.0
    %1858 = vmatpush1.msra.mxu0 0.0
    %1859 = vmatprep.subr.mxu0 0.0
    %1860 = vmatpush1.msra.mxu0 0.0
    %1861 = vmatprep.subr.mxu0 0.0
    %1862 = vmatpush1.msra.mxu0 0.0
    %1863 = vmatprep.subr.mxu0 0.0
    %1864 = vmatpush1.msra.mxu0 0.0
    %1865 = vmatprep.subr.mxu0 0.0
    %1866 = vmatpush1.msra.mxu0 0.0
    %1867 = vmatprep.subr.mxu0 0.0
    %1868 = vmatpush1.msra.mxu0 0.0
    %1869 = vmatprep.subr.mxu0 0.0
    %1870 = vmatpush1.msra.mxu0 0.0
    %1871 = vmatprep.subr.mxu0 0.0
    %1872 = vmatpush1.msra.mxu0 0.0
    %1873 = vmatprep.subr.mxu0 0.0
    %1874 = vmatpush1.msra.mxu0 0.0
    %1875 = vmatprep.subr.mxu0 0.0
    %1876 = vmatpush1.msra.mxu0 0.0
    %1877 = vmatprep.subr.mxu0 0.0
    %1878 = vmatpush1.msra.mxu0 0.0
    %1879 = vmatprep.subr.mxu0 0.0
    %1880 = vmatpush1.msra.mxu0 0.0
    %1881 = vmatprep.subr.mxu0 0.0
    %1882 = vmatpush1.msra.mxu0 0.0
    %1883 = vmatprep.subr.mxu0 0.0
    %1884 = vmatpush1.msra.mxu0 0.0
    %1885 = vmatprep.subr.mxu0 0.0
    %1886 = vmatpush1.msra.mxu0 0.0
    %1887 = vmatprep.subr.mxu0 0.0
    %1888 = vmatpush1.msra.mxu0 0.0
    %1889 = vmatprep.subr.mxu0 0.0
    %1890 = vmatpush1.msra.mxu0 0.0
    %1891 = vmatprep.subr.mxu0 0.0
    %1892 = vmatpush1.msra.mxu0 0.0
    %1893 = vmatprep.subr.mxu0 0.0
    %1894 = vmatpush1.msra.mxu0 0.0
    %1895 = vmatprep.subr.mxu0 0.0
    %1896 = vmatpush1.msra.mxu0 0.0
    %1897 = vmatprep.subr.mxu0 0.0
    %1898 = vmatpush1.msra.mxu0 0.0
    %1899 = vmatprep.subr.mxu0 0.0
    %1900 = vmatpush1.msra.mxu0 0.0
    %1901 = vmatprep.subr.mxu0 0.0
    %1902 = vmatpush1.msra.mxu0 0.0
    %1903 = vmatprep.mubr.f32.mxu0 0.0
    %1904 = vmatmul.mubr.f32.gmra.mrb[0].mxu0 %v1766
    %v1905 = vpop.f32.mrb[0].mxu0
    %v1906 = vadd.f32 %v1763, %v1905
    %v1907 = vpop.f32.mrb[0].mxu0
    %v1908 = vadd.f32 %v1763, %v1907
    %1909 = vdwg.mxu0
    %s1910 = sld [smem:[#allocation3 + $0x2]]
    %s1911 = ssub.f32 1.0, %s1910
    %v1912 = vstv %s1911
    %v1913 = vmul.f32 %v1912, %v1835
    %v1914 = vmul.f32 %v1912, %v1837
    %v1915 = vmul.f32 %v1912, %v1906
    %v1916 = vmul.f32 %v1912, %v1908
    %v1917 = vld [vmem:[%s1293] sm:$0xff]
    %v1918 = vld [vmem:[%s1293 + $0x8] sm:$0xff]
    %v1919 = vld [vmem:[%s1293 + $0x10] sm:$0xff]
    %v1920 = vld [vmem:[%s1293 + $0x18] sm:$0xff]
    %v1921 = vstv %s1910
    %v1922 = vmul.f32 %v1921, %v1917
    %v1923 = vmul.f32 %v1921, %v1918
    %v1924 = vmul.f32 %v1921, %v1919
    %v1925 = vmul.f32 %v1921, %v1920
    %v1926 = vadd.f32 %v1913, %v1922
    %v1927 = vadd.f32 %v1914, %v1923
    %v1928 = vadd.f32 %v1915, %v1924
    %v1929 = vadd.f32 %v1916, %v1925
    %1930 = vrot.lane.b32.xlu0 %v1926, 17
    %v1931 = vpop.permute.xlu0 %1930
    %1932 = vrot.lane.b32.xlu0 %v1927, 17
    %v1933 = vpop.permute.xlu0 %1932
    %1934 = vrot.lane.b32.xlu0 %v1928, 17
    %v1935 = vpop.permute.xlu0 %1934
    %1936 = vrot.lane.b32.xlu0 %v1929, 17
    %v1937 = vpop.permute.xlu0 %1936
    %v1938 = vsel %vm65, %v1935, %v1937
    %v1939 = vsel %vm65, %v1933, %v1935
    %v1940 = vsel %vm65, %v1931, %v1933
    %v1941 = vsel %vm65, %v1937, %v1931
    %1942 = vrot.lane.b32.xlu0 %v1926, 16
    %v1943 = vpop.permute.xlu0 %1942
    %1944 = vrot.lane.b32.xlu0 %v1927, 16
    %v1945 = vpop.permute.xlu0 %1944
    %1946 = vrot.lane.b32.xlu0 %v1928, 16
    %v1947 = vpop.permute.xlu0 %1946
    %1948 = vrot.lane.b32.xlu0 %v1929, 16
    %v1949 = vpop.permute.xlu0 %1948
    %v1950 = vsel %vm78, %v1947, %v1949
    %v1951 = vsel %vm78, %v1945, %v1947
    %v1952 = vsel %vm78, %v1943, %v1945
    %v1953 = vsel %vm78, %v1949, %v1943
    %1954 = vrot.lane.b32.xlu0 %v1926, 15
    %v1955 = vpop.permute.xlu0 %1954
    %1956 = vrot.lane.b32.xlu0 %v1927, 15
    %v1957 = vpop.permute.xlu0 %1956
    %1958 = vrot.lane.b32.xlu0 %v1928, 15
    %v1959 = vpop.permute.xlu0 %1958
    %1960 = vrot.lane.b32.xlu0 %v1929, 15
    %v1961 = vpop.permute.xlu0 %1960
    %v1962 = vsel %vm91, %v1959, %v1961
    %v1963 = vsel %vm91, %v1957, %v1959
    %v1964 = vsel %vm91, %v1955, %v1957
    %v1965 = vsel %vm91, %v1961, %v1955
    %1966 = vrot.lane.b32.xlu0 %v1926, 1
    %v1967 = vpop.permute.xlu0 %1966
    %1968 = vrot.lane.b32.xlu0 %v1927, 1
    %v1969 = vpop.permute.xlu0 %1968
    %1970 = vrot.lane.b32.xlu0 %v1928, 1
    %v1971 = vpop.permute.xlu0 %1970
    %1972 = vrot.lane.b32.xlu0 %v1929, 1
    %v1973 = vpop.permute.xlu0 %1972
    %v1974 = vsel %vm104, %v1971, %v1973
    %v1975 = vsel %vm104, %v1969, %v1971
    %v1976 = vsel %vm104, %v1967, %v1969
    %v1977 = vsel %vm104, %v1973, %v1967
    %1978 = vrot.lane.b32.xlu0 %v1926, 127
    %v1979 = vpop.permute.xlu0 %1978
    %1980 = vrot.lane.b32.xlu0 %v1927, 127
    %v1981 = vpop.permute.xlu0 %1980
    %1982 = vrot.lane.b32.xlu0 %v1928, 127
    %v1983 = vpop.permute.xlu0 %1982
    %1984 = vrot.lane.b32.xlu0 %v1929, 127
    %v1985 = vpop.permute.xlu0 %1984
    %v1986 = vsel %vm117, %v1983, %v1985
    %v1987 = vsel %vm117, %v1981, %v1983
    %v1988 = vsel %vm117, %v1979, %v1981
    %v1989 = vsel %vm117, %v1985, %v1979
    %1990 = vrot.lane.b32.xlu0 %v1926, 113
    %v1991 = vpop.permute.xlu0 %1990
    %1992 = vrot.lane.b32.xlu0 %v1927, 113
    %v1993 = vpop.permute.xlu0 %1992
    %1994 = vrot.lane.b32.xlu0 %v1928, 113
    %v1995 = vpop.permute.xlu0 %1994
    %1996 = vrot.lane.b32.xlu0 %v1929, 113
    %v1997 = vpop.permute.xlu0 %1996
    %v1998 = vsel %vm130, %v1995, %v1997
    %v1999 = vsel %vm130, %v1993, %v1995
    %v2000 = vsel %vm130, %v1991, %v1993
    %v2001 = vsel %vm130, %v1997, %v1991
    %2002 = vrot.lane.b32.xlu0 %v1926, 112
    %v2003 = vpop.permute.xlu0 %2002
    %2004 = vrot.lane.b32.xlu0 %v1927, 112
    %v2005 = vpop.permute.xlu0 %2004
    %2006 = vrot.lane.b32.xlu0 %v1928, 112
    %v2007 = vpop.permute.xlu0 %2006
    %2008 = vrot.lane.b32.xlu0 %v1929, 112
    %v2009 = vpop.permute.xlu0 %2008
    %v2010 = vsel %vm143, %v2007, %v2009
    %v2011 = vsel %vm143, %v2005, %v2007
    %v2012 = vsel %vm143, %v2003, %v2005
    %v2013 = vsel %vm143, %v2009, %v2003
    %2014 = vrot.lane.b32.xlu0 %v1926, 111
    %v2015 = vpop.permute.xlu0 %2014
    %2016 = vrot.lane.b32.xlu0 %v1927, 111
    %v2017 = vpop.permute.xlu0 %2016
    %2018 = vrot.lane.b32.xlu0 %v1928, 111
    %v2019 = vpop.permute.xlu0 %2018
    %2020 = vrot.lane.b32.xlu0 %v1929, 111
    %v2021 = vpop.permute.xlu0 %2020
    %v2022 = vsel %vm156, %v2019, %v2021
    %v2023 = vsel %vm156, %v2017, %v2019
    %v2024 = vsel %vm156, %v2015, %v2017
    %v2025 = vsel %vm156, %v2021, %v2015
    %v2026 = vmul.f32 %v1941, %v1394
    %v2027 = vmul.f32 %v1940, %v1395
    %v2028 = vmul.f32 %v1939, %v1396
    %v2029 = vmul.f32 %v1938, %v1397
    %v2030 = vmul.f32 %v1953, %v1398
    %v2031 = vmul.f32 %v1952, %v1399
    %v2032 = vmul.f32 %v1951, %v1400
    %v2033 = vmul.f32 %v1950, %v1401
    %v2034 = vmul.f32 %v1965, %v1402
    %v2035 = vmul.f32 %v1964, %v1403
    %v2036 = vmul.f32 %v1963, %v1404
    %v2037 = vmul.f32 %v1962, %v1405
    %v2038 = vmul.f32 %v1977, %v1406
    %v2039 = vmul.f32 %v1976, %v1407
    %v2040 = vmul.f32 %v1975, %v1408
    %v2041 = vmul.f32 %v1974, %v1409
    %v2042 = vmul.f32 %v1926, %v1410
    %v2043 = vmul.f32 %v1927, %v1411
    %v2044 = vmul.f32 %v1928, %v1412
    %v2045 = vmul.f32 %v1929, %v1413
    %v2046 = vmul.f32 %v1988, %v1414
    %v2047 = vmul.f32 %v1987, %v1415
    %v2048 = vmul.f32 %v1986, %v1416
    %v2049 = vmul.f32 %v1989, %v1417
    %v2050 = vmul.f32 %v2000, %v1418
    %v2051 = vmul.f32 %v1999, %v1419
    %v2052 = vmul.f32 %v1998, %v1420
    %v2053 = vmul.f32 %v2001, %v1421
    %v2054 = vmul.f32 %v2012, %v1422
    %v2055 = vmul.f32 %v2011, %v1423
    %v2056 = vmul.f32 %v2010, %v1424
    %v2057 = vmul.f32 %v2013, %v1425
    %v2058 = vmul.f32 %v2024, %v1426
    %v2059 = vmul.f32 %v2023, %v1427
    %v2060 = vmul.f32 %v2022, %v1428
    %v2061 = vmul.f32 %v2025, %v1429
    %s2062 = scalar_lea.vmem [#allocation6], 80
    %v2063 = vld [vmem:[%s2062] sm:$0xff]
    %s2064 = scalar_lea.vmem %s3, 80
    %v2065 = vld [vmem:[%s2064] sm:$0xff]
    %2067 = vset.pattern.permute.xlu0 0
    %2068 = vperm.xlu0 %2067, %v2065
    %v2069 = vpop.permute.xlu0 %2068
    %v2072 = vsel %vm240, %v2063, 0
    %2074 = vmatprep.subr.mxu0 %v2027
    %2075 = vmatpush1.msra.mxu0 %v2026
    %2076 = vmatprep.subr.mxu0 %v2031
    %2077 = vmatpush1.msra.mxu0 %v2030
    %2078 = vmatprep.subr.mxu0 %v2035
    %2079 = vmatpush1.msra.mxu0 %v2034
    %2080 = vmatprep.subr.mxu0 %v2039
    %2081 = vmatpush1.msra.mxu0 %v2038
    %2082 = vmatprep.subr.mxu0 %v2043
    %2083 = vmatpush1.msra.mxu0 %v2042
    %2084 = vmatprep.subr.mxu0 %v2047
    %2085 = vmatpush1.msra.mxu0 %v2046
    %2086 = vmatprep.subr.mxu0 %v2051
    %2087 = vmatpush1.msra.mxu0 %v2050
    %2088 = vmatprep.subr.mxu0 %v2055
    %2089 = vmatpush1.msra.mxu0 %v2054
    %2090 = vmatprep.subr.mxu0 %v2059
    %2091 = vmatpush1.msra.mxu0 %v2058
    %2092 = vmatprep.subr.mxu0 0.0
    %2093 = vmatpush1.msra.mxu0 0.0
    %2094 = vmatprep.subr.mxu0 0.0
    %2095 = vmatpush1.msra.mxu0 0.0
    %2096 = vmatprep.subr.mxu0 0.0
    %2097 = vmatpush1.msra.mxu0 0.0
    %2098 = vmatprep.subr.mxu0 0.0
    %2099 = vmatpush1.msra.mxu0 0.0
    %2100 = vmatprep.subr.mxu0 0.0
    %2101 = vmatpush1.msra.mxu0 0.0
    %2102 = vmatprep.subr.mxu0 0.0
    %2103 = vmatpush1.msra.mxu0 0.0
    %2104 = vmatprep.subr.mxu0 0.0
    %2105 = vmatpush1.msra.mxu0 0.0
    %2106 = vmatprep.subr.mxu0 0.0
    %2107 = vmatpush1.msra.mxu0 0.0
    %2108 = vmatprep.subr.mxu0 0.0
    %2109 = vmatpush1.msra.mxu0 0.0
    %2110 = vmatprep.subr.mxu0 0.0
    %2111 = vmatpush1.msra.mxu0 0.0
    %2112 = vmatprep.subr.mxu0 0.0
    %2113 = vmatpush1.msra.mxu0 0.0
    %2114 = vmatprep.subr.mxu0 0.0
    %2115 = vmatpush1.msra.mxu0 0.0
    %2116 = vmatprep.subr.mxu0 0.0
    %2117 = vmatpush1.msra.mxu0 0.0
    %2118 = vmatprep.subr.mxu0 0.0
    %2119 = vmatpush1.msra.mxu0 0.0
    %2120 = vmatprep.subr.mxu0 0.0
    %2121 = vmatpush1.msra.mxu0 0.0
    %2122 = vmatprep.subr.mxu0 0.0
    %2123 = vmatpush1.msra.mxu0 0.0
    %2124 = vmatprep.subr.mxu0 0.0
    %2125 = vmatpush1.msra.mxu0 0.0
    %2126 = vmatprep.subr.mxu0 0.0
    %2127 = vmatpush1.msra.mxu0 0.0
    %2128 = vmatprep.subr.mxu0 0.0
    %2129 = vmatpush1.msra.mxu0 0.0
    %2130 = vmatprep.subr.mxu0 0.0
    %2131 = vmatpush1.msra.mxu0 0.0
    %2132 = vmatprep.subr.mxu0 0.0
    %2133 = vmatpush1.msra.mxu0 0.0
    %2134 = vmatprep.subr.mxu0 0.0
    %2135 = vmatpush1.msra.mxu0 0.0
    %2136 = vmatprep.subr.mxu0 0.0
    %2137 = vmatpush1.msra.mxu0 0.0
    %2138 = vmatprep.mubr.f32.mxu0 0.0
    %2139 = vmatmul.mubr.f32.gmra.mrb[0].mxu0 %v2072
    %v2140 = vpop.f32.mrb[0].mxu0
    %v2141 = vadd.f32 %v2069, %v2140
    %v2142 = vpop.f32.mrb[0].mxu0
    %v2143 = vadd.f32 %v2069, %v2142
    %2144 = vdwg.mxu0
    %2145 = vmatprep.subr.mxu0 %v2029
    %2146 = vmatpush1.msra.mxu0 %v2028
    %2147 = vmatprep.subr.mxu0 %v2033
    %2148 = vmatpush1.msra.mxu0 %v2032
    %2149 = vmatprep.subr.mxu0 %v2037
    %2150 = vmatpush1.msra.mxu0 %v2036
    %2151 = vmatprep.subr.mxu0 %v2041
    %2152 = vmatpush1.msra.mxu0 %v2040
    %2153 = vmatprep.subr.mxu0 %v2045
    %2154 = vmatpush1.msra.mxu0 %v2044
    %2155 = vmatprep.subr.mxu0 %v2049
    %2156 = vmatpush1.msra.mxu0 %v2048
    %2157 = vmatprep.subr.mxu0 %v2053
    %2158 = vmatpush1.msra.mxu0 %v2052
    %2159 = vmatprep.subr.mxu0 %v2057
    %2160 = vmatpush1.msra.mxu0 %v2056
    %2161 = vmatprep.subr.mxu0 %v2061
    %2162 = vmatpush1.msra.mxu0 %v2060
    %2163 = vmatprep.subr.mxu0 0.0
    %2164 = vmatpush1.msra.mxu0 0.0
    %2165 = vmatprep.subr.mxu0 0.0
    %2166 = vmatpush1.msra.mxu0 0.0
    %2167 = vmatprep.subr.mxu0 0.0
    %2168 = vmatpush1.msra.mxu0 0.0
    %2169 = vmatprep.subr.mxu0 0.0
    %2170 = vmatpush1.msra.mxu0 0.0
    %2171 = vmatprep.subr.mxu0 0.0
    %2172 = vmatpush1.msra.mxu0 0.0
    %2173 = vmatprep.subr.mxu0 0.0
    %2174 = vmatpush1.msra.mxu0 0.0
    %2175 = vmatprep.subr.mxu0 0.0
    %2176 = vmatpush1.msra.mxu0 0.0
    %2177 = vmatprep.subr.mxu0 0.0
    %2178 = vmatpush1.msra.mxu0 0.0
    %2179 = vmatprep.subr.mxu0 0.0
    %2180 = vmatpush1.msra.mxu0 0.0
    %2181 = vmatprep.subr.mxu0 0.0
    %2182 = vmatpush1.msra.mxu0 0.0
    %2183 = vmatprep.subr.mxu0 0.0
    %2184 = vmatpush1.msra.mxu0 0.0
    %2185 = vmatprep.subr.mxu0 0.0
    %2186 = vmatpush1.msra.mxu0 0.0
    %2187 = vmatprep.subr.mxu0 0.0
    %2188 = vmatpush1.msra.mxu0 0.0
    %2189 = vmatprep.subr.mxu0 0.0
    %2190 = vmatpush1.msra.mxu0 0.0
    %2191 = vmatprep.subr.mxu0 0.0
    %2192 = vmatpush1.msra.mxu0 0.0
    %2193 = vmatprep.subr.mxu0 0.0
    %2194 = vmatpush1.msra.mxu0 0.0
    %2195 = vmatprep.subr.mxu0 0.0
    %2196 = vmatpush1.msra.mxu0 0.0
    %2197 = vmatprep.subr.mxu0 0.0
    %2198 = vmatpush1.msra.mxu0 0.0
    %2199 = vmatprep.subr.mxu0 0.0
    %2200 = vmatpush1.msra.mxu0 0.0
    %2201 = vmatprep.subr.mxu0 0.0
    %2202 = vmatpush1.msra.mxu0 0.0
    %2203 = vmatprep.subr.mxu0 0.0
    %2204 = vmatpush1.msra.mxu0 0.0
    %2205 = vmatprep.subr.mxu0 0.0
    %2206 = vmatpush1.msra.mxu0 0.0
    %2207 = vmatprep.subr.mxu0 0.0
    %2208 = vmatpush1.msra.mxu0 0.0
    %2209 = vmatprep.mubr.f32.mxu0 0.0
    %2210 = vmatmul.mubr.f32.gmra.mrb[0].mxu0 %v2072
    %v2211 = vpop.f32.mrb[0].mxu0
    %v2212 = vadd.f32 %v2069, %v2211
    %v2213 = vpop.f32.mrb[0].mxu0
    %v2214 = vadd.f32 %v2069, %v2213
    %2215 = vdwg.mxu0
    %v2216 = vmax.f32 %v2141, 0.0
    %v2217 = vmax.f32 %v2143, 0.0
    %v2218 = vmax.f32 %v2212, 0.0
    %v2219 = vmax.f32 %v2214, 0.0
    %2220 = vrot.lane.b32.xlu0 %v2216, 17
    %v2221 = vpop.permute.xlu0 %2220
    %2222 = vrot.lane.b32.xlu0 %v2217, 17
    %v2223 = vpop.permute.xlu0 %2222
    %2224 = vrot.lane.b32.xlu0 %v2218, 17
    %v2225 = vpop.permute.xlu0 %2224
    %2226 = vrot.lane.b32.xlu0 %v2219, 17
    %v2227 = vpop.permute.xlu0 %2226
    %v2228 = vsel %vm65, %v2225, %v2227
    %v2229 = vsel %vm65, %v2223, %v2225
    %v2230 = vsel %vm65, %v2221, %v2223
    %v2231 = vsel %vm65, %v2227, %v2221
    %2232 = vrot.lane.b32.xlu0 %v2216, 16
    %v2233 = vpop.permute.xlu0 %2232
    %2234 = vrot.lane.b32.xlu0 %v2217, 16
    %v2235 = vpop.permute.xlu0 %2234
    %2236 = vrot.lane.b32.xlu0 %v2218, 16
    %v2237 = vpop.permute.xlu0 %2236
    %2238 = vrot.lane.b32.xlu0 %v2219, 16
    %v2239 = vpop.permute.xlu0 %2238
    %v2240 = vsel %vm78, %v2237, %v2239
    %v2241 = vsel %vm78, %v2235, %v2237
    %v2242 = vsel %vm78, %v2233, %v2235
    %v2243 = vsel %vm78, %v2239, %v2233
    %2244 = vrot.lane.b32.xlu0 %v2216, 15
    %v2245 = vpop.permute.xlu0 %2244
    %2246 = vrot.lane.b32.xlu0 %v2217, 15
    %v2247 = vpop.permute.xlu0 %2246
    %2248 = vrot.lane.b32.xlu0 %v2218, 15
    %v2249 = vpop.permute.xlu0 %2248
    %2250 = vrot.lane.b32.xlu0 %v2219, 15
    %v2251 = vpop.permute.xlu0 %2250
    %v2252 = vsel %vm91, %v2249, %v2251
    %v2253 = vsel %vm91, %v2247, %v2249
    %v2254 = vsel %vm91, %v2245, %v2247
    %v2255 = vsel %vm91, %v2251, %v2245
    %2256 = vrot.lane.b32.xlu0 %v2216, 1
    %v2257 = vpop.permute.xlu0 %2256
    %2258 = vrot.lane.b32.xlu0 %v2217, 1
    %v2259 = vpop.permute.xlu0 %2258
    %2260 = vrot.lane.b32.xlu0 %v2218, 1
    %v2261 = vpop.permute.xlu0 %2260
    %2262 = vrot.lane.b32.xlu0 %v2219, 1
    %v2263 = vpop.permute.xlu0 %2262
    %v2264 = vsel %vm104, %v2261, %v2263
    %v2265 = vsel %vm104, %v2259, %v2261
    %v2266 = vsel %vm104, %v2257, %v2259
    %v2267 = vsel %vm104, %v2263, %v2257
    %2268 = vrot.lane.b32.xlu0 %v2216, 127
    %v2269 = vpop.permute.xlu0 %2268
    %2270 = vrot.lane.b32.xlu0 %v2217, 127
    %v2271 = vpop.permute.xlu0 %2270
    %2272 = vrot.lane.b32.xlu0 %v2218, 127
    %v2273 = vpop.permute.xlu0 %2272
    %2274 = vrot.lane.b32.xlu0 %v2219, 127
    %v2275 = vpop.permute.xlu0 %2274
    %v2276 = vsel %vm117, %v2273, %v2275
    %v2277 = vsel %vm117, %v2271, %v2273
    %v2278 = vsel %vm117, %v2269, %v2271
    %v2279 = vsel %vm117, %v2275, %v2269
    %2280 = vrot.lane.b32.xlu0 %v2216, 113
    %v2281 = vpop.permute.xlu0 %2280
    %2282 = vrot.lane.b32.xlu0 %v2217, 113
    %v2283 = vpop.permute.xlu0 %2282
    %2284 = vrot.lane.b32.xlu0 %v2218, 113
    %v2285 = vpop.permute.xlu0 %2284
    %2286 = vrot.lane.b32.xlu0 %v2219, 113
    %v2287 = vpop.permute.xlu0 %2286
    %v2288 = vsel %vm130, %v2285, %v2287
    %v2289 = vsel %vm130, %v2283, %v2285
    %v2290 = vsel %vm130, %v2281, %v2283
    %v2291 = vsel %vm130, %v2287, %v2281
    %2292 = vrot.lane.b32.xlu0 %v2216, 112
    %v2293 = vpop.permute.xlu0 %2292
    %2294 = vrot.lane.b32.xlu0 %v2217, 112
    %v2295 = vpop.permute.xlu0 %2294
    %2296 = vrot.lane.b32.xlu0 %v2218, 112
    %v2297 = vpop.permute.xlu0 %2296
    %2298 = vrot.lane.b32.xlu0 %v2219, 112
    %v2299 = vpop.permute.xlu0 %2298
    %v2300 = vsel %vm143, %v2297, %v2299
    %v2301 = vsel %vm143, %v2295, %v2297
    %v2302 = vsel %vm143, %v2293, %v2295
    %v2303 = vsel %vm143, %v2299, %v2293
    %2304 = vrot.lane.b32.xlu0 %v2216, 111
    %v2305 = vpop.permute.xlu0 %2304
    %2306 = vrot.lane.b32.xlu0 %v2217, 111
    %v2307 = vpop.permute.xlu0 %2306
    %2308 = vrot.lane.b32.xlu0 %v2218, 111
    %v2309 = vpop.permute.xlu0 %2308
    %2310 = vrot.lane.b32.xlu0 %v2219, 111
    %v2311 = vpop.permute.xlu0 %2310
    %v2312 = vsel %vm156, %v2309, %v2311
    %v2313 = vsel %vm156, %v2307, %v2309
    %v2314 = vsel %vm156, %v2305, %v2307
    %v2315 = vsel %vm156, %v2311, %v2305
    %v2316 = vmul.f32 %v2231, %v1394
    %v2317 = vmul.f32 %v2230, %v1395
    %v2318 = vmul.f32 %v2229, %v1396
    %v2319 = vmul.f32 %v2228, %v1397
    %v2320 = vmul.f32 %v2243, %v1398
    %v2321 = vmul.f32 %v2242, %v1399
    %v2322 = vmul.f32 %v2241, %v1400
    %v2323 = vmul.f32 %v2240, %v1401
    %v2324 = vmul.f32 %v2255, %v1402
    %v2325 = vmul.f32 %v2254, %v1403
    %v2326 = vmul.f32 %v2253, %v1404
    %v2327 = vmul.f32 %v2252, %v1405
    %v2328 = vmul.f32 %v2267, %v1406
    %v2329 = vmul.f32 %v2266, %v1407
    %v2330 = vmul.f32 %v2265, %v1408
    %v2331 = vmul.f32 %v2264, %v1409
    %v2332 = vmul.f32 %v2216, %v1410
    %v2333 = vmul.f32 %v2217, %v1411
    %v2334 = vmul.f32 %v2218, %v1412
    %v2335 = vmul.f32 %v2219, %v1413
    %v2336 = vmul.f32 %v2278, %v1414
    %v2337 = vmul.f32 %v2277, %v1415
    %v2338 = vmul.f32 %v2276, %v1416
    %v2339 = vmul.f32 %v2279, %v1417
    %v2340 = vmul.f32 %v2290, %v1418
    %v2341 = vmul.f32 %v2289, %v1419
    %v2342 = vmul.f32 %v2288, %v1420
    %v2343 = vmul.f32 %v2291, %v1421
    %v2344 = vmul.f32 %v2302, %v1422
    %v2345 = vmul.f32 %v2301, %v1423
    %v2346 = vmul.f32 %v2300, %v1424
    %v2347 = vmul.f32 %v2303, %v1425
    %v2348 = vmul.f32 %v2314, %v1426
    %v2349 = vmul.f32 %v2313, %v1427
    %v2350 = vmul.f32 %v2312, %v1428
    %v2351 = vmul.f32 %v2315, %v1429
    %s2352 = scalar_lea.vmem [#allocation6], 88
    %v2353 = vld [vmem:[%s2352] sm:$0xff]
    %s2354 = scalar_lea.vmem %s3, 88
    %v2355 = vld [vmem:[%s2354] sm:$0xff]
    %2357 = vset.pattern.permute.xlu0 0
    %2358 = vperm.xlu0 %2357, %v2355
    %v2359 = vpop.permute.xlu0 %2358
    %v2362 = vsel %vm240, %v2353, 0
    %2364 = vmatprep.subr.mxu0 %v2317
    %2365 = vmatpush1.msra.mxu0 %v2316
    %2366 = vmatprep.subr.mxu0 %v2321
    %2367 = vmatpush1.msra.mxu0 %v2320
    %2368 = vmatprep.subr.mxu0 %v2325
    %2369 = vmatpush1.msra.mxu0 %v2324
    %2370 = vmatprep.subr.mxu0 %v2329
    %2371 = vmatpush1.msra.mxu0 %v2328
    %2372 = vmatprep.subr.mxu0 %v2333
    %2373 = vmatpush1.msra.mxu0 %v2332
    %2374 = vmatprep.subr.mxu0 %v2337
    %2375 = vmatpush1.msra.mxu0 %v2336
    %2376 = vmatprep.subr.mxu0 %v2341
    %2377 = vmatpush1.msra.mxu0 %v2340
    %2378 = vmatprep.subr.mxu0 %v2345
    %2379 = vmatpush1.msra.mxu0 %v2344
    %2380 = vmatprep.subr.mxu0 %v2349
    %2381 = vmatpush1.msra.mxu0 %v2348
    %2382 = vmatprep.subr.mxu0 0.0
    %2383 = vmatpush1.msra.mxu0 0.0
    %2384 = vmatprep.subr.mxu0 0.0
    %2385 = vmatpush1.msra.mxu0 0.0
    %2386 = vmatprep.subr.mxu0 0.0
    %2387 = vmatpush1.msra.mxu0 0.0
    %2388 = vmatprep.subr.mxu0 0.0
    %2389 = vmatpush1.msra.mxu0 0.0
    %2390 = vmatprep.subr.mxu0 0.0
    %2391 = vmatpush1.msra.mxu0 0.0
    %2392 = vmatprep.subr.mxu0 0.0
    %2393 = vmatpush1.msra.mxu0 0.0
    %2394 = vmatprep.subr.mxu0 0.0
    %2395 = vmatpush1.msra.mxu0 0.0
    %2396 = vmatprep.subr.mxu0 0.0
    %2397 = vmatpush1.msra.mxu0 0.0
    %2398 = vmatprep.subr.mxu0 0.0
    %2399 = vmatpush1.msra.mxu0 0.0
    %2400 = vmatprep.subr.mxu0 0.0
    %2401 = vmatpush1.msra.mxu0 0.0
    %2402 = vmatprep.subr.mxu0 0.0
    %2403 = vmatpush1.msra.mxu0 0.0
    %2404 = vmatprep.subr.mxu0 0.0
    %2405 = vmatpush1.msra.mxu0 0.0
    %2406 = vmatprep.subr.mxu0 0.0
    %2407 = vmatpush1.msra.mxu0 0.0
    %2408 = vmatprep.subr.mxu0 0.0
    %2409 = vmatpush1.msra.mxu0 0.0
    %2410 = vmatprep.subr.mxu0 0.0
    %2411 = vmatpush1.msra.mxu0 0.0
    %2412 = vmatprep.subr.mxu0 0.0
    %2413 = vmatpush1.msra.mxu0 0.0
    %2414 = vmatprep.subr.mxu0 0.0
    %2415 = vmatpush1.msra.mxu0 0.0
    %2416 = vmatprep.subr.mxu0 0.0
    %2417 = vmatpush1.msra.mxu0 0.0
    %2418 = vmatprep.subr.mxu0 0.0
    %2419 = vmatpush1.msra.mxu0 0.0
    %2420 = vmatprep.subr.mxu0 0.0
    %2421 = vmatpush1.msra.mxu0 0.0
    %2422 = vmatprep.subr.mxu0 0.0
    %2423 = vmatpush1.msra.mxu0 0.0
    %2424 = vmatprep.subr.mxu0 0.0
    %2425 = vmatpush1.msra.mxu0 0.0
    %2426 = vmatprep.subr.mxu0 0.0
    %2427 = vmatpush1.msra.mxu0 0.0
    %2428 = vmatprep.mubr.f32.mxu0 0.0
    %2429 = vmatmul.mubr.f32.gmra.mrb[0].mxu0 %v2362
    %v2430 = vpop.f32.mrb[0].mxu0
    %v2431 = vadd.f32 %v2359, %v2430
    %v2432 = vpop.f32.mrb[0].mxu0
    %v2433 = vadd.f32 %v2359, %v2432
    %2434 = vdwg.mxu0
    %2435 = vmatprep.subr.mxu0 %v2319
    %2436 = vmatpush1.msra.mxu0 %v2318
    %2437 = vmatprep.subr.mxu0 %v2323
    %2438 = vmatpush1.msra.mxu0 %v2322
    %2439 = vmatprep.subr.mxu0 %v2327
    %2440 = vmatpush1.msra.mxu0 %v2326
    %2441 = vmatprep.subr.mxu0 %v2331
    %2442 = vmatpush1.msra.mxu0 %v2330
    %2443 = vmatprep.subr.mxu0 %v2335
    %2444 = vmatpush1.msra.mxu0 %v2334
    %2445 = vmatprep.subr.mxu0 %v2339
    %2446 = vmatpush1.msra.mxu0 %v2338
    %2447 = vmatprep.subr.mxu0 %v2343
    %2448 = vmatpush1.msra.mxu0 %v2342
    %2449 = vmatprep.subr.mxu0 %v2347
    %2450 = vmatpush1.msra.mxu0 %v2346
    %2451 = vmatprep.subr.mxu0 %v2351
    %2452 = vmatpush1.msra.mxu0 %v2350
    %2453 = vmatprep.subr.mxu0 0.0
    %2454 = vmatpush1.msra.mxu0 0.0
    %2455 = vmatprep.subr.mxu0 0.0
    %2456 = vmatpush1.msra.mxu0 0.0
    %2457 = vmatprep.subr.mxu0 0.0
    %2458 = vmatpush1.msra.mxu0 0.0
    %2459 = vmatprep.subr.mxu0 0.0
    %2460 = vmatpush1.msra.mxu0 0.0
    %2461 = vmatprep.subr.mxu0 0.0
    %2462 = vmatpush1.msra.mxu0 0.0
    %2463 = vmatprep.subr.mxu0 0.0
    %2464 = vmatpush1.msra.mxu0 0.0
    %2465 = vmatprep.subr.mxu0 0.0
    %2466 = vmatpush1.msra.mxu0 0.0
    %2467 = vmatprep.subr.mxu0 0.0
    %2468 = vmatpush1.msra.mxu0 0.0
    %2469 = vmatprep.subr.mxu0 0.0
    %2470 = vmatpush1.msra.mxu0 0.0
    %2471 = vmatprep.subr.mxu0 0.0
    %2472 = vmatpush1.msra.mxu0 0.0
    %2473 = vmatprep.subr.mxu0 0.0
    %2474 = vmatpush1.msra.mxu0 0.0
    %2475 = vmatprep.subr.mxu0 0.0
    %2476 = vmatpush1.msra.mxu0 0.0
    %2477 = vmatprep.subr.mxu0 0.0
    %2478 = vmatpush1.msra.mxu0 0.0
    %2479 = vmatprep.subr.mxu0 0.0
    %2480 = vmatpush1.msra.mxu0 0.0
    %2481 = vmatprep.subr.mxu0 0.0
    %2482 = vmatpush1.msra.mxu0 0.0
    %2483 = vmatprep.subr.mxu0 0.0
    %2484 = vmatpush1.msra.mxu0 0.0
    %2485 = vmatprep.subr.mxu0 0.0
    %2486 = vmatpush1.msra.mxu0 0.0
    %2487 = vmatprep.subr.mxu0 0.0
    %2488 = vmatpush1.msra.mxu0 0.0
    %2489 = vmatprep.subr.mxu0 0.0
    %2490 = vmatpush1.msra.mxu0 0.0
    %2491 = vmatprep.subr.mxu0 0.0
    %2492 = vmatpush1.msra.mxu0 0.0
    %2493 = vmatprep.subr.mxu0 0.0
    %2494 = vmatpush1.msra.mxu0 0.0
    %2495 = vmatprep.subr.mxu0 0.0
    %2496 = vmatpush1.msra.mxu0 0.0
    %2497 = vmatprep.subr.mxu0 0.0
    %2498 = vmatpush1.msra.mxu0 0.0
    %2499 = vmatprep.mubr.f32.mxu0 0.0
    %2500 = vmatmul.mubr.f32.gmra.mrb[0].mxu0 %v2362
    %v2501 = vpop.f32.mrb[0].mxu0
    %v2502 = vadd.f32 %v2359, %v2501
    %v2503 = vpop.f32.mrb[0].mxu0
    %v2504 = vadd.f32 %v2359, %v2503
    %2505 = vdwg.mxu0
    %s2506 = sld [smem:[#allocation3 + $0x1]]
    %s2507 = ssub.f32 1.0, %s2506
    %v2508 = vstv %s2507
    %v2509 = vmul.f32 %v2508, %v2431
    %v2510 = vmul.f32 %v2508, %v2433
    %v2511 = vmul.f32 %v2508, %v2502
    %v2512 = vmul.f32 %v2508, %v2504
    %v2513 = vld [vmem:[%s676] sm:$0xff]
    %v2514 = vld [vmem:[%s676 + $0x8] sm:$0xff]
    %v2515 = vld [vmem:[%s676 + $0x10] sm:$0xff]
    %v2516 = vld [vmem:[%s676 + $0x18] sm:$0xff]
    %v2517 = vstv %s2506
    %v2518 = vmul.f32 %v2517, %v2513
    %v2519 = vmul.f32 %v2517, %v2514
    %v2520 = vmul.f32 %v2517, %v2515
    %v2521 = vmul.f32 %v2517, %v2516
    %v2522 = vadd.f32 %v2509, %v2518
    %v2523 = vadd.f32 %v2510, %v2519
    %v2524 = vadd.f32 %v2511, %v2520
    %v2525 = vadd.f32 %v2512, %v2521
    %2526 = vrot.lane.b32.xlu0 %v2522, 17
    %v2527 = vpop.permute.xlu0 %2526
    %2528 = vrot.lane.b32.xlu0 %v2523, 17
    %v2529 = vpop.permute.xlu0 %2528
    %2530 = vrot.lane.b32.xlu0 %v2524, 17
    %v2531 = vpop.permute.xlu0 %2530
    %2532 = vrot.lane.b32.xlu0 %v2525, 17
    %v2533 = vpop.permute.xlu0 %2532
    %v2534 = vsel %vm65, %v2531, %v2533
    %v2535 = vsel %vm65, %v2529, %v2531
    %v2536 = vsel %vm65, %v2527, %v2529
    %v2537 = vsel %vm65, %v2533, %v2527
    %2538 = vrot.lane.b32.xlu0 %v2522, 16
    %v2539 = vpop.permute.xlu0 %2538
    %2540 = vrot.lane.b32.xlu0 %v2523, 16
    %v2541 = vpop.permute.xlu0 %2540
    %2542 = vrot.lane.b32.xlu0 %v2524, 16
    %v2543 = vpop.permute.xlu0 %2542
    %2544 = vrot.lane.b32.xlu0 %v2525, 16
    %v2545 = vpop.permute.xlu0 %2544
    %v2546 = vsel %vm78, %v2543, %v2545
    %v2547 = vsel %vm78, %v2541, %v2543
    %v2548 = vsel %vm78, %v2539, %v2541
    %v2549 = vsel %vm78, %v2545, %v2539
    %2550 = vrot.lane.b32.xlu0 %v2522, 15
    %v2551 = vpop.permute.xlu0 %2550
    %2552 = vrot.lane.b32.xlu0 %v2523, 15
    %v2553 = vpop.permute.xlu0 %2552
    %2554 = vrot.lane.b32.xlu0 %v2524, 15
    %v2555 = vpop.permute.xlu0 %2554
    %2556 = vrot.lane.b32.xlu0 %v2525, 15
    %v2557 = vpop.permute.xlu0 %2556
    %v2558 = vsel %vm91, %v2555, %v2557
    %v2559 = vsel %vm91, %v2553, %v2555
    %v2560 = vsel %vm91, %v2551, %v2553
    %v2561 = vsel %vm91, %v2557, %v2551
    %2562 = vrot.lane.b32.xlu0 %v2522, 1
    %v2563 = vpop.permute.xlu0 %2562
    %2564 = vrot.lane.b32.xlu0 %v2523, 1
    %v2565 = vpop.permute.xlu0 %2564
    %2566 = vrot.lane.b32.xlu0 %v2524, 1
    %v2567 = vpop.permute.xlu0 %2566
    %2568 = vrot.lane.b32.xlu0 %v2525, 1
    %v2569 = vpop.permute.xlu0 %2568
    %v2570 = vsel %vm104, %v2567, %v2569
    %v2571 = vsel %vm104, %v2565, %v2567
    %v2572 = vsel %vm104, %v2563, %v2565
    %v2573 = vsel %vm104, %v2569, %v2563
    %2574 = vrot.lane.b32.xlu0 %v2522, 127
    %v2575 = vpop.permute.xlu0 %2574
    %2576 = vrot.lane.b32.xlu0 %v2523, 127
    %v2577 = vpop.permute.xlu0 %2576
    %2578 = vrot.lane.b32.xlu0 %v2524, 127
    %v2579 = vpop.permute.xlu0 %2578
    %2580 = vrot.lane.b32.xlu0 %v2525, 127
    %v2581 = vpop.permute.xlu0 %2580
    %v2582 = vsel %vm117, %v2579, %v2581
    %v2583 = vsel %vm117, %v2577, %v2579
    %v2584 = vsel %vm117, %v2575, %v2577
    %v2585 = vsel %vm117, %v2581, %v2575
    %2586 = vrot.lane.b32.xlu0 %v2522, 113
    %v2587 = vpop.permute.xlu0 %2586
    %2588 = vrot.lane.b32.xlu0 %v2523, 113
    %v2589 = vpop.permute.xlu0 %2588
    %2590 = vrot.lane.b32.xlu0 %v2524, 113
    %v2591 = vpop.permute.xlu0 %2590
    %2592 = vrot.lane.b32.xlu0 %v2525, 113
    %v2593 = vpop.permute.xlu0 %2592
    %v2594 = vsel %vm130, %v2591, %v2593
    %v2595 = vsel %vm130, %v2589, %v2591
    %v2596 = vsel %vm130, %v2587, %v2589
    %v2597 = vsel %vm130, %v2593, %v2587
    %2598 = vrot.lane.b32.xlu0 %v2522, 112
    %v2599 = vpop.permute.xlu0 %2598
    %2600 = vrot.lane.b32.xlu0 %v2523, 112
    %v2601 = vpop.permute.xlu0 %2600
    %2602 = vrot.lane.b32.xlu0 %v2524, 112
    %v2603 = vpop.permute.xlu0 %2602
    %2604 = vrot.lane.b32.xlu0 %v2525, 112
    %v2605 = vpop.permute.xlu0 %2604
    %v2606 = vsel %vm143, %v2603, %v2605
    %v2607 = vsel %vm143, %v2601, %v2603
    %v2608 = vsel %vm143, %v2599, %v2601
    %v2609 = vsel %vm143, %v2605, %v2599
    %2610 = vrot.lane.b32.xlu0 %v2522, 111
    %v2611 = vpop.permute.xlu0 %2610
    %2612 = vrot.lane.b32.xlu0 %v2523, 111
    %v2613 = vpop.permute.xlu0 %2612
    %2614 = vrot.lane.b32.xlu0 %v2524, 111
    %v2615 = vpop.permute.xlu0 %2614
    %2616 = vrot.lane.b32.xlu0 %v2525, 111
    %v2617 = vpop.permute.xlu0 %2616
    %v2618 = vsel %vm156, %v2615, %v2617
    %v2619 = vsel %vm156, %v2613, %v2615
    %v2620 = vsel %vm156, %v2611, %v2613
    %v2621 = vsel %vm156, %v2617, %v2611
    %v2622 = vmul.f32 %v2537, %v1394
    %v2623 = vmul.f32 %v2536, %v1395
    %v2624 = vmul.f32 %v2535, %v1396
    %v2625 = vmul.f32 %v2534, %v1397
    %v2626 = vmul.f32 %v2549, %v1398
    %v2627 = vmul.f32 %v2548, %v1399
    %v2628 = vmul.f32 %v2547, %v1400
    %v2629 = vmul.f32 %v2546, %v1401
    %v2630 = vmul.f32 %v2561, %v1402
    %v2631 = vmul.f32 %v2560, %v1403
    %v2632 = vmul.f32 %v2559, %v1404
    %v2633 = vmul.f32 %v2558, %v1405
    %v2634 = vmul.f32 %v2573, %v1406
    %v2635 = vmul.f32 %v2572, %v1407
    %v2636 = vmul.f32 %v2571, %v1408
    %v2637 = vmul.f32 %v2570, %v1409
    %v2638 = vmul.f32 %v2522, %v1410
    %v2639 = vmul.f32 %v2523, %v1411
    %v2640 = vmul.f32 %v2524, %v1412
    %v2641 = vmul.f32 %v2525, %v1413
    %v2642 = vmul.f32 %v2584, %v1414
    %v2643 = vmul.f32 %v2583, %v1415
    %v2644 = vmul.f32 %v2582, %v1416
    %v2645 = vmul.f32 %v2585, %v1417
    %v2646 = vmul.f32 %v2596, %v1418
    %v2647 = vmul.f32 %v2595, %v1419
    %v2648 = vmul.f32 %v2594, %v1420
    %v2649 = vmul.f32 %v2597, %v1421
    %v2650 = vmul.f32 %v2608, %v1422
    %v2651 = vmul.f32 %v2607, %v1423
    %v2652 = vmul.f32 %v2606, %v1424
    %v2653 = vmul.f32 %v2609, %v1425
    %v2654 = vmul.f32 %v2620, %v1426
    %v2655 = vmul.f32 %v2619, %v1427
    %v2656 = vmul.f32 %v2618, %v1428
    %v2657 = vmul.f32 %v2621, %v1429
    %s2658 = scalar_lea.vmem [#allocation6], 64
    %v2659 = vld [vmem:[%s2658] sm:$0xff]
    %s2660 = scalar_lea.vmem %s3, 64
    %v2661 = vld [vmem:[%s2660] sm:$0xff]
    %2663 = vset.pattern.permute.xlu0 0
    %2664 = vperm.xlu0 %2663, %v2661
    %v2665 = vpop.permute.xlu0 %2664
    %v2668 = vsel %vm240, %v2659, 0
    %2670 = vmatprep.subr.mxu0 %v2623
    %2671 = vmatpush1.msra.mxu0 %v2622
    %2672 = vmatprep.subr.mxu0 %v2627
    %2673 = vmatpush1.msra.mxu0 %v2626
    %2674 = vmatprep.subr.mxu0 %v2631
    %2675 = vmatpush1.msra.mxu0 %v2630
    %2676 = vmatprep.subr.mxu0 %v2635
    %2677 = vmatpush1.msra.mxu0 %v2634
    %2678 = vmatprep.subr.mxu0 %v2639
    %2679 = vmatpush1.msra.mxu0 %v2638
    %2680 = vmatprep.subr.mxu0 %v2643
    %2681 = vmatpush1.msra.mxu0 %v2642
    %2682 = vmatprep.subr.mxu0 %v2647
    %2683 = vmatpush1.msra.mxu0 %v2646
    %2684 = vmatprep.subr.mxu0 %v2651
    %2685 = vmatpush1.msra.mxu0 %v2650
    %2686 = vmatprep.subr.mxu0 %v2655
    %2687 = vmatpush1.msra.mxu0 %v2654
    %2688 = vmatprep.subr.mxu0 0.0
    %2689 = vmatpush1.msra.mxu0 0.0
    %2690 = vmatprep.subr.mxu0 0.0
    %2691 = vmatpush1.msra.mxu0 0.0
    %2692 = vmatprep.subr.mxu0 0.0
    %2693 = vmatpush1.msra.mxu0 0.0
    %2694 = vmatprep.subr.mxu0 0.0
    %2695 = vmatpush1.msra.mxu0 0.0
    %2696 = vmatprep.subr.mxu0 0.0
    %2697 = vmatpush1.msra.mxu0 0.0
    %2698 = vmatprep.subr.mxu0 0.0
    %2699 = vmatpush1.msra.mxu0 0.0
    %2700 = vmatprep.subr.mxu0 0.0
    %2701 = vmatpush1.msra.mxu0 0.0
    %2702 = vmatprep.subr.mxu0 0.0
    %2703 = vmatpush1.msra.mxu0 0.0
    %2704 = vmatprep.subr.mxu0 0.0
    %2705 = vmatpush1.msra.mxu0 0.0
    %2706 = vmatprep.subr.mxu0 0.0
    %2707 = vmatpush1.msra.mxu0 0.0
    %2708 = vmatprep.subr.mxu0 0.0
    %2709 = vmatpush1.msra.mxu0 0.0
    %2710 = vmatprep.subr.mxu0 0.0
    %2711 = vmatpush1.msra.mxu0 0.0
    %2712 = vmatprep.subr.mxu0 0.0
    %2713 = vmatpush1.msra.mxu0 0.0
    %2714 = vmatprep.subr.mxu0 0.0
    %2715 = vmatpush1.msra.mxu0 0.0
    %2716 = vmatprep.subr.mxu0 0.0
    %2717 = vmatpush1.msra.mxu0 0.0
    %2718 = vmatprep.subr.mxu0 0.0
    %2719 = vmatpush1.msra.mxu0 0.0
    %2720 = vmatprep.subr.mxu0 0.0
    %2721 = vmatpush1.msra.mxu0 0.0
    %2722 = vmatprep.subr.mxu0 0.0
    %2723 = vmatpush1.msra.mxu0 0.0
    %2724 = vmatprep.subr.mxu0 0.0
    %2725 = vmatpush1.msra.mxu0 0.0
    %2726 = vmatprep.subr.mxu0 0.0
    %2727 = vmatpush1.msra.mxu0 0.0
    %2728 = vmatprep.subr.mxu0 0.0
    %2729 = vmatpush1.msra.mxu0 0.0
    %2730 = vmatprep.subr.mxu0 0.0
    %2731 = vmatpush1.msra.mxu0 0.0
    %2732 = vmatprep.subr.mxu0 0.0
    %2733 = vmatpush1.msra.mxu0 0.0
    %2734 = vmatprep.mubr.f32.mxu0 0.0
    %2735 = vmatmul.mubr.f32.gmra.mrb[0].mxu0 %v2668
    %v2736 = vpop.f32.mrb[0].mxu0
    %v2737 = vadd.f32 %v2665, %v2736
    %v2738 = vpop.f32.mrb[0].mxu0
    %v2739 = vadd.f32 %v2665, %v2738
    %2740 = vdwg.mxu0
    %2741 = vmatprep.subr.mxu0 %v2625
    %2742 = vmatpush1.msra.mxu0 %v2624
    %2743 = vmatprep.subr.mxu0 %v2629
    %2744 = vmatpush1.msra.mxu0 %v2628
    %2745 = vmatprep.subr.mxu0 %v2633
    %2746 = vmatpush1.msra.mxu0 %v2632
    %2747 = vmatprep.subr.mxu0 %v2637
    %2748 = vmatpush1.msra.mxu0 %v2636
    %2749 = vmatprep.subr.mxu0 %v2641
    %2750 = vmatpush1.msra.mxu0 %v2640
    %2751 = vmatprep.subr.mxu0 %v2645
    %2752 = vmatpush1.msra.mxu0 %v2644
    %2753 = vmatprep.subr.mxu0 %v2649
    %2754 = vmatpush1.msra.mxu0 %v2648
    %2755 = vmatprep.subr.mxu0 %v2653
    %2756 = vmatpush1.msra.mxu0 %v2652
    %2757 = vmatprep.subr.mxu0 %v2657
    %2758 = vmatpush1.msra.mxu0 %v2656
    %2759 = vmatprep.subr.mxu0 0.0
    %2760 = vmatpush1.msra.mxu0 0.0
    %2761 = vmatprep.subr.mxu0 0.0
    %2762 = vmatpush1.msra.mxu0 0.0
    %2763 = vmatprep.subr.mxu0 0.0
    %2764 = vmatpush1.msra.mxu0 0.0
    %2765 = vmatprep.subr.mxu0 0.0
    %2766 = vmatpush1.msra.mxu0 0.0
    %2767 = vmatprep.subr.mxu0 0.0
    %2768 = vmatpush1.msra.mxu0 0.0
    %2769 = vmatprep.subr.mxu0 0.0
    %2770 = vmatpush1.msra.mxu0 0.0
    %2771 = vmatprep.subr.mxu0 0.0
    %2772 = vmatpush1.msra.mxu0 0.0
    %2773 = vmatprep.subr.mxu0 0.0
    %2774 = vmatpush1.msra.mxu0 0.0
    %2775 = vmatprep.subr.mxu0 0.0
    %2776 = vmatpush1.msra.mxu0 0.0
    %2777 = vmatprep.subr.mxu0 0.0
    %2778 = vmatpush1.msra.mxu0 0.0
    %2779 = vmatprep.subr.mxu0 0.0
    %2780 = vmatpush1.msra.mxu0 0.0
    %2781 = vmatprep.subr.mxu0 0.0
    %2782 = vmatpush1.msra.mxu0 0.0
    %2783 = vmatprep.subr.mxu0 0.0
    %2784 = vmatpush1.msra.mxu0 0.0
    %2785 = vmatprep.subr.mxu0 0.0
    %2786 = vmatpush1.msra.mxu0 0.0
    %2787 = vmatprep.subr.mxu0 0.0
    %2788 = vmatpush1.msra.mxu0 0.0
    %2789 = vmatprep.subr.mxu0 0.0
    %2790 = vmatpush1.msra.mxu0 0.0
    %2791 = vmatprep.subr.mxu0 0.0
    %2792 = vmatpush1.msra.mxu0 0.0
    %2793 = vmatprep.subr.mxu0 0.0
    %2794 = vmatpush1.msra.mxu0 0.0
    %2795 = vmatprep.subr.mxu0 0.0
    %2796 = vmatpush1.msra.mxu0 0.0
    %2797 = vmatprep.subr.mxu0 0.0
    %2798 = vmatpush1.msra.mxu0 0.0
    %2799 = vmatprep.subr.mxu0 0.0
    %2800 = vmatpush1.msra.mxu0 0.0
    %2801 = vmatprep.subr.mxu0 0.0
    %2802 = vmatpush1.msra.mxu0 0.0
    %2803 = vmatprep.subr.mxu0 0.0
    %2804 = vmatpush1.msra.mxu0 0.0
    %2805 = vmatprep.mubr.f32.mxu0 0.0
    %2806 = vmatmul.mubr.f32.gmra.mrb[0].mxu0 %v2668
    %v2807 = vpop.f32.mrb[0].mxu0
    %v2808 = vadd.f32 %v2665, %v2807
    %v2809 = vpop.f32.mrb[0].mxu0
    %v2810 = vadd.f32 %v2665, %v2809
    %2811 = vdwg.mxu0
    %v2812 = vmax.f32 %v2737, 0.0
    %v2813 = vmax.f32 %v2739, 0.0
    %v2814 = vmax.f32 %v2808, 0.0
    %v2815 = vmax.f32 %v2810, 0.0
    %2816 = vrot.lane.b32.xlu0 %v2812, 17
    %v2817 = vpop.permute.xlu0 %2816
    %2818 = vrot.lane.b32.xlu0 %v2813, 17
    %v2819 = vpop.permute.xlu0 %2818
    %2820 = vrot.lane.b32.xlu0 %v2814, 17
    %v2821 = vpop.permute.xlu0 %2820
    %2822 = vrot.lane.b32.xlu0 %v2815, 17
    %v2823 = vpop.permute.xlu0 %2822
    %v2824 = vsel %vm65, %v2821, %v2823
    %v2825 = vsel %vm65, %v2819, %v2821
    %v2826 = vsel %vm65, %v2817, %v2819
    %v2827 = vsel %vm65, %v2823, %v2817
    %2828 = vrot.lane.b32.xlu0 %v2812, 16
    %v2829 = vpop.permute.xlu0 %2828
    %2830 = vrot.lane.b32.xlu0 %v2813, 16
    %v2831 = vpop.permute.xlu0 %2830
    %2832 = vrot.lane.b32.xlu0 %v2814, 16
    %v2833 = vpop.permute.xlu0 %2832
    %2834 = vrot.lane.b32.xlu0 %v2815, 16
    %v2835 = vpop.permute.xlu0 %2834
    %v2836 = vsel %vm78, %v2833, %v2835
    %v2837 = vsel %vm78, %v2831, %v2833
    %v2838 = vsel %vm78, %v2829, %v2831
    %v2839 = vsel %vm78, %v2835, %v2829
    %2840 = vrot.lane.b32.xlu0 %v2812, 15
    %v2841 = vpop.permute.xlu0 %2840
    %2842 = vrot.lane.b32.xlu0 %v2813, 15
    %v2843 = vpop.permute.xlu0 %2842
    %2844 = vrot.lane.b32.xlu0 %v2814, 15
    %v2845 = vpop.permute.xlu0 %2844
    %2846 = vrot.lane.b32.xlu0 %v2815, 15
    %v2847 = vpop.permute.xlu0 %2846
    %v2848 = vsel %vm91, %v2845, %v2847
    %v2849 = vsel %vm91, %v2843, %v2845
    %v2850 = vsel %vm91, %v2841, %v2843
    %v2851 = vsel %vm91, %v2847, %v2841
    %2852 = vrot.lane.b32.xlu0 %v2812, 1
    %v2853 = vpop.permute.xlu0 %2852
    %2854 = vrot.lane.b32.xlu0 %v2813, 1
    %v2855 = vpop.permute.xlu0 %2854
    %2856 = vrot.lane.b32.xlu0 %v2814, 1
    %v2857 = vpop.permute.xlu0 %2856
    %2858 = vrot.lane.b32.xlu0 %v2815, 1
    %v2859 = vpop.permute.xlu0 %2858
    %v2860 = vsel %vm104, %v2857, %v2859
    %v2861 = vsel %vm104, %v2855, %v2857
    %v2862 = vsel %vm104, %v2853, %v2855
    %v2863 = vsel %vm104, %v2859, %v2853
    %2864 = vrot.lane.b32.xlu0 %v2812, 127
    %v2865 = vpop.permute.xlu0 %2864
    %2866 = vrot.lane.b32.xlu0 %v2813, 127
    %v2867 = vpop.permute.xlu0 %2866
    %2868 = vrot.lane.b32.xlu0 %v2814, 127
    %v2869 = vpop.permute.xlu0 %2868
    %2870 = vrot.lane.b32.xlu0 %v2815, 127
    %v2871 = vpop.permute.xlu0 %2870
    %v2872 = vsel %vm117, %v2869, %v2871
    %v2873 = vsel %vm117, %v2867, %v2869
    %v2874 = vsel %vm117, %v2865, %v2867
    %v2875 = vsel %vm117, %v2871, %v2865
    %2876 = vrot.lane.b32.xlu0 %v2812, 113
    %v2877 = vpop.permute.xlu0 %2876
    %2878 = vrot.lane.b32.xlu0 %v2813, 113
    %v2879 = vpop.permute.xlu0 %2878
    %2880 = vrot.lane.b32.xlu0 %v2814, 113
    %v2881 = vpop.permute.xlu0 %2880
    %2882 = vrot.lane.b32.xlu0 %v2815, 113
    %v2883 = vpop.permute.xlu0 %2882
    %v2884 = vsel %vm130, %v2881, %v2883
    %v2885 = vsel %vm130, %v2879, %v2881
    %v2886 = vsel %vm130, %v2877, %v2879
    %v2887 = vsel %vm130, %v2883, %v2877
    %2888 = vrot.lane.b32.xlu0 %v2812, 112
    %v2889 = vpop.permute.xlu0 %2888
    %2890 = vrot.lane.b32.xlu0 %v2813, 112
    %v2891 = vpop.permute.xlu0 %2890
    %2892 = vrot.lane.b32.xlu0 %v2814, 112
    %v2893 = vpop.permute.xlu0 %2892
    %2894 = vrot.lane.b32.xlu0 %v2815, 112
    %v2895 = vpop.permute.xlu0 %2894
    %v2896 = vsel %vm143, %v2893, %v2895
    %v2897 = vsel %vm143, %v2891, %v2893
    %v2898 = vsel %vm143, %v2889, %v2891
    %v2899 = vsel %vm143, %v2895, %v2889
    %2900 = vrot.lane.b32.xlu0 %v2812, 111
    %v2901 = vpop.permute.xlu0 %2900
    %2902 = vrot.lane.b32.xlu0 %v2813, 111
    %v2903 = vpop.permute.xlu0 %2902
    %2904 = vrot.lane.b32.xlu0 %v2814, 111
    %v2905 = vpop.permute.xlu0 %2904
    %2906 = vrot.lane.b32.xlu0 %v2815, 111
    %v2907 = vpop.permute.xlu0 %2906
    %v2908 = vsel %vm156, %v2905, %v2907
    %v2909 = vsel %vm156, %v2903, %v2905
    %v2910 = vsel %vm156, %v2901, %v2903
    %v2911 = vsel %vm156, %v2907, %v2901
    %v2912 = vmul.f32 %v2827, %v1394
    %v2913 = vmul.f32 %v2826, %v1395
    %v2914 = vmul.f32 %v2825, %v1396
    %v2915 = vmul.f32 %v2824, %v1397
    %v2916 = vmul.f32 %v2839, %v1398
    %v2917 = vmul.f32 %v2838, %v1399
    %v2918 = vmul.f32 %v2837, %v1400
    %v2919 = vmul.f32 %v2836, %v1401
    %v2920 = vmul.f32 %v2851, %v1402
    %v2921 = vmul.f32 %v2850, %v1403
    %v2922 = vmul.f32 %v2849, %v1404
    %v2923 = vmul.f32 %v2848, %v1405
    %v2924 = vmul.f32 %v2863, %v1406
    %v2925 = vmul.f32 %v2862, %v1407
    %v2926 = vmul.f32 %v2861, %v1408
    %v2927 = vmul.f32 %v2860, %v1409
    %v2928 = vmul.f32 %v2812, %v1410
    %v2929 = vmul.f32 %v2813, %v1411
    %v2930 = vmul.f32 %v2814, %v1412
    %v2931 = vmul.f32 %v2815, %v1413
    %v2932 = vmul.f32 %v2874, %v1414
    %v2933 = vmul.f32 %v2873, %v1415
    %v2934 = vmul.f32 %v2872, %v1416
    %v2935 = vmul.f32 %v2875, %v1417
    %v2936 = vmul.f32 %v2886, %v1418
    %v2937 = vmul.f32 %v2885, %v1419
    %v2938 = vmul.f32 %v2884, %v1420
    %v2939 = vmul.f32 %v2887, %v1421
    %v2940 = vmul.f32 %v2898, %v1422
    %v2941 = vmul.f32 %v2897, %v1423
    %v2942 = vmul.f32 %v2896, %v1424
    %v2943 = vmul.f32 %v2899, %v1425
    %v2944 = vmul.f32 %v2910, %v1426
    %v2945 = vmul.f32 %v2909, %v1427
    %v2946 = vmul.f32 %v2908, %v1428
    %v2947 = vmul.f32 %v2911, %v1429
    %s2948 = scalar_lea.vmem [#allocation6], 72
    %v2949 = vld [vmem:[%s2948] sm:$0xff]
    %s2950 = scalar_lea.vmem %s3, 72
    %v2951 = vld [vmem:[%s2950] sm:$0xff]
    %2953 = vset.pattern.permute.xlu0 0
    %2954 = vperm.xlu0 %2953, %v2951
    %v2955 = vpop.permute.xlu0 %2954
    %v2958 = vsel %vm240, %v2949, 0
    %2960 = vmatprep.subr.mxu0 %v2913
    %2961 = vmatpush1.msra.mxu0 %v2912
    %2962 = vmatprep.subr.mxu0 %v2917
    %2963 = vmatpush1.msra.mxu0 %v2916
    %2964 = vmatprep.subr.mxu0 %v2921
    %2965 = vmatpush1.msra.mxu0 %v2920
    %2966 = vmatprep.subr.mxu0 %v2925
    %2967 = vmatpush1.msra.mxu0 %v2924
    %2968 = vmatprep.subr.mxu0 %v2929
    %2969 = vmatpush1.msra.mxu0 %v2928
    %2970 = vmatprep.subr.mxu0 %v2933
    %2971 = vmatpush1.msra.mxu0 %v2932
    %2972 = vmatprep.subr.mxu0 %v2937
    %2973 = vmatpush1.msra.mxu0 %v2936
    %2974 = vmatprep.subr.mxu0 %v2941
    %2975 = vmatpush1.msra.mxu0 %v2940
    %2976 = vmatprep.subr.mxu0 %v2945
    %2977 = vmatpush1.msra.mxu0 %v2944
    %2978 = vmatprep.subr.mxu0 0.0
    %2979 = vmatpush1.msra.mxu0 0.0
    %2980 = vmatprep.subr.mxu0 0.0
    %2981 = vmatpush1.msra.mxu0 0.0
    %2982 = vmatprep.subr.mxu0 0.0
    %2983 = vmatpush1.msra.mxu0 0.0
    %2984 = vmatprep.subr.mxu0 0.0
    %2985 = vmatpush1.msra.mxu0 0.0
    %2986 = vmatprep.subr.mxu0 0.0
    %2987 = vmatpush1.msra.mxu0 0.0
    %2988 = vmatprep.subr.mxu0 0.0
    %2989 = vmatpush1.msra.mxu0 0.0
    %2990 = vmatprep.subr.mxu0 0.0
    %2991 = vmatpush1.msra.mxu0 0.0
    %2992 = vmatprep.subr.mxu0 0.0
    %2993 = vmatpush1.msra.mxu0 0.0
    %2994 = vmatprep.subr.mxu0 0.0
    %2995 = vmatpush1.msra.mxu0 0.0
    %2996 = vmatprep.subr.mxu0 0.0
    %2997 = vmatpush1.msra.mxu0 0.0
    %2998 = vmatprep.subr.mxu0 0.0
    %2999 = vmatpush1.msra.mxu0 0.0
    %3000 = vmatprep.subr.mxu0 0.0
    %3001 = vmatpush1.msra.mxu0 0.0
    %3002 = vmatprep.subr.mxu0 0.0
    %3003 = vmatpush1.msra.mxu0 0.0
    %3004 = vmatprep.subr.mxu0 0.0
    %3005 = vmatpush1.msra.mxu0 0.0
    %3006 = vmatprep.subr.mxu0 0.0
    %3007 = vmatpush1.msra.mxu0 0.0
    %3008 = vmatprep.subr.mxu0 0.0
    %3009 = vmatpush1.msra.mxu0 0.0
    %3010 = vmatprep.subr.mxu0 0.0
    %3011 = vmatpush1.msra.mxu0 0.0
    %3012 = vmatprep.subr.mxu0 0.0
    %3013 = vmatpush1.msra.mxu0 0.0
    %3014 = vmatprep.subr.mxu0 0.0
    %3015 = vmatpush1.msra.mxu0 0.0
    %3016 = vmatprep.subr.mxu0 0.0
    %3017 = vmatpush1.msra.mxu0 0.0
    %3018 = vmatprep.subr.mxu0 0.0
    %3019 = vmatpush1.msra.mxu0 0.0
    %3020 = vmatprep.subr.mxu0 0.0
    %3021 = vmatpush1.msra.mxu0 0.0
    %3022 = vmatprep.subr.mxu0 0.0
    %3023 = vmatpush1.msra.mxu0 0.0
    %3024 = vmatprep.mubr.f32.mxu0 0.0
    %3025 = vmatmul.mubr.f32.gmra.mrb[0].mxu0 %v2958
    %v3026 = vpop.f32.mrb[0].mxu0
    %v3027 = vadd.f32 %v2955, %v3026
    %v3028 = vpop.f32.mrb[0].mxu0
    %v3029 = vadd.f32 %v2955, %v3028
    %3030 = vdwg.mxu0
    %3031 = vmatprep.subr.mxu0 %v2915
    %3032 = vmatpush1.msra.mxu0 %v2914
    %3033 = vmatprep.subr.mxu0 %v2919
    %3034 = vmatpush1.msra.mxu0 %v2918
    %3035 = vmatprep.subr.mxu0 %v2923
    %3036 = vmatpush1.msra.mxu0 %v2922
    %3037 = vmatprep.subr.mxu0 %v2927
    %3038 = vmatpush1.msra.mxu0 %v2926
    %3039 = vmatprep.subr.mxu0 %v2931
    %3040 = vmatpush1.msra.mxu0 %v2930
    %3041 = vmatprep.subr.mxu0 %v2935
    %3042 = vmatpush1.msra.mxu0 %v2934
    %3043 = vmatprep.subr.mxu0 %v2939
    %3044 = vmatpush1.msra.mxu0 %v2938
    %3045 = vmatprep.subr.mxu0 %v2943
    %3046 = vmatpush1.msra.mxu0 %v2942
    %3047 = vmatprep.subr.mxu0 %v2947
    %3048 = vmatpush1.msra.mxu0 %v2946
    %3049 = vmatprep.subr.mxu0 0.0
    %3050 = vmatpush1.msra.mxu0 0.0
    %3051 = vmatprep.subr.mxu0 0.0
    %3052 = vmatpush1.msra.mxu0 0.0
    %3053 = vmatprep.subr.mxu0 0.0
    %3054 = vmatpush1.msra.mxu0 0.0
    %3055 = vmatprep.subr.mxu0 0.0
    %3056 = vmatpush1.msra.mxu0 0.0
    %3057 = vmatprep.subr.mxu0 0.0
    %3058 = vmatpush1.msra.mxu0 0.0
    %3059 = vmatprep.subr.mxu0 0.0
    %3060 = vmatpush1.msra.mxu0 0.0
    %3061 = vmatprep.subr.mxu0 0.0
    %3062 = vmatpush1.msra.mxu0 0.0
    %3063 = vmatprep.subr.mxu0 0.0
    %3064 = vmatpush1.msra.mxu0 0.0
    %3065 = vmatprep.subr.mxu0 0.0
    %3066 = vmatpush1.msra.mxu0 0.0
    %3067 = vmatprep.subr.mxu0 0.0
    %3068 = vmatpush1.msra.mxu0 0.0
    %3069 = vmatprep.subr.mxu0 0.0
    %3070 = vmatpush1.msra.mxu0 0.0
    %3071 = vmatprep.subr.mxu0 0.0
    %3072 = vmatpush1.msra.mxu0 0.0
    %3073 = vmatprep.subr.mxu0 0.0
    %3074 = vmatpush1.msra.mxu0 0.0
    %3075 = vmatprep.subr.mxu0 0.0
    %3076 = vmatpush1.msra.mxu0 0.0
    %3077 = vmatprep.subr.mxu0 0.0
    %3078 = vmatpush1.msra.mxu0 0.0
    %3079 = vmatprep.subr.mxu0 0.0
    %3080 = vmatpush1.msra.mxu0 0.0
    %3081 = vmatprep.subr.mxu0 0.0
    %3082 = vmatpush1.msra.mxu0 0.0
    %3083 = vmatprep.subr.mxu0 0.0
    %3084 = vmatpush1.msra.mxu0 0.0
    %3085 = vmatprep.subr.mxu0 0.0
    %3086 = vmatpush1.msra.mxu0 0.0
    %3087 = vmatprep.subr.mxu0 0.0
    %3088 = vmatpush1.msra.mxu0 0.0
    %3089 = vmatprep.subr.mxu0 0.0
    %3090 = vmatpush1.msra.mxu0 0.0
    %3091 = vmatprep.subr.mxu0 0.0
    %3092 = vmatpush1.msra.mxu0 0.0
    %3093 = vmatprep.subr.mxu0 0.0
    %3094 = vmatpush1.msra.mxu0 0.0
    %3095 = vmatprep.mubr.f32.mxu0 0.0
    %3096 = vmatmul.mubr.f32.gmra.mrb[0].mxu0 %v2958
    %v3097 = vpop.f32.mrb[0].mxu0
    %v3098 = vadd.f32 %v2955, %v3097
    %v3099 = vpop.f32.mrb[0].mxu0
    %v3100 = vadd.f32 %v2955, %v3099
    %3101 = vdwg.mxu0
    %s3102 = sld [smem:[#allocation3]]
    %s3103 = ssub.f32 1.0, %s3102
    %v3104 = vstv %s3103
    %v3105 = vmul.f32 %v3104, %v3027
    %v3106 = vmul.f32 %v3104, %v3029
    %v3107 = vmul.f32 %v3104, %v3098
    %v3108 = vmul.f32 %v3104, %v3100
    %v3109 = vld [vmem:[#allocation2] sm:$0xff]
    %v3110 = vld [vmem:[#allocation2 + $0x8] sm:$0xff]
    %v3111 = vld [vmem:[#allocation2 + $0x10] sm:$0xff]
    %v3112 = vld [vmem:[#allocation2 + $0x18] sm:$0xff]
    %v3113 = vstv %s3102
    %v3114 = vmul.f32 %v3113, %v3109
    %v3115 = vmul.f32 %v3113, %v3110
    %v3116 = vmul.f32 %v3113, %v3111
    %v3117 = vmul.f32 %v3113, %v3112
    %v3118 = vadd.f32 %v3105, %v3114
    %v3119 = vadd.f32 %v3106, %v3115
    %v3120 = vadd.f32 %v3107, %v3116
    %v3121 = vadd.f32 %v3108, %v3117
    %3122 = vrot.lane.b32.xlu0 %v3118, 17
    %v3123 = vpop.permute.xlu0 %3122
    %3124 = vrot.lane.b32.xlu0 %v3119, 17
    %v3125 = vpop.permute.xlu0 %3124
    %3126 = vrot.lane.b32.xlu0 %v3120, 17
    %v3127 = vpop.permute.xlu0 %3126
    %3128 = vrot.lane.b32.xlu0 %v3121, 17
    %v3129 = vpop.permute.xlu0 %3128
    %v3130 = vsel %vm65, %v3127, %v3129
    %v3131 = vsel %vm65, %v3125, %v3127
    %v3132 = vsel %vm65, %v3123, %v3125
    %v3133 = vsel %vm65, %v3129, %v3123
    %3134 = vrot.lane.b32.xlu0 %v3118, 16
    %v3135 = vpop.permute.xlu0 %3134
    %3136 = vrot.lane.b32.xlu0 %v3119, 16
    %v3137 = vpop.permute.xlu0 %3136
    %3138 = vrot.lane.b32.xlu0 %v3120, 16
    %v3139 = vpop.permute.xlu0 %3138
    %3140 = vrot.lane.b32.xlu0 %v3121, 16
    %v3141 = vpop.permute.xlu0 %3140
    %v3142 = vsel %vm78, %v3139, %v3141
    %v3143 = vsel %vm78, %v3137, %v3139
    %v3144 = vsel %vm78, %v3135, %v3137
    %v3145 = vsel %vm78, %v3141, %v3135
    %3146 = vrot.lane.b32.xlu0 %v3118, 15
    %v3147 = vpop.permute.xlu0 %3146
    %3148 = vrot.lane.b32.xlu0 %v3119, 15
    %v3149 = vpop.permute.xlu0 %3148
    %3150 = vrot.lane.b32.xlu0 %v3120, 15
    %v3151 = vpop.permute.xlu0 %3150
    %3152 = vrot.lane.b32.xlu0 %v3121, 15
    %v3153 = vpop.permute.xlu0 %3152
    %v3154 = vsel %vm91, %v3151, %v3153
    %v3155 = vsel %vm91, %v3149, %v3151
    %v3156 = vsel %vm91, %v3147, %v3149
    %v3157 = vsel %vm91, %v3153, %v3147
    %3158 = vrot.lane.b32.xlu0 %v3118, 1
    %v3159 = vpop.permute.xlu0 %3158
    %3160 = vrot.lane.b32.xlu0 %v3119, 1
    %v3161 = vpop.permute.xlu0 %3160
    %3162 = vrot.lane.b32.xlu0 %v3120, 1
    %v3163 = vpop.permute.xlu0 %3162
    %3164 = vrot.lane.b32.xlu0 %v3121, 1
    %v3165 = vpop.permute.xlu0 %3164
    %v3166 = vsel %vm104, %v3163, %v3165
    %v3167 = vsel %vm104, %v3161, %v3163
    %v3168 = vsel %vm104, %v3159, %v3161
    %v3169 = vsel %vm104, %v3165, %v3159
    %3170 = vrot.lane.b32.xlu0 %v3118, 127
    %v3171 = vpop.permute.xlu0 %3170
    %3172 = vrot.lane.b32.xlu0 %v3119, 127
    %v3173 = vpop.permute.xlu0 %3172
    %3174 = vrot.lane.b32.xlu0 %v3120, 127
    %v3175 = vpop.permute.xlu0 %3174
    %3176 = vrot.lane.b32.xlu0 %v3121, 127
    %v3177 = vpop.permute.xlu0 %3176
    %v3178 = vsel %vm117, %v3175, %v3177
    %v3179 = vsel %vm117, %v3173, %v3175
    %v3180 = vsel %vm117, %v3171, %v3173
    %v3181 = vsel %vm117, %v3177, %v3171
    %3182 = vrot.lane.b32.xlu0 %v3118, 113
    %v3183 = vpop.permute.xlu0 %3182
    %3184 = vrot.lane.b32.xlu0 %v3119, 113
    %v3185 = vpop.permute.xlu0 %3184
    %3186 = vrot.lane.b32.xlu0 %v3120, 113
    %v3187 = vpop.permute.xlu0 %3186
    %3188 = vrot.lane.b32.xlu0 %v3121, 113
    %v3189 = vpop.permute.xlu0 %3188
    %v3190 = vsel %vm130, %v3187, %v3189
    %v3191 = vsel %vm130, %v3185, %v3187
    %v3192 = vsel %vm130, %v3183, %v3185
    %v3193 = vsel %vm130, %v3189, %v3183
    %3194 = vrot.lane.b32.xlu0 %v3118, 112
    %v3195 = vpop.permute.xlu0 %3194
    %3196 = vrot.lane.b32.xlu0 %v3119, 112
    %v3197 = vpop.permute.xlu0 %3196
    %3198 = vrot.lane.b32.xlu0 %v3120, 112
    %v3199 = vpop.permute.xlu0 %3198
    %3200 = vrot.lane.b32.xlu0 %v3121, 112
    %v3201 = vpop.permute.xlu0 %3200
    %v3202 = vsel %vm143, %v3199, %v3201
    %v3203 = vsel %vm143, %v3197, %v3199
    %v3204 = vsel %vm143, %v3195, %v3197
    %v3205 = vsel %vm143, %v3201, %v3195
    %3206 = vrot.lane.b32.xlu0 %v3118, 111
    %v3207 = vpop.permute.xlu0 %3206
    %3208 = vrot.lane.b32.xlu0 %v3119, 111
    %v3209 = vpop.permute.xlu0 %3208
    %3210 = vrot.lane.b32.xlu0 %v3120, 111
    %v3211 = vpop.permute.xlu0 %3210
    %3212 = vrot.lane.b32.xlu0 %v3121, 111
    %v3213 = vpop.permute.xlu0 %3212
    %v3214 = vsel %vm156, %v3211, %v3213
    %v3215 = vsel %vm156, %v3209, %v3211
    %v3216 = vsel %vm156, %v3207, %v3209
    %v3217 = vsel %vm156, %v3213, %v3207
    %v3218 = vmul.f32 %v3133, %v1394
    %v3219 = vmul.f32 %v3132, %v1395
    %v3220 = vmul.f32 %v3131, %v1396
    %v3221 = vmul.f32 %v3130, %v1397
    %v3222 = vmul.f32 %v3145, %v1398
    %v3223 = vmul.f32 %v3144, %v1399
    %v3224 = vmul.f32 %v3143, %v1400
    %v3225 = vmul.f32 %v3142, %v1401
    %v3226 = vmul.f32 %v3157, %v1402
    %v3227 = vmul.f32 %v3156, %v1403
    %v3228 = vmul.f32 %v3155, %v1404
    %v3229 = vmul.f32 %v3154, %v1405
    %v3230 = vmul.f32 %v3169, %v1406
    %v3231 = vmul.f32 %v3168, %v1407
    %v3232 = vmul.f32 %v3167, %v1408
    %v3233 = vmul.f32 %v3166, %v1409
    %v3234 = vmul.f32 %v3118, %v1410
    %v3235 = vmul.f32 %v3119, %v1411
    %v3236 = vmul.f32 %v3120, %v1412
    %v3237 = vmul.f32 %v3121, %v1413
    %v3238 = vmul.f32 %v3180, %v1414
    %v3239 = vmul.f32 %v3179, %v1415
    %v3240 = vmul.f32 %v3178, %v1416
    %v3241 = vmul.f32 %v3181, %v1417
    %v3242 = vmul.f32 %v3192, %v1418
    %v3243 = vmul.f32 %v3191, %v1419
    %v3244 = vmul.f32 %v3190, %v1420
    %v3245 = vmul.f32 %v3193, %v1421
    %v3246 = vmul.f32 %v3204, %v1422
    %v3247 = vmul.f32 %v3203, %v1423
    %v3248 = vmul.f32 %v3202, %v1424
    %v3249 = vmul.f32 %v3205, %v1425
    %v3250 = vmul.f32 %v3216, %v1426
    %v3251 = vmul.f32 %v3215, %v1427
    %v3252 = vmul.f32 %v3214, %v1428
    %v3253 = vmul.f32 %v3217, %v1429
    %s3254 = scalar_lea.vmem [#allocation6], 48
    %v3255 = vld [vmem:[%s3254] sm:$0xff]
    %s3256 = scalar_lea.vmem %s3, 48
    %v3257 = vld [vmem:[%s3256] sm:$0xff]
    %3259 = vset.pattern.permute.xlu0 0
    %3260 = vperm.xlu0 %3259, %v3257
    %v3261 = vpop.permute.xlu0 %3260
    %v3264 = vsel %vm240, %v3255, 0
    %3266 = vmatprep.subr.mxu0 %v3219
    %3267 = vmatpush1.msra.mxu0 %v3218
    %3268 = vmatprep.subr.mxu0 %v3223
    %3269 = vmatpush1.msra.mxu0 %v3222
    %3270 = vmatprep.subr.mxu0 %v3227
    %3271 = vmatpush1.msra.mxu0 %v3226
    %3272 = vmatprep.subr.mxu0 %v3231
    %3273 = vmatpush1.msra.mxu0 %v3230
    %3274 = vmatprep.subr.mxu0 %v3235
    %3275 = vmatpush1.msra.mxu0 %v3234
    %3276 = vmatprep.subr.mxu0 %v3239
    %3277 = vmatpush1.msra.mxu0 %v3238
    %3278 = vmatprep.subr.mxu0 %v3243
    %3279 = vmatpush1.msra.mxu0 %v3242
    %3280 = vmatprep.subr.mxu0 %v3247
    %3281 = vmatpush1.msra.mxu0 %v3246
    %3282 = vmatprep.subr.mxu0 %v3251
    %3283 = vmatpush1.msra.mxu0 %v3250
    %3284 = vmatprep.subr.mxu0 0.0
    %3285 = vmatpush1.msra.mxu0 0.0
    %3286 = vmatprep.subr.mxu0 0.0
    %3287 = vmatpush1.msra.mxu0 0.0
    %3288 = vmatprep.subr.mxu0 0.0
    %3289 = vmatpush1.msra.mxu0 0.0
    %3290 = vmatprep.subr.mxu0 0.0
    %3291 = vmatpush1.msra.mxu0 0.0
    %3292 = vmatprep.subr.mxu0 0.0
    %3293 = vmatpush1.msra.mxu0 0.0
    %3294 = vmatprep.subr.mxu0 0.0
    %3295 = vmatpush1.msra.mxu0 0.0
    %3296 = vmatprep.subr.mxu0 0.0
    %3297 = vmatpush1.msra.mxu0 0.0
    %3298 = vmatprep.subr.mxu0 0.0
    %3299 = vmatpush1.msra.mxu0 0.0
    %3300 = vmatprep.subr.mxu0 0.0
    %3301 = vmatpush1.msra.mxu0 0.0
    %3302 = vmatprep.subr.mxu0 0.0
    %3303 = vmatpush1.msra.mxu0 0.0
    %3304 = vmatprep.subr.mxu0 0.0
    %3305 = vmatpush1.msra.mxu0 0.0
    %3306 = vmatprep.subr.mxu0 0.0
    %3307 = vmatpush1.msra.mxu0 0.0
    %3308 = vmatprep.subr.mxu0 0.0
    %3309 = vmatpush1.msra.mxu0 0.0
    %3310 = vmatprep.subr.mxu0 0.0
    %3311 = vmatpush1.msra.mxu0 0.0
    %3312 = vmatprep.subr.mxu0 0.0
    %3313 = vmatpush1.msra.mxu0 0.0
    %3314 = vmatprep.subr.mxu0 0.0
    %3315 = vmatpush1.msra.mxu0 0.0
    %3316 = vmatprep.subr.mxu0 0.0
    %3317 = vmatpush1.msra.mxu0 0.0
    %3318 = vmatprep.subr.mxu0 0.0
    %3319 = vmatpush1.msra.mxu0 0.0
    %3320 = vmatprep.subr.mxu0 0.0
    %3321 = vmatpush1.msra.mxu0 0.0
    %3322 = vmatprep.subr.mxu0 0.0
    %3323 = vmatpush1.msra.mxu0 0.0
    %3324 = vmatprep.subr.mxu0 0.0
    %3325 = vmatpush1.msra.mxu0 0.0
    %3326 = vmatprep.subr.mxu0 0.0
    %3327 = vmatpush1.msra.mxu0 0.0
    %3328 = vmatprep.subr.mxu0 0.0
    %3329 = vmatpush1.msra.mxu0 0.0
    %3330 = vmatprep.mubr.f32.mxu0 0.0
    %3331 = vmatmul.mubr.f32.gmra.mrb[0].mxu0 %v3264
    %v3332 = vpop.f32.mrb[0].mxu0
    %v3333 = vadd.f32 %v3261, %v3332
    %v3334 = vpop.f32.mrb[0].mxu0
    %v3335 = vadd.f32 %v3261, %v3334
    %3336 = vdwg.mxu0
    %3337 = vmatprep.subr.mxu0 %v3221
    %3338 = vmatpush1.msra.mxu0 %v3220
    %3339 = vmatprep.subr.mxu0 %v3225
    %3340 = vmatpush1.msra.mxu0 %v3224
    %3341 = vmatprep.subr.mxu0 %v3229
    %3342 = vmatpush1.msra.mxu0 %v3228
    %3343 = vmatprep.subr.mxu0 %v3233
    %3344 = vmatpush1.msra.mxu0 %v3232
    %3345 = vmatprep.subr.mxu0 %v3237
    %3346 = vmatpush1.msra.mxu0 %v3236
    %3347 = vmatprep.subr.mxu0 %v3241
    %3348 = vmatpush1.msra.mxu0 %v3240
    %3349 = vmatprep.subr.mxu0 %v3245
    %3350 = vmatpush1.msra.mxu0 %v3244
    %3351 = vmatprep.subr.mxu0 %v3249
    %3352 = vmatpush1.msra.mxu0 %v3248
    %3353 = vmatprep.subr.mxu0 %v3253
    %3354 = vmatpush1.msra.mxu0 %v3252
    %3355 = vmatprep.subr.mxu0 0.0
    %3356 = vmatpush1.msra.mxu0 0.0
    %3357 = vmatprep.subr.mxu0 0.0
    %3358 = vmatpush1.msra.mxu0 0.0
    %3359 = vmatprep.subr.mxu0 0.0
    %3360 = vmatpush1.msra.mxu0 0.0
    %3361 = vmatprep.subr.mxu0 0.0
    %3362 = vmatpush1.msra.mxu0 0.0
    %3363 = vmatprep.subr.mxu0 0.0
    %3364 = vmatpush1.msra.mxu0 0.0
    %3365 = vmatprep.subr.mxu0 0.0
    %3366 = vmatpush1.msra.mxu0 0.0
    %3367 = vmatprep.subr.mxu0 0.0
    %3368 = vmatpush1.msra.mxu0 0.0
    %3369 = vmatprep.subr.mxu0 0.0
    %3370 = vmatpush1.msra.mxu0 0.0
    %3371 = vmatprep.subr.mxu0 0.0
    %3372 = vmatpush1.msra.mxu0 0.0
    %3373 = vmatprep.subr.mxu0 0.0
    %3374 = vmatpush1.msra.mxu0 0.0
    %3375 = vmatprep.subr.mxu0 0.0
    %3376 = vmatpush1.msra.mxu0 0.0
    %3377 = vmatprep.subr.mxu0 0.0
    %3378 = vmatpush1.msra.mxu0 0.0
    %3379 = vmatprep.subr.mxu0 0.0
    %3380 = vmatpush1.msra.mxu0 0.0
    %3381 = vmatprep.subr.mxu0 0.0
    %3382 = vmatpush1.msra.mxu0 0.0
    %3383 = vmatprep.subr.mxu0 0.0
    %3384 = vmatpush1.msra.mxu0 0.0
    %3385 = vmatprep.subr.mxu0 0.0
    %3386 = vmatpush1.msra.mxu0 0.0
    %3387 = vmatprep.subr.mxu0 0.0
    %3388 = vmatpush1.msra.mxu0 0.0
    %3389 = vmatprep.subr.mxu0 0.0
    %3390 = vmatpush1.msra.mxu0 0.0
    %3391 = vmatprep.subr.mxu0 0.0
    %3392 = vmatpush1.msra.mxu0 0.0
    %3393 = vmatprep.subr.mxu0 0.0
    %3394 = vmatpush1.msra.mxu0 0.0
    %3395 = vmatprep.subr.mxu0 0.0
    %3396 = vmatpush1.msra.mxu0 0.0
    %3397 = vmatprep.subr.mxu0 0.0
    %3398 = vmatpush1.msra.mxu0 0.0
    %3399 = vmatprep.subr.mxu0 0.0
    %3400 = vmatpush1.msra.mxu0 0.0
    %3401 = vmatprep.mubr.f32.mxu0 0.0
    %3402 = vmatmul.mubr.f32.gmra.mrb[0].mxu0 %v3264
    %v3403 = vpop.f32.mrb[0].mxu0
    %v3404 = vadd.f32 %v3261, %v3403
    %v3405 = vpop.f32.mrb[0].mxu0
    %v3406 = vadd.f32 %v3261, %v3405
    %3407 = vdwg.mxu0
    %v3408 = vmax.f32 %v3333, 0.0
    %v3409 = vmax.f32 %v3335, 0.0
    %v3410 = vmax.f32 %v3404, 0.0
    %v3411 = vmax.f32 %v3406, 0.0
    %3412 = vrot.lane.b32.xlu0 %v3408, 17
    %v3413 = vpop.permute.xlu0 %3412
    %3414 = vrot.lane.b32.xlu0 %v3409, 17
    %v3415 = vpop.permute.xlu0 %3414
    %3416 = vrot.lane.b32.xlu0 %v3410, 17
    %v3417 = vpop.permute.xlu0 %3416
    %3418 = vrot.lane.b32.xlu0 %v3411, 17
    %v3419 = vpop.permute.xlu0 %3418
    %v3420 = vsel %vm65, %v3417, %v3419
    %v3421 = vsel %vm65, %v3415, %v3417
    %v3422 = vsel %vm65, %v3413, %v3415
    %v3423 = vsel %vm65, %v3419, %v3413
    %3424 = vrot.lane.b32.xlu0 %v3408, 16
    %v3425 = vpop.permute.xlu0 %3424
    %3426 = vrot.lane.b32.xlu0 %v3409, 16
    %v3427 = vpop.permute.xlu0 %3426
    %3428 = vrot.lane.b32.xlu0 %v3410, 16
    %v3429 = vpop.permute.xlu0 %3428
    %3430 = vrot.lane.b32.xlu0 %v3411, 16
    %v3431 = vpop.permute.xlu0 %3430
    %v3432 = vsel %vm78, %v3429, %v3431
    %v3433 = vsel %vm78, %v3427, %v3429
    %v3434 = vsel %vm78, %v3425, %v3427
    %v3435 = vsel %vm78, %v3431, %v3425
    %3436 = vrot.lane.b32.xlu0 %v3408, 15
    %v3437 = vpop.permute.xlu0 %3436
    %3438 = vrot.lane.b32.xlu0 %v3409, 15
    %v3439 = vpop.permute.xlu0 %3438
    %3440 = vrot.lane.b32.xlu0 %v3410, 15
    %v3441 = vpop.permute.xlu0 %3440
    %3442 = vrot.lane.b32.xlu0 %v3411, 15
    %v3443 = vpop.permute.xlu0 %3442
    %v3444 = vsel %vm91, %v3441, %v3443
    %v3445 = vsel %vm91, %v3439, %v3441
    %v3446 = vsel %vm91, %v3437, %v3439
    %v3447 = vsel %vm91, %v3443, %v3437
    %3448 = vrot.lane.b32.xlu0 %v3408, 1
    %v3449 = vpop.permute.xlu0 %3448
    %3450 = vrot.lane.b32.xlu0 %v3409, 1
    %v3451 = vpop.permute.xlu0 %3450
    %3452 = vrot.lane.b32.xlu0 %v3410, 1
    %v3453 = vpop.permute.xlu0 %3452
    %3454 = vrot.lane.b32.xlu0 %v3411, 1
    %v3455 = vpop.permute.xlu0 %3454
    %v3456 = vsel %vm104, %v3453, %v3455
    %v3457 = vsel %vm104, %v3451, %v3453
    %v3458 = vsel %vm104, %v3449, %v3451
    %v3459 = vsel %vm104, %v3455, %v3449
    %3460 = vrot.lane.b32.xlu0 %v3408, 127
    %v3461 = vpop.permute.xlu0 %3460
    %3462 = vrot.lane.b32.xlu0 %v3409, 127
    %v3463 = vpop.permute.xlu0 %3462
    %3464 = vrot.lane.b32.xlu0 %v3410, 127
    %v3465 = vpop.permute.xlu0 %3464
    %3466 = vrot.lane.b32.xlu0 %v3411, 127
    %v3467 = vpop.permute.xlu0 %3466
    %v3468 = vsel %vm117, %v3465, %v3467
    %v3469 = vsel %vm117, %v3463, %v3465
    %v3470 = vsel %vm117, %v3461, %v3463
    %v3471 = vsel %vm117, %v3467, %v3461
    %3472 = vrot.lane.b32.xlu0 %v3408, 113
    %v3473 = vpop.permute.xlu0 %3472
    %3474 = vrot.lane.b32.xlu0 %v3409, 113
    %v3475 = vpop.permute.xlu0 %3474
    %3476 = vrot.lane.b32.xlu0 %v3410, 113
    %v3477 = vpop.permute.xlu0 %3476
    %3478 = vrot.lane.b32.xlu0 %v3411, 113
    %v3479 = vpop.permute.xlu0 %3478
    %v3480 = vsel %vm130, %v3477, %v3479
    %v3481 = vsel %vm130, %v3475, %v3477
    %v3482 = vsel %vm130, %v3473, %v3475
    %v3483 = vsel %vm130, %v3479, %v3473
    %3484 = vrot.lane.b32.xlu0 %v3408, 112
    %v3485 = vpop.permute.xlu0 %3484
    %3486 = vrot.lane.b32.xlu0 %v3409, 112
    %v3487 = vpop.permute.xlu0 %3486
    %3488 = vrot.lane.b32.xlu0 %v3410, 112
    %v3489 = vpop.permute.xlu0 %3488
    %3490 = vrot.lane.b32.xlu0 %v3411, 112
    %v3491 = vpop.permute.xlu0 %3490
    %v3492 = vsel %vm143, %v3489, %v3491
    %v3493 = vsel %vm143, %v3487, %v3489
    %v3494 = vsel %vm143, %v3485, %v3487
    %v3495 = vsel %vm143, %v3491, %v3485
    %3496 = vrot.lane.b32.xlu0 %v3408, 111
    %v3497 = vpop.permute.xlu0 %3496
    %3498 = vrot.lane.b32.xlu0 %v3409, 111
    %v3499 = vpop.permute.xlu0 %3498
    %3500 = vrot.lane.b32.xlu0 %v3410, 111
    %v3501 = vpop.permute.xlu0 %3500
    %3502 = vrot.lane.b32.xlu0 %v3411, 111
    %v3503 = vpop.permute.xlu0 %3502
    %v3504 = vsel %vm156, %v3501, %v3503
    %v3505 = vsel %vm156, %v3499, %v3501
    %v3506 = vsel %vm156, %v3497, %v3499
    %v3507 = vsel %vm156, %v3503, %v3497
    %v3508 = vmul.f32 %v3423, %v1394
    %v3509 = vmul.f32 %v3422, %v1395
    %v3510 = vmul.f32 %v3421, %v1396
    %v3511 = vmul.f32 %v3420, %v1397
    %v3512 = vmul.f32 %v3435, %v1398
    %v3513 = vmul.f32 %v3434, %v1399
    %v3514 = vmul.f32 %v3433, %v1400
    %v3515 = vmul.f32 %v3432, %v1401
    %v3516 = vmul.f32 %v3447, %v1402
    %v3517 = vmul.f32 %v3446, %v1403
    %v3518 = vmul.f32 %v3445, %v1404
    %v3519 = vmul.f32 %v3444, %v1405
    %v3520 = vmul.f32 %v3459, %v1406
    %v3521 = vmul.f32 %v3458, %v1407
    %v3522 = vmul.f32 %v3457, %v1408
    %v3523 = vmul.f32 %v3456, %v1409
    %v3524 = vmul.f32 %v3408, %v1410
    %v3525 = vmul.f32 %v3409, %v1411
    %v3526 = vmul.f32 %v3410, %v1412
    %v3527 = vmul.f32 %v3411, %v1413
    %v3528 = vmul.f32 %v3470, %v1414
    %v3529 = vmul.f32 %v3469, %v1415
    %v3530 = vmul.f32 %v3468, %v1416
    %v3531 = vmul.f32 %v3471, %v1417
    %v3532 = vmul.f32 %v3482, %v1418
    %v3533 = vmul.f32 %v3481, %v1419
    %v3534 = vmul.f32 %v3480, %v1420
    %v3535 = vmul.f32 %v3483, %v1421
    %v3536 = vmul.f32 %v3494, %v1422
    %v3537 = vmul.f32 %v3493, %v1423
    %v3538 = vmul.f32 %v3492, %v1424
    %v3539 = vmul.f32 %v3495, %v1425
    %v3540 = vmul.f32 %v3506, %v1426
    %v3541 = vmul.f32 %v3505, %v1427
    %v3542 = vmul.f32 %v3504, %v1428
    %v3543 = vmul.f32 %v3507, %v1429
    %s3544 = scalar_lea.vmem [#allocation6], 56
    %v3545 = vld [vmem:[%s3544] sm:$0xff]
    %s3546 = scalar_lea.vmem %s3, 56
    %v3547 = vld [vmem:[%s3546] sm:$0xff]
    %3549 = vset.pattern.permute.xlu0 0
    %3550 = vperm.xlu0 %3549, %v3547
    %v3551 = vpop.permute.xlu0 %3550
    %v3554 = vsel %vm240, %v3545, 0
    %3556 = vmatprep.subr.mxu0 %v3509
    %3557 = vmatpush1.msra.mxu0 %v3508
    %3558 = vmatprep.subr.mxu0 %v3513
    %3559 = vmatpush1.msra.mxu0 %v3512
    %3560 = vmatprep.subr.mxu0 %v3517
    %3561 = vmatpush1.msra.mxu0 %v3516
    %3562 = vmatprep.subr.mxu0 %v3521
    %3563 = vmatpush1.msra.mxu0 %v3520
    %3564 = vmatprep.subr.mxu0 %v3525
    %3565 = vmatpush1.msra.mxu0 %v3524
    %3566 = vmatprep.subr.mxu0 %v3529
    %3567 = vmatpush1.msra.mxu0 %v3528
    %3568 = vmatprep.subr.mxu0 %v3533
    %3569 = vmatpush1.msra.mxu0 %v3532
    %3570 = vmatprep.subr.mxu0 %v3537
    %3571 = vmatpush1.msra.mxu0 %v3536
    %3572 = vmatprep.subr.mxu0 %v3541
    %3573 = vmatpush1.msra.mxu0 %v3540
    %3574 = vmatprep.subr.mxu0 0.0
    %3575 = vmatpush1.msra.mxu0 0.0
    %3576 = vmatprep.subr.mxu0 0.0
    %3577 = vmatpush1.msra.mxu0 0.0
    %3578 = vmatprep.subr.mxu0 0.0
    %3579 = vmatpush1.msra.mxu0 0.0
    %3580 = vmatprep.subr.mxu0 0.0
    %3581 = vmatpush1.msra.mxu0 0.0
    %3582 = vmatprep.subr.mxu0 0.0
    %3583 = vmatpush1.msra.mxu0 0.0
    %3584 = vmatprep.subr.mxu0 0.0
    %3585 = vmatpush1.msra.mxu0 0.0
    %3586 = vmatprep.subr.mxu0 0.0
    %3587 = vmatpush1.msra.mxu0 0.0
    %3588 = vmatprep.subr.mxu0 0.0
    %3589 = vmatpush1.msra.mxu0 0.0
    %3590 = vmatprep.subr.mxu0 0.0
    %3591 = vmatpush1.msra.mxu0 0.0
    %3592 = vmatprep.subr.mxu0 0.0
    %3593 = vmatpush1.msra.mxu0 0.0
    %3594 = vmatprep.subr.mxu0 0.0
    %3595 = vmatpush1.msra.mxu0 0.0
    %3596 = vmatprep.subr.mxu0 0.0
    %3597 = vmatpush1.msra.mxu0 0.0
    %3598 = vmatprep.subr.mxu0 0.0
    %3599 = vmatpush1.msra.mxu0 0.0
    %3600 = vmatprep.subr.mxu0 0.0
    %3601 = vmatpush1.msra.mxu0 0.0
    %3602 = vmatprep.subr.mxu0 0.0
    %3603 = vmatpush1.msra.mxu0 0.0
    %3604 = vmatprep.subr.mxu0 0.0
    %3605 = vmatpush1.msra.mxu0 0.0
    %3606 = vmatprep.subr.mxu0 0.0
    %3607 = vmatpush1.msra.mxu0 0.0
    %3608 = vmatprep.subr.mxu0 0.0
    %3609 = vmatpush1.msra.mxu0 0.0
    %3610 = vmatprep.subr.mxu0 0.0
    %3611 = vmatpush1.msra.mxu0 0.0
    %3612 = vmatprep.subr.mxu0 0.0
    %3613 = vmatpush1.msra.mxu0 0.0
    %3614 = vmatprep.subr.mxu0 0.0
    %3615 = vmatpush1.msra.mxu0 0.0
    %3616 = vmatprep.subr.mxu0 0.0
    %3617 = vmatpush1.msra.mxu0 0.0
    %3618 = vmatprep.subr.mxu0 0.0
    %3619 = vmatpush1.msra.mxu0 0.0
    %3620 = vmatprep.mubr.f32.mxu0 0.0
    %3621 = vmatmul.mubr.f32.gmra.mrb[0].mxu0 %v3554
    %v3622 = vpop.f32.mrb[0].mxu0
    %v3623 = vadd.f32 %v3551, %v3622
    %v3624 = vpop.f32.mrb[0].mxu0
    %v3625 = vadd.f32 %v3551, %v3624
    %3626 = vdwg.mxu0
    %3627 = vmatprep.subr.mxu0 %v3511
    %3628 = vmatpush1.msra.mxu0 %v3510
    %3629 = vmatprep.subr.mxu0 %v3515
    %3630 = vmatpush1.msra.mxu0 %v3514
    %3631 = vmatprep.subr.mxu0 %v3519
    %3632 = vmatpush1.msra.mxu0 %v3518
    %3633 = vmatprep.subr.mxu0 %v3523
    %3634 = vmatpush1.msra.mxu0 %v3522
    %3635 = vmatprep.subr.mxu0 %v3527
    %3636 = vmatpush1.msra.mxu0 %v3526
    %3637 = vmatprep.subr.mxu0 %v3531
    %3638 = vmatpush1.msra.mxu0 %v3530
    %3639 = vmatprep.subr.mxu0 %v3535
    %3640 = vmatpush1.msra.mxu0 %v3534
    %3641 = vmatprep.subr.mxu0 %v3539
    %3642 = vmatpush1.msra.mxu0 %v3538
    %3643 = vmatprep.subr.mxu0 %v3543
    %3644 = vmatpush1.msra.mxu0 %v3542
    %3645 = vmatprep.subr.mxu0 0.0
    %3646 = vmatpush1.msra.mxu0 0.0
    %3647 = vmatprep.subr.mxu0 0.0
    %3648 = vmatpush1.msra.mxu0 0.0
    %3649 = vmatprep.subr.mxu0 0.0
    %3650 = vmatpush1.msra.mxu0 0.0
    %3651 = vmatprep.subr.mxu0 0.0
    %3652 = vmatpush1.msra.mxu0 0.0
    %3653 = vmatprep.subr.mxu0 0.0
    %3654 = vmatpush1.msra.mxu0 0.0
    %3655 = vmatprep.subr.mxu0 0.0
    %3656 = vmatpush1.msra.mxu0 0.0
    %3657 = vmatprep.subr.mxu0 0.0
    %3658 = vmatpush1.msra.mxu0 0.0
    %3659 = vmatprep.subr.mxu0 0.0
    %3660 = vmatpush1.msra.mxu0 0.0
    %3661 = vmatprep.subr.mxu0 0.0
    %3662 = vmatpush1.msra.mxu0 0.0
    %3663 = vmatprep.subr.mxu0 0.0
    %3664 = vmatpush1.msra.mxu0 0.0
    %3665 = vmatprep.subr.mxu0 0.0
    %3666 = vmatpush1.msra.mxu0 0.0
    %3667 = vmatprep.subr.mxu0 0.0
    %3668 = vmatpush1.msra.mxu0 0.0
    %3669 = vmatprep.subr.mxu0 0.0
    %3670 = vmatpush1.msra.mxu0 0.0
    %3671 = vmatprep.subr.mxu0 0.0
    %3672 = vmatpush1.msra.mxu0 0.0
    %3673 = vmatprep.subr.mxu0 0.0
    %3674 = vmatpush1.msra.mxu0 0.0
    %3675 = vmatprep.subr.mxu0 0.0
    %3676 = vmatpush1.msra.mxu0 0.0
    %3677 = vmatprep.subr.mxu0 0.0
    %3678 = vmatpush1.msra.mxu0 0.0
    %3679 = vmatprep.subr.mxu0 0.0
    %3680 = vmatpush1.msra.mxu0 0.0
    %3681 = vmatprep.subr.mxu0 0.0
    %3682 = vmatpush1.msra.mxu0 0.0
    %3683 = vmatprep.subr.mxu0 0.0
    %3684 = vmatpush1.msra.mxu0 0.0
    %3685 = vmatprep.subr.mxu0 0.0
    %3686 = vmatpush1.msra.mxu0 0.0
    %3687 = vmatprep.subr.mxu0 0.0
    %3688 = vmatpush1.msra.mxu0 0.0
    %3689 = vmatprep.subr.mxu0 0.0
    %3690 = vmatpush1.msra.mxu0 0.0
    %3691 = vmatprep.mubr.f32.mxu0 0.0
    %3692 = vmatmul.mubr.f32.gmra.mrb[0].mxu0 %v3554
    %v3693 = vpop.f32.mrb[0].mxu0
    %v3694 = vadd.f32 %v3551, %v3693
    %v3695 = vpop.f32.mrb[0].mxu0
    %v3696 = vadd.f32 %v3551, %v3695
    %3697 = vdwg.mxu0
    %s3698 = scalar_lea.vmem %s3, 96
    %v3699 = vld [vmem:[%s3698] sm:$0xff]
    %3701 = vset.pattern.permute.xlu0 0
    %3702 = vperm.xlu0 %3701, %v3699
    %v3703 = vpop.permute.xlu0 %3702
    %v3705 = vmul.f32 %v3623, %v3703
    %v3706 = vmul.f32 %v3625, %v3703
    %v3707 = vmul.f32 %v3694, %v3703
    %v3708 = vmul.f32 %v3696, %v3703
    %v3709 = vrot.slane %v3705, 4
    %v3710 = vadd.f32 %v3705, %v3709
    %v3711 = vrot.slane %v3710, 2
    %v3712 = vadd.f32 %v3710, %v3711
    %v3713 = vrot.slane %v3712, 1
    %v3714 = vadd.f32 %v3712, %v3713
    %v3715 = vrot.slane %v3706, 4
    %v3716 = vadd.f32 %v3706, %v3715
    %v3717 = vrot.slane %v3716, 2
    %v3718 = vadd.f32 %v3716, %v3717
    %v3719 = vrot.slane %v3718, 1
    %v3720 = vadd.f32 %v3718, %v3719
    %v3721 = vrot.slane %v3707, 4
    %v3722 = vadd.f32 %v3707, %v3721
    %v3723 = vrot.slane %v3722, 2
    %v3724 = vadd.f32 %v3722, %v3723
    %v3725 = vrot.slane %v3724, 1
    %v3726 = vadd.f32 %v3724, %v3725
    %v3727 = vrot.slane %v3708, 4
    %v3728 = vadd.f32 %v3708, %v3727
    %v3729 = vrot.slane %v3728, 2
    %v3730 = vadd.f32 %v3728, %v3729
    %v3731 = vrot.slane %v3730, 1
    %v3732 = vadd.f32 %v3730, %v3731
    %s3733 = sld [smem:[#allocation3 + $0x3]]
    %v3734 = vstv %s3733
    %v3735 = vadd.f32 %v3714, %v3734
    %v3736 = vadd.f32 %v3720, %v3734
    %v3737 = vadd.f32 %v3726, %v3734
    %v3738 = vadd.f32 %v3732, %v3734
    %v3743 = vcombine.low %v3735, %v3736
    %v3744 = vcombine.low %v3737, %v3738
    %v3746 = vunpack.c.l.s4 1966171168
    %v3747 = vunpack.c.0.s8 %v3746
    %v3748 = vlaneseq
    %v3749 = vshrl.u32 %v3748, 7
    %v3750 = vsub.s32 %v3747, %v3749
    %v3751 = vrot.slane %v3743, %v3750
    %v3753 = vunpack.c.l.s4 1966171168
    %v3754 = vunpack.c.0.s8 %v3753
    %v3755 = vlaneseq
    %v3756 = vshrl.u32 %v3755, 7
    %v3757 = vsub.s32 %v3754, %v3756
    %v3758 = vrot.slane %v3744, %v3757
    %v3759 = vcombine.low %v3751, %v3758
    %v3761 = vunpack.c.l.s4 1966171168
    %v3762 = vunpack.c.0.s8 %v3761
    %v3763 = vlaneseq
    %v3764 = vshrl.u32 %v3763, 7
    %v3765 = vsub.s32 %v3762, %v3764
    %v3766 = vrot.slane %v3759, %v3765
    %v3768 = vlaneseq
    %vm3769 = vcmp.ge.s32.totalorder %v3768, 0
    %vm3770 = vcmp.lt.s32.totalorder %v3768, 512
    %vm3771 = vmand %vm3769, %vm3770
    %3772 = vst.msk [vmem:[%s5] sm:$0xf] %vm3771, %v3766
    // Predicated region
    $region30: #{diffusion_forward_packed.1} parent=1 // pred_check
      _
    $region31: #{diffusion_forward_packed.1} parent=1 // pred_check_branch
      %3774 = sbr.rel (0) target = $region33
    $region32: #{diffusion_forward_packed.1} parent=1 // pred_region
      _
    $region33: #{diffusion_forward_packed.1} parent=1 // pred_fallthru
      _
    // Predicated region
    $region34: #{diffusion_forward_packed.1} parent=1 // pred_check
      _
    $region35: #{diffusion_forward_packed.1} parent=1 // pred_check_branch
      %3776 = sbr.rel (0) target = $region37
    $region36: #{diffusion_forward_packed.1} parent=1 // pred_region
      _
    $region37: #{diffusion_forward_packed.1} parent=1 // pred_fallthru
      _
    %3777 = vsyncpa [#allocation4], 1
    %3778 = vsyncpa [#allocation5], 1

</llo_original>
